<compile_context>
chip_gen: v5e
topology: v5e:2x2
jax: 0.10.0
libtpu: 0.0.40
codegen_flags: <defaults>
</compile_context>

<pallas_src>
import math
import functools

import jax
import jax.numpy as jnp
from jax.experimental import pallas as pl
from jax.experimental.pallas import tpu as pltpu


def _round_up(x, m):
    return (x + m - 1) // m * m


# ----------------------------------------------------------------------------
# Kernel: one grid step == (one batch block, one encoder layer)
# ----------------------------------------------------------------------------
def encoder_stack_kernel(x_ref, bias_ref,
                         wqkv_ref, bqkv_ref, wo_ref, bo_ref,
                         w1_ref, b1_ref, w2_ref, b2_ref,
                         g1_ref, bt1_ref, g2_ref, bt2_ref,
                         o_ref, act_ref,
                         *, num_heads, head_dim, embed_dim):
    layer = pl.program_id(1)
    H, Dh, E = num_heads, head_dim, embed_dim

    # Load this batch block's activations into VMEM scratch once (layer 0);
    # they stay resident across the whole layer axis (no HBM round trips).
    @pl.when(layer == 0)
    def _():
        act_ref[...] = x_ref[...]

    x = act_ref[...]                                   # (Bb, Sp, E) f32
    Bb, Sp, _ = x.shape
    M = Bb * Sp

    def layer_norm(y, gamma, beta):
        # two-pass form (E[(y-mu)^2]) for numerical safety, f32 throughout
        mu = jnp.mean(y, axis=-1, keepdims=True)
        d = y - mu
        var = jnp.mean(d * d, axis=-1, keepdims=True)
        return d * jax.lax.rsqrt(var + 1e-5) * gamma + beta

    x2d = x.reshape(M, E)                              # flatten (Bb, Sp) -> M

    # ---- fused QKV projection: one matmul, scale pre-folded into Q cols ----
    qkv = jnp.dot(x2d.astype(jnp.bfloat16), wqkv_ref[0],
                  preferred_element_type=jnp.float32) + bqkv_ref[0]   # (M, 3E)
    qkv = qkv.reshape(Bb, Sp, 3 * E)

    # ---- scaled dot-product attention (per head, batched over Bb) -----------
    # TODO(synk): batch heads into the dot batch dim / flash loop for large H,S.
    bias = bias_ref[...]                               # (Bb, 1, Sp) additive
    ctx_heads = []
    for h in range(H):
        q_h = qkv[:, :, h * Dh:(h + 1) * Dh].astype(jnp.bfloat16)
        k_h = qkv[:, :, E + h * Dh:E + (h + 1) * Dh].astype(jnp.bfloat16)
        v_h = qkv[:, :, 2 * E + h * Dh:2 * E + (h + 1) * Dh].astype(jnp.bfloat16)
        s = jnp.einsum('bqd,bkd->bqk', q_h, k_h,
                       preferred_element_type=jnp.float32)            # (Bb,Sp,Sp)
        s = s + bias
        m = jnp.max(s, axis=-1, keepdims=True)
        p = jnp.exp(s - m)
        p = p * pl.reciprocal(jnp.sum(p, axis=-1, keepdims=True), approx=True)
        ctx_heads.append(jnp.einsum('bqk,bkd->bqd', p.astype(jnp.bfloat16), v_h,
                                    preferred_element_type=jnp.float32))
    ctx = jnp.concatenate(ctx_heads, axis=-1).reshape(M, E)           # head-major

    # ---- fused output projection (head reduction on the MXU contraction) ----
    attn = jnp.dot(ctx.astype(jnp.bfloat16), wo_ref[0],
                   preferred_element_type=jnp.float32) + bo_ref[0]    # (M, E)

    # ---- residual + LayerNorm 1 ---------------------------------------------
    x1 = layer_norm(x2d + attn, g1_ref[0], bt1_ref[0])

    # ---- feed-forward (ReLU) + residual + LayerNorm 2 -------------------------
    h1 = jnp.dot(x1.astype(jnp.bfloat16), w1_ref[0],
                 preferred_element_type=jnp.float32) + b1_ref[0]
    h1 = jnp.maximum(h1, 0.0)
    h2 = jnp.dot(h1.astype(jnp.bfloat16), w2_ref[0],
                 preferred_element_type=jnp.float32) + b2_ref[0]
    x2 = layer_norm(x1 + h2, g2_ref[0], bt2_ref[0])

    x2 = x2.reshape(Bb, Sp, E)
    act_ref[...] = x2                                  # carry to next layer

    @pl.when(layer == pl.num_programs(1) - 1)
    def _():
        o_ref[...] = x2.astype(o_ref.dtype)


# ----------------------------------------------------------------------------
# Weight packing: natural (un-padded) shapes, bf16 weights, scale folded into Q
# ----------------------------------------------------------------------------
def pack_params(params, num_heads):
    E = params[0][0].shape[0]
    Dh = E // num_heads
    scale = 1.0 / math.sqrt(float(Dh))

    lists = [[] for _ in range(12)]
    for (wqkv, bqkv, wo, bo, w1, b1, w2, b2, g1, beta1, g2, beta2) in params:
        # columns [Q|K|V], head-major within each part (PyTorch in_proj layout);
        # fold 1/sqrt(Dh) into the Q columns + Q bias.
        w = jnp.concatenate([wqkv[:, :E] * scale, wqkv[:, E:]], axis=1)   # (E, 3E)
        b = jnp.concatenate([bqkv[:, :E] * scale, bqkv[:, E:]], axis=1)   # (1, 3E)
        lists[0].append(w.astype(jnp.bfloat16))
        lists[1].append(b)                       # f32
        lists[2].append(wo.astype(jnp.bfloat16))  # (E, E), rows head-major
        lists[3].append(bo)
        lists[4].append(w1.astype(jnp.bfloat16))  # (E, Dff)
        lists[5].append(b1)
        lists[6].append(w2.astype(jnp.bfloat16))  # (Dff, E)
        lists[7].append(b2)
        lists[8].append(g1)
        lists[9].append(beta1)
        lists[10].append(g2)
        lists[11].append(beta2)

    return tuple(jnp.stack(xs, axis=0) for xs in lists)


def _pick_batch_block(B, Sp, Dff):
    # Target Bb*Sp >= 256 MXU rows (v6e/v7x; >=128 suffices on v5e), bounded so
    # the largest f32 intermediate (M, Dff) stays a few MiB of VMEM.
    Bb = max(1, min(B, -(-256 // Sp)))
    while Bb > 1 and Bb * Sp * Dff * 4 > 8 * 1024 * 1024:
        Bb -= 1
    return Bb


# ----------------------------------------------------------------------------
# Wrapper
# ----------------------------------------------------------------------------
def transformer_encoder_forward(params, src, src_key_padding_mask, num_heads):
    """params: list (per layer) of raw (in,out)-layout fp32 arrays (see init_params).
       src: (B, S, E) f32; src_key_padding_mask: (B, S) (1.0/True == pad) or None."""
    B, S, E = src.shape
    L = len(params)
    H = num_heads
    assert E % H == 0
    Dh = E // H
    Sp = _round_up(max(S, 8), 8)
    Dff = params[0][4].shape[1]

    packed = pack_params(params, num_heads)

    if src_key_padding_mask is None:
        src_key_padding_mask = jnp.zeros((B, S), jnp.float32)

    Bb = _pick_batch_block(B, Sp, Dff)
    nb = -(-B // Bb)
    Bp = nb * Bb

    # Zero-padded activations; padded sequence rows are masked as keys, padded
    # batch rows get a zero bias (results discarded) to avoid -inf-only rows.
    x_p = jnp.zeros((Bp, Sp, E), jnp.float32).at[:B, :S, :].set(
        src.astype(jnp.float32))
    key_pad = jnp.zeros((Bp, Sp), jnp.float32)
    key_pad = key_pad.at[:B, :S].set(src_key_padding_mask.astype(jnp.float32))
    key_pad = key_pad.at[:B, S:].set(1.0)
    bias = jnp.where(key_pad > 0.5, jnp.float32(-1e30),
                     jnp.float32(0.0)).reshape(Bp, 1, Sp)

    act_map = lambda b, l: (b, 0, 0)          # activations / bias / output
    w_map = lambda b, l: (l, 0, 0)            # per-layer stacked weights

    in_specs = [
        pl.BlockSpec((Bb, Sp, E), act_map),                 # x
        pl.BlockSpec((Bb, 1, Sp), act_map),                 # additive key bias
        pl.BlockSpec((1, E, 3 * E), w_map),                 # wqkv (bf16)
        pl.BlockSpec((1, 1, 3 * E), w_map),                 # bqkv (f32)
        pl.BlockSpec((1, E, E), w_map),                     # wo   (bf16)
        pl.BlockSpec((1, 1, E), w_map),                     # bo
        pl.BlockSpec((1, E, Dff), w_map),                   # w1   (bf16)
        pl.BlockSpec((1, 1, Dff), w_map),                   # b1
        pl.BlockSpec((1, Dff, E), w_map),                   # w2   (bf16)
        pl.BlockSpec((1, 1, E), w_map),                     # b2
        pl.BlockSpec((1, 1, E), w_map),                     # ln1 gamma
        pl.BlockSpec((1, 1, E), w_map),                     # ln1 beta
        pl.BlockSpec((1, 1, E), w_map),                     # ln2 gamma
        pl.BlockSpec((1, 1, E), w_map),                     # ln2 beta
    ]
    out_spec = pl.BlockSpec((Bb, Sp, E), act_map)

    # VMEM budget from the actual chip (64 MiB on v7x, 128 MiB on v5e/v6e).
    try:
        vmem_cap = int(pltpu.get_tpu_info().vmem_capacity_bytes)
    except Exception:
        vmem_cap = 64 * 1024 * 1024
    vmem_limit = max(32 * 1024 * 1024,
                     min(vmem_cap * 7 // 8, 100 * 1024 * 1024))

    # Advisory cost estimate for the XLA scheduler.
    M = Bb * Sp
    flops = nb * L * (2 * M * E * 3 * E            # QKV projection
                      + 4 * Bb * H * Sp * Sp * Dh  # QK^T and PV
                      + 2 * M * E * E              # output projection
                      + 4 * M * E * Dff)           # FFN
    transcendentals = nb * L * Bb * H * Sp * Sp
    weight_bytes = L * (2 * (3 * E * E + E * E + 2 * E * Dff)     # bf16 weights
                        + 4 * (3 * E + 6 * E + Dff))              # f32 biases/LN
    bytes_accessed = Bp * Sp * E * 4 * 2 + nb * weight_bytes

    kernel = functools.partial(encoder_stack_kernel,
                               num_heads=H, head_dim=Dh, embed_dim=E)

    out_p = pl.pallas_call(
        kernel,
        out_shape=jax.ShapeDtypeStruct((Bp, Sp, E), jnp.float32),
        grid=(nb, L),
        in_specs=in_specs,
        out_specs=out_spec,
        scratch_shapes=[pltpu.VMEM((Bb, Sp, E), jnp.float32)],
        compiler_params=pltpu.CompilerParams(
            # batch blocks independent ("parallel"); activations carried in
            # scratch across the layer axis ("arbitrary").  On v7x with nb >= 2
            # both TCs stream the same weights; acceptable here (weights small).
            dimension_semantics=("parallel", "arbitrary"),
            vmem_limit_bytes=vmem_limit),
        cost_estimate=pl.CostEstimate(flops=flops,
                                      transcendentals=transcendentals,
                                      bytes_accessed=bytes_accessed),
    )(x_p, bias, *packed)

    return out_p[:B, :S, :E]


# ----------------------------------------------------------------------------
# Synthetic parameters (shapes follow nn.TransformerEncoderLayer; weights are
# stored pre-transposed as (in_features, out_features)).
# ----------------------------------------------------------------------------
def init_params(key, embed_dim, num_layers, dim_feedforward=2048):
    params = []
    for layer in range(num_layers):
        lk = jax.random.fold_in(key, layer)
        k0, k1, k2, k3 = jax.random.split(lk, 4)
        wqkv = 0.02 * jax.random.normal(k0, (embed_dim, 3 * embed_dim), jnp.float32)
        bqkv = jnp.zeros((1, 3 * embed_dim), jnp.float32)
        wo = 0.02 * jax.random.normal(k1, (embed_dim, embed_dim), jnp.float32)
        bo = jnp.zeros((1, embed_dim), jnp.float32)
        w1 = 0.02 * jax.random.normal(k2, (embed_dim, dim_feedforward), jnp.float32)
        b1 = jnp.zeros((1, dim_feedforward), jnp.float32)
        w2 = 0.02 * jax.random.normal(k3, (dim_feedforward, embed_dim), jnp.float32)
        b2 = jnp.zeros((1, embed_dim), jnp.float32)
        g1 = jnp.ones((1, embed_dim), jnp.float32)
        beta1 = jnp.zeros((1, embed_dim), jnp.float32)
        g2 = jnp.ones((1, embed_dim), jnp.float32)
        beta2 = jnp.zeros((1, embed_dim), jnp.float32)
        params.append((wqkv, bqkv, wo, bo, w1, b1, w2, b2, g1, beta1, g2, beta2))
    return params


# ----------------------------- pure-JAX reference -----------------------------
def _reference_forward(params, src, pad_mask, num_heads):
    x = src.astype(jnp.float32)
    B, S, E = x.shape
    H = num_heads
    Dh = E // H

    def ln(y, g, b):
        mu = jnp.mean(y, axis=-1, keepdims=True)
        var = jnp.mean((y - mu) ** 2, axis=-1, keepdims=True)
        return (y - mu) * jax.lax.rsqrt(var + 1e-5) * g + b

    for (wqkv, bqkv, wo, bo, w1, b1, w2, b2, g1, beta1, g2, beta2) in params:
        qkv = x @ wqkv + bqkv[0]
        q, k, v = qkv[..., :E], qkv[..., E:2 * E], qkv[..., 2 * E:]
        q = q.reshape(B, S, H, Dh).transpose(0, 2, 1, 3)
        k = k.reshape(B, S, H, Dh).transpose(0, 2, 1, 3)
        v = v.reshape(B, S, H, Dh).transpose(0, 2, 1, 3)
        s = jnp.einsum('bhqd,bhkd->bhqk', q, k) / math.sqrt(Dh)
        s = jnp.where(pad_mask[:, None, None, :] > 0.5, -1e30, s)
        p = jax.nn.softmax(s, axis=-1)
        a = jnp.einsum('bhqk,bhkd->bhqd', p, v).transpose(0, 2, 1, 3).reshape(B, S, E)
        a = a @ wo + bo[0]
        x = ln(x + a, g1[0], beta1[0])
        h = jnp.maximum(x @ w1 + b1[0], 0.0)
        h = h @ w2 + b2[0]
        x = ln(x + h, g2[0], beta2[0])
    return x


if __name__ == "__main__":
    # Small config consistent with the module: embed_dim=32, num_heads=4, 2 layers.
    B, S, E = 2, 8, 32
    num_heads = 4
    num_layers = 2
    dim_feedforward = 2048   # nn.TransformerEncoderLayer default

    root = jax.random.PRNGKey(0)
    k_x, k_p = jax.random.split(root)
    src = jax.random.normal(k_x, (B, S, E), jnp.float32)

    # src_key_padding_mask: 1.0 == padded; pad the last two keys of batch 1.
    pad_mask = jnp.zeros((B, S), jnp.float32).at[1, S - 2:].set(1.0)

    params = init_params(k_p, E, num_layers, dim_feedforward)

    out = transformer_encoder_forward(params, src, pad_mask, num_heads)
    out = jax.block_until_ready(out)

    ref = _reference_forward(params, src, pad_mask, num_heads)
    assert out.shape == (B, S, E)
    err = float(jnp.max(jnp.abs(out - ref)))
    # bf16 MXU operands with f32 accumulation vs a pure-f32 reference.
    assert err < 2e-2, f"Pallas output mismatch vs reference (max abs err {err})"

    print("KERNEL_OK")
</pallas_src>

<mosaic_0001>
module attributes {stable_mosaic.version = 11 : i64} {
  func.func @encoder_stack_kernel(%arg0: i32, %arg1: i32, %arg2: memref<2x8x32xf32, #tpu.memory_space<vmem>>, %arg3: memref<2x1x8xf32, #tpu.memory_space<vmem>>, %arg4: memref<1x32x96xbf16, #tpu.memory_space<vmem>>, %arg5: memref<1x1x96xf32, #tpu.memory_space<vmem>>, %arg6: memref<1x32x32xbf16, #tpu.memory_space<vmem>>, %arg7: memref<1x1x32xf32, #tpu.memory_space<vmem>>, %arg8: memref<1x32x2048xbf16, #tpu.memory_space<vmem>>, %arg9: memref<1x1x2048xf32, #tpu.memory_space<vmem>>, %arg10: memref<1x2048x32xbf16, #tpu.memory_space<vmem>>, %arg11: memref<1x1x32xf32, #tpu.memory_space<vmem>>, %arg12: memref<1x1x32xf32, #tpu.memory_space<vmem>>, %arg13: memref<1x1x32xf32, #tpu.memory_space<vmem>>, %arg14: memref<1x1x32xf32, #tpu.memory_space<vmem>>, %arg15: memref<1x1x32xf32, #tpu.memory_space<vmem>>, %arg16: memref<2x8x32xf32, #tpu.memory_space<vmem>>, %arg17: memref<2x8x32xf32, #tpu.memory_space<vmem>>) attributes {dimension_semantics = [#tpu.dimension_semantics<parallel>, #tpu.dimension_semantics<arbitrary>], iteration_bounds = array<i64: 1, 2>, scalar_prefetch = 0 : i64, scratch_operands = 1 : i64, tpu.core_type = #tpu.core_type<tc>, window_params = [{transform_indices = @transform_0, window_bounds = array<i64: 2, 8, 32>}, {transform_indices = @transform_1, window_bounds = array<i64: 2, 1, 8>}, {transform_indices = @transform_2, window_bounds = array<i64: 1, 32, 96>}, {transform_indices = @transform_3, window_bounds = array<i64: 1, 1, 96>}, {transform_indices = @transform_4, window_bounds = array<i64: 1, 32, 32>}, {transform_indices = @transform_5, window_bounds = array<i64: 1, 1, 32>}, {transform_indices = @transform_6, window_bounds = array<i64: 1, 32, 2048>}, {transform_indices = @transform_7, window_bounds = array<i64: 1, 1, 2048>}, {transform_indices = @transform_8, window_bounds = array<i64: 1, 2048, 32>}, {transform_indices = @transform_9, window_bounds = array<i64: 1, 1, 32>}, {transform_indices = @transform_10, window_bounds = array<i64: 1, 1, 32>}, {transform_indices = @transform_11, window_bounds = array<i64: 1, 1, 32>}, {transform_indices = @transform_12, window_bounds = array<i64: 1, 1, 32>}, {transform_indices = @transform_13, window_bounds = array<i64: 1, 1, 32>}, {transform_indices = @transform_14, window_bounds = array<i64: 2, 8, 32>}]} {
    %c0_i32 = arith.constant 0 : i32
    %0 = arith.cmpi eq, %arg1, %c0_i32 : i32
    %1 = arith.extui %0 : i1 to i32
    %c0_i32_0 = arith.constant 0 : i32
    %2 = arith.cmpi ne, %1, %c0_i32_0 : i32
    scf.if %2 {
      %c0_76 = arith.constant 0 : index
      %c0_77 = arith.constant 0 : index
      %c0_78 = arith.constant 0 : index
      %182 = vector.load %arg2[%c0_76, %c0_77, %c0_78] : memref<2x8x32xf32, #tpu.memory_space<vmem>>, vector<2x8x32xf32>
      %c0_79 = arith.constant 0 : index
      %c0_80 = arith.constant 0 : index
      %c0_81 = arith.constant 0 : index
      %183 = vector.load %arg17[%c0_79, %c0_80, %c0_81] : memref<2x8x32xf32, #tpu.memory_space<vmem>>, vector<2x8x32xf32>
      tpu.vector_store %arg17[%c0_79, %c0_80, %c0_81], %182 {strides = array<i32>} : memref<2x8x32xf32, #tpu.memory_space<vmem>>, vector<2x8x32xf32>,
    } else {
    }
    %c0 = arith.constant 0 : index
    %c0_1 = arith.constant 0 : index
    %c0_2 = arith.constant 0 : index
    %3 = vector.load %arg17[%c0, %c0_1, %c0_2] : memref<2x8x32xf32, #tpu.memory_space<vmem>>, vector<2x8x32xf32>
    %4 = vector.shape_cast %3 : vector<2x8x32xf32> to vector<16x32xf32>
    %5 = arith.truncf %4 : vector<16x32xf32> to vector<16x32xbf16>
    %c0_3 = arith.constant 0 : index
    %c0_4 = arith.constant 0 : index
    %c0_5 = arith.constant 0 : index
    %6 = vector.load %arg4[%c0_3, %c0_4, %c0_5] : memref<1x32x96xbf16, #tpu.memory_space<vmem>>, vector<1x32x96xbf16>
    %7 = vector.shape_cast %6 : vector<1x32x96xbf16> to vector<32x96xbf16>
    %cst = arith.constant dense<0.000000e+00> : vector<16x96xf32>
    %8 = tpu.matmul %5, %7, %cst {dimension_numbers = #tpu.dot_dimension_numbers<[1], [0], [0], [1], [0, 0, 1, 1], [], []>} : vector<16x32xbf16>, vector<32x96xbf16>, vector<16x96xf32> -> vector<16x96xf32>
    %c0_6 = arith.constant 0 : index
    %c0_7 = arith.constant 0 : index
    %c0_8 = arith.constant 0 : index
    %9 = vector.load %arg5[%c0_6, %c0_7, %c0_8] : memref<1x1x96xf32, #tpu.memory_space<vmem>>, vector<1x1x96xf32>
    %10 = vector.shape_cast %9 : vector<1x1x96xf32> to vector<1x96xf32>
    %11 = vector.broadcast %10 : vector<1x96xf32> to vector<16x96xf32>
    %12 = arith.addf %8, %11 : vector<16x96xf32>
    %13 = vector.shape_cast %12 : vector<16x96xf32> to vector<2x8x96xf32>
    %c0_9 = arith.constant 0 : index
    %c0_10 = arith.constant 0 : index
    %c0_11 = arith.constant 0 : index
    %14 = vector.load %arg3[%c0_9, %c0_10, %c0_11] : memref<2x1x8xf32, #tpu.memory_space<vmem>>, vector<2x1x8xf32>
    %15 = vector.extract_strided_slice %13 {offsets = [0, 0, 0], sizes = [2, 8, 8], strides = [1, 1, 1]} : vector<2x8x96xf32> to vector<2x8x8xf32>
    %16 = arith.truncf %15 : vector<2x8x8xf32> to vector<2x8x8xbf16>
    %17 = vector.extract_strided_slice %13 {offsets = [0, 0, 32], sizes = [2, 8, 8], strides = [1, 1, 1]} : vector<2x8x96xf32> to vector<2x8x8xf32>
    %18 = arith.truncf %17 : vector<2x8x8xf32> to vector<2x8x8xbf16>
    %19 = vector.extract_strided_slice %13 {offsets = [0, 0, 64], sizes = [2, 8, 8], strides = [1, 1, 1]} : vector<2x8x96xf32> to vector<2x8x8xf32>
    %20 = arith.truncf %19 : vector<2x8x8xf32> to vector<2x8x8xbf16>
    "tpu.trace_start"() <{level = 10 : i32, message = "bqd,bkd->bqk"}> : () -> ()
    %cst_12 = arith.constant dense<0.000000e+00> : vector<2x8x8xf32>
    %21 = tpu.matmul %16, %18, %cst_12 {dimension_numbers = #tpu.dot_dimension_numbers<[2], [2], [1], [1], [0, 0, 0, 1, 1, 1], [0], [0]>} : vector<2x8x8xbf16>, vector<2x8x8xbf16>, vector<2x8x8xf32> -> vector<2x8x8xf32>
    "tpu.trace_stop"() : () -> ()
    %22 = vector.broadcast %14 : vector<2x1x8xf32> to vector<2x8x8xf32>
    %23 = arith.addf %21, %22 : vector<2x8x8xf32>
    %cst_13 = arith.constant dense<0xFF800000> : vector<2x8xf32>
    %24 = vector.multi_reduction <maximumf>, %23, %cst_13 [2] : vector<2x8x8xf32> to vector<2x8xf32>
    %25 = vector.shape_cast %24 : vector<2x8xf32> to vector<2x8x1xf32>
    %26 = vector.broadcast %25 : vector<2x8x1xf32> to vector<2x8x8xf32>
    %27 = arith.subf %23, %26 : vector<2x8x8xf32>
    %28 = math.exp %27 : vector<2x8x8xf32>
    %cst_14 = arith.constant dense<0.000000e+00> : vector<2x8xf32>
    %29 = vector.multi_reduction <add>, %28, %cst_14 [2] : vector<2x8x8xf32> to vector<2x8xf32>
    %30 = vector.shape_cast %29 : vector<2x8xf32> to vector<2x8x1xf32>
    %31 = tpu.reciprocal %30 {approx = true} : vector<2x8x1xf32> -> vector<2x8x1xf32>
    %32 = vector.broadcast %31 : vector<2x8x1xf32> to vector<2x8x8xf32>
    %33 = arith.mulf %28, %32 : vector<2x8x8xf32>
    %34 = arith.truncf %33 : vector<2x8x8xf32> to vector<2x8x8xbf16>
    "tpu.trace_start"() <{level = 10 : i32, message = "bqk,bkd->bqd"}> : () -> ()
    %cst_15 = arith.constant dense<0.000000e+00> : vector<2x8x8xf32>
    %35 = tpu.matmul %34, %20, %cst_15 {dimension_numbers = #tpu.dot_dimension_numbers<[2], [1], [1], [2], [0, 0, 0, 1, 1, 2], [0], [0]>} : vector<2x8x8xbf16>, vector<2x8x8xbf16>, vector<2x8x8xf32> -> vector<2x8x8xf32>
    "tpu.trace_stop"() : () -> ()
    %36 = vector.extract_strided_slice %13 {offsets = [0, 0, 8], sizes = [2, 8, 8], strides = [1, 1, 1]} : vector<2x8x96xf32> to vector<2x8x8xf32>
    %37 = arith.truncf %36 : vector<2x8x8xf32> to vector<2x8x8xbf16>
    %38 = vector.extract_strided_slice %13 {offsets = [0, 0, 40], sizes = [2, 8, 8], strides = [1, 1, 1]} : vector<2x8x96xf32> to vector<2x8x8xf32>
    %39 = arith.truncf %38 : vector<2x8x8xf32> to vector<2x8x8xbf16>
    %40 = vector.extract_strided_slice %13 {offsets = [0, 0, 72], sizes = [2, 8, 8], strides = [1, 1, 1]} : vector<2x8x96xf32> to vector<2x8x8xf32>
    %41 = arith.truncf %40 : vector<2x8x8xf32> to vector<2x8x8xbf16>
    "tpu.trace_start"() <{level = 10 : i32, message = "bqd,bkd->bqk"}> : () -> ()
    %cst_16 = arith.constant dense<0.000000e+00> : vector<2x8x8xf32>
    %42 = tpu.matmul %37, %39, %cst_16 {dimension_numbers = #tpu.dot_dimension_numbers<[2], [2], [1], [1], [0, 0, 0, 1, 1, 1], [0], [0]>} : vector<2x8x8xbf16>, vector<2x8x8xbf16>, vector<2x8x8xf32> -> vector<2x8x8xf32>
    "tpu.trace_stop"() : () -> ()
    %43 = vector.broadcast %14 : vector<2x1x8xf32> to vector<2x8x8xf32>
    %44 = arith.addf %42, %43 : vector<2x8x8xf32>
    %cst_17 = arith.constant dense<0xFF800000> : vector<2x8xf32>
    %45 = vector.multi_reduction <maximumf>, %44, %cst_17 [2] : vector<2x8x8xf32> to vector<2x8xf32>
    %46 = vector.shape_cast %45 : vector<2x8xf32> to vector<2x8x1xf32>
    %47 = vector.broadcast %46 : vector<2x8x1xf32> to vector<2x8x8xf32>
    %48 = arith.subf %44, %47 : vector<2x8x8xf32>
    %49 = math.exp %48 : vector<2x8x8xf32>
    %cst_18 = arith.constant dense<0.000000e+00> : vector<2x8xf32>
    %50 = vector.multi_reduction <add>, %49, %cst_18 [2] : vector<2x8x8xf32> to vector<2x8xf32>
    %51 = vector.shape_cast %50 : vector<2x8xf32> to vector<2x8x1xf32>
    %52 = tpu.reciprocal %51 {approx = true} : vector<2x8x1xf32> -> vector<2x8x1xf32>
    %53 = vector.broadcast %52 : vector<2x8x1xf32> to vector<2x8x8xf32>
    %54 = arith.mulf %49, %53 : vector<2x8x8xf32>
    %55 = arith.truncf %54 : vector<2x8x8xf32> to vector<2x8x8xbf16>
    "tpu.trace_start"() <{level = 10 : i32, message = "bqk,bkd->bqd"}> : () -> ()
    %cst_19 = arith.constant dense<0.000000e+00> : vector<2x8x8xf32>
    %56 = tpu.matmul %55, %41, %cst_19 {dimension_numbers = #tpu.dot_dimension_numbers<[2], [1], [1], [2], [0, 0, 0, 1, 1, 2], [0], [0]>} : vector<2x8x8xbf16>, vector<2x8x8xbf16>, vector<2x8x8xf32> -> vector<2x8x8xf32>
    "tpu.trace_stop"() : () -> ()
    %57 = vector.extract_strided_slice %13 {offsets = [0, 0, 16], sizes = [2, 8, 8], strides = [1, 1, 1]} : vector<2x8x96xf32> to vector<2x8x8xf32>
    %58 = arith.truncf %57 : vector<2x8x8xf32> to vector<2x8x8xbf16>
    %59 = vector.extract_strided_slice %13 {offsets = [0, 0, 48], sizes = [2, 8, 8], strides = [1, 1, 1]} : vector<2x8x96xf32> to vector<2x8x8xf32>
    %60 = arith.truncf %59 : vector<2x8x8xf32> to vector<2x8x8xbf16>
    %61 = vector.extract_strided_slice %13 {offsets = [0, 0, 80], sizes = [2, 8, 8], strides = [1, 1, 1]} : vector<2x8x96xf32> to vector<2x8x8xf32>
    %62 = arith.truncf %61 : vector<2x8x8xf32> to vector<2x8x8xbf16>
    "tpu.trace_start"() <{level = 10 : i32, message = "bqd,bkd->bqk"}> : () -> ()
    %cst_20 = arith.constant dense<0.000000e+00> : vector<2x8x8xf32>
    %63 = tpu.matmul %58, %60, %cst_20 {dimension_numbers = #tpu.dot_dimension_numbers<[2], [2], [1], [1], [0, 0, 0, 1, 1, 1], [0], [0]>} : vector<2x8x8xbf16>, vector<2x8x8xbf16>, vector<2x8x8xf32> -> vector<2x8x8xf32>
    "tpu.trace_stop"() : () -> ()
    %64 = vector.broadcast %14 : vector<2x1x8xf32> to vector<2x8x8xf32>
    %65 = arith.addf %63, %64 : vector<2x8x8xf32>
    %cst_21 = arith.constant dense<0xFF800000> : vector<2x8xf32>
    %66 = vector.multi_reduction <maximumf>, %65, %cst_21 [2] : vector<2x8x8xf32> to vector<2x8xf32>
    %67 = vector.shape_cast %66 : vector<2x8xf32> to vector<2x8x1xf32>
    %68 = vector.broadcast %67 : vector<2x8x1xf32> to vector<2x8x8xf32>
    %69 = arith.subf %65, %68 : vector<2x8x8xf32>
    %70 = math.exp %69 : vector<2x8x8xf32>
    %cst_22 = arith.constant dense<0.000000e+00> : vector<2x8xf32>
    %71 = vector.multi_reduction <add>, %70, %cst_22 [2] : vector<2x8x8xf32> to vector<2x8xf32>
    %72 = vector.shape_cast %71 : vector<2x8xf32> to vector<2x8x1xf32>
    %73 = tpu.reciprocal %72 {approx = true} : vector<2x8x1xf32> -> vector<2x8x1xf32>
    %74 = vector.broadcast %73 : vector<2x8x1xf32> to vector<2x8x8xf32>
    %75 = arith.mulf %70, %74 : vector<2x8x8xf32>
    %76 = arith.truncf %75 : vector<2x8x8xf32> to vector<2x8x8xbf16>
    "tpu.trace_start"() <{level = 10 : i32, message = "bqk,bkd->bqd"}> : () -> ()
    %cst_23 = arith.constant dense<0.000000e+00> : vector<2x8x8xf32>
    %77 = tpu.matmul %76, %62, %cst_23 {dimension_numbers = #tpu.dot_dimension_numbers<[2], [1], [1], [2], [0, 0, 0, 1, 1, 2], [0], [0]>} : vector<2x8x8xbf16>, vector<2x8x8xbf16>, vector<2x8x8xf32> -> vector<2x8x8xf32>
    "tpu.trace_stop"() : () -> ()
    %78 = vector.extract_strided_slice %13 {offsets = [0, 0, 24], sizes = [2, 8, 8], strides = [1, 1, 1]} : vector<2x8x96xf32> to vector<2x8x8xf32>
    %79 = arith.truncf %78 : vector<2x8x8xf32> to vector<2x8x8xbf16>
    %80 = vector.extract_strided_slice %13 {offsets = [0, 0, 56], sizes = [2, 8, 8], strides = [1, 1, 1]} : vector<2x8x96xf32> to vector<2x8x8xf32>
    %81 = arith.truncf %80 : vector<2x8x8xf32> to vector<2x8x8xbf16>
    %82 = vector.extract_strided_slice %13 {offsets = [0, 0, 88], sizes = [2, 8, 8], strides = [1, 1, 1]} : vector<2x8x96xf32> to vector<2x8x8xf32>
    %83 = arith.truncf %82 : vector<2x8x8xf32> to vector<2x8x8xbf16>
    "tpu.trace_start"() <{level = 10 : i32, message = "bqd,bkd->bqk"}> : () -> ()
    %cst_24 = arith.constant dense<0.000000e+00> : vector<2x8x8xf32>
    %84 = tpu.matmul %79, %81, %cst_24 {dimension_numbers = #tpu.dot_dimension_numbers<[2], [2], [1], [1], [0, 0, 0, 1, 1, 1], [0], [0]>} : vector<2x8x8xbf16>, vector<2x8x8xbf16>, vector<2x8x8xf32> -> vector<2x8x8xf32>
    "tpu.trace_stop"() : () -> ()
    %85 = vector.broadcast %14 : vector<2x1x8xf32> to vector<2x8x8xf32>
    %86 = arith.addf %84, %85 : vector<2x8x8xf32>
    %cst_25 = arith.constant dense<0xFF800000> : vector<2x8xf32>
    %87 = vector.multi_reduction <maximumf>, %86, %cst_25 [2] : vector<2x8x8xf32> to vector<2x8xf32>
    %88 = vector.shape_cast %87 : vector<2x8xf32> to vector<2x8x1xf32>
    %89 = vector.broadcast %88 : vector<2x8x1xf32> to vector<2x8x8xf32>
    %90 = arith.subf %86, %89 : vector<2x8x8xf32>
    %91 = math.exp %90 : vector<2x8x8xf32>
    %cst_26 = arith.constant dense<0.000000e+00> : vector<2x8xf32>
    %92 = vector.multi_reduction <add>, %91, %cst_26 [2] : vector<2x8x8xf32> to vector<2x8xf32>
    %93 = vector.shape_cast %92 : vector<2x8xf32> to vector<2x8x1xf32>
    %94 = tpu.reciprocal %93 {approx = true} : vector<2x8x1xf32> -> vector<2x8x1xf32>
    %95 = vector.broadcast %94 : vector<2x8x1xf32> to vector<2x8x8xf32>
    %96 = arith.mulf %91, %95 : vector<2x8x8xf32>
    %97 = arith.truncf %96 : vector<2x8x8xf32> to vector<2x8x8xbf16>
    "tpu.trace_start"() <{level = 10 : i32, message = "bqk,bkd->bqd"}> : () -> ()
    %cst_27 = arith.constant dense<0.000000e+00> : vector<2x8x8xf32>
    %98 = tpu.matmul %97, %83, %cst_27 {dimension_numbers = #tpu.dot_dimension_numbers<[2], [1], [1], [2], [0, 0, 0, 1, 1, 2], [0], [0]>} : vector<2x8x8xbf16>, vector<2x8x8xbf16>, vector<2x8x8xf32> -> vector<2x8x8xf32>
    "tpu.trace_stop"() : () -> ()
    %99 = tpu.concatenate %35, %56, %77, %98 in 2 : vector<2x8x8xf32>, vector<2x8x8xf32>, vector<2x8x8xf32>, vector<2x8x8xf32> -> vector<2x8x32xf32>
    %100 = vector.shape_cast %99 : vector<2x8x32xf32> to vector<16x32xf32>
    %101 = arith.truncf %100 : vector<16x32xf32> to vector<16x32xbf16>
    %c0_28 = arith.constant 0 : index
    %c0_29 = arith.constant 0 : index
    %c0_30 = arith.constant 0 : index
    %102 = vector.load %arg6[%c0_28, %c0_29, %c0_30] : memref<1x32x32xbf16, #tpu.memory_space<vmem>>, vector<1x32x32xbf16>
    %103 = vector.shape_cast %102 : vector<1x32x32xbf16> to vector<32x32xbf16>
    %cst_31 = arith.constant dense<0.000000e+00> : vector<16x32xf32>
    %104 = tpu.matmul %101, %103, %cst_31 {dimension_numbers = #tpu.dot_dimension_numbers<[1], [0], [0], [1], [0, 0, 1, 1], [], []>} : vector<16x32xbf16>, vector<32x32xbf16>, vector<16x32xf32> -> vector<16x32xf32>
    %c0_32 = arith.constant 0 : index
    %c0_33 = arith.constant 0 : index
    %c0_34 = arith.constant 0 : index
    %105 = vector.load %arg7[%c0_32, %c0_33, %c0_34] : memref<1x1x32xf32, #tpu.memory_space<vmem>>, vector<1x1x32xf32>
    %106 = vector.shape_cast %105 : vector<1x1x32xf32> to vector<1x32xf32>
    %107 = vector.broadcast %106 : vector<1x32xf32> to vector<16x32xf32>
    %108 = arith.addf %104, %107 : vector<16x32xf32>
    %109 = arith.addf %4, %108 : vector<16x32xf32>
    %c0_35 = arith.constant 0 : index
    %c0_36 = arith.constant 0 : index
    %c0_37 = arith.constant 0 : index
    %110 = vector.load %arg12[%c0_35, %c0_36, %c0_37] : memref<1x1x32xf32, #tpu.memory_space<vmem>>, vector<1x1x32xf32>
    %111 = vector.shape_cast %110 : vector<1x1x32xf32> to vector<1x32xf32>
    %c0_38 = arith.constant 0 : index
    %c0_39 = arith.constant 0 : index
    %c0_40 = arith.constant 0 : index
    %112 = vector.load %arg13[%c0_38, %c0_39, %c0_40] : memref<1x1x32xf32, #tpu.memory_space<vmem>>, vector<1x1x32xf32>
    %113 = vector.shape_cast %112 : vector<1x1x32xf32> to vector<1x32xf32>
    %cst_41 = arith.constant dense<0.000000e+00> : vector<16xf32>
    %114 = vector.multi_reduction <add>, %109, %cst_41 [1] : vector<16x32xf32> to vector<16xf32>
    %115 = vector.shape_cast %114 : vector<16xf32> to vector<16x1xf32>
    %cst_42 = arith.constant 3.200000e+01 : f32
    %116 = vector.broadcast %cst_42 : f32 to vector<16x1xf32>
    %117 = arith.divf %115, %116 : vector<16x1xf32>
    %118 = vector.broadcast %117 : vector<16x1xf32> to vector<16x32xf32>
    %119 = arith.subf %109, %118 : vector<16x32xf32>
    %120 = arith.mulf %119, %119 : vector<16x32xf32>
    %cst_43 = arith.constant dense<0.000000e+00> : vector<16xf32>
    %121 = vector.multi_reduction <add>, %120, %cst_43 [1] : vector<16x32xf32> to vector<16xf32>
    %122 = vector.shape_cast %121 : vector<16xf32> to vector<16x1xf32>
    %cst_44 = arith.constant 3.200000e+01 : f32
    %123 = vector.broadcast %cst_44 : f32 to vector<16x1xf32>
    %124 = arith.divf %122, %123 : vector<16x1xf32>
    %cst_45 = arith.constant 9.99999974E-6 : f32
    %125 = vector.broadcast %cst_45 : f32 to vector<16x1xf32>
    %126 = arith.addf %124, %125 : vector<16x1xf32>
    %127 = math.rsqrt %126 : vector<16x1xf32>
    %128 = vector.broadcast %127 : vector<16x1xf32> to vector<16x32xf32>
    %129 = arith.mulf %119, %128 : vector<16x32xf32>
    %130 = vector.broadcast %111 : vector<1x32xf32> to vector<16x32xf32>
    %131 = arith.mulf %129, %130 : vector<16x32xf32>
    %132 = vector.broadcast %113 : vector<1x32xf32> to vector<16x32xf32>
    %133 = arith.addf %131, %132 : vector<16x32xf32>
    %134 = arith.truncf %133 : vector<16x32xf32> to vector<16x32xbf16>
    %c0_46 = arith.constant 0 : index
    %c0_47 = arith.constant 0 : index
    %c0_48 = arith.constant 0 : index
    %135 = vector.load %arg8[%c0_46, %c0_47, %c0_48] : memref<1x32x2048xbf16, #tpu.memory_space<vmem>>, vector<1x32x2048xbf16>
    %136 = vector.shape_cast %135 : vector<1x32x2048xbf16> to vector<32x2048xbf16>
    %cst_49 = arith.constant dense<0.000000e+00> : vector<16x2048xf32>
    %137 = tpu.matmul %134, %136, %cst_49 {dimension_numbers = #tpu.dot_dimension_numbers<[1], [0], [0], [1], [0, 0, 1, 1], [], []>} : vector<16x32xbf16>, vector<32x2048xbf16>, vector<16x2048xf32> -> vector<16x2048xf32>
    %c0_50 = arith.constant 0 : index
    %c0_51 = arith.constant 0 : index
    %c0_52 = arith.constant 0 : index
    %138 = vector.load %arg9[%c0_50, %c0_51, %c0_52] : memref<1x1x2048xf32, #tpu.memory_space<vmem>>, vector<1x1x2048xf32>
    %139 = vector.shape_cast %138 : vector<1x1x2048xf32> to vector<1x2048xf32>
    %140 = vector.broadcast %139 : vector<1x2048xf32> to vector<16x2048xf32>
    %141 = arith.addf %137, %140 : vector<16x2048xf32>
    %cst_53 = arith.constant 0.000000e+00 : f32
    %142 = vector.broadcast %cst_53 : f32 to vector<16x2048xf32>
    %143 = arith.maximumf %141, %142 : vector<16x2048xf32>
    %144 = arith.truncf %143 : vector<16x2048xf32> to vector<16x2048xbf16>
    %c0_54 = arith.constant 0 : index
    %c0_55 = arith.constant 0 : index
    %c0_56 = arith.constant 0 : index
    %145 = vector.load %arg10[%c0_54, %c0_55, %c0_56] : memref<1x2048x32xbf16, #tpu.memory_space<vmem>>, vector<1x2048x32xbf16>
    %146 = vector.shape_cast %145 : vector<1x2048x32xbf16> to vector<2048x32xbf16>
    %cst_57 = arith.constant dense<0.000000e+00> : vector<16x32xf32>
    %147 = tpu.matmul %144, %146, %cst_57 {dimension_numbers = #tpu.dot_dimension_numbers<[1], [0], [0], [1], [0, 0, 1, 1], [], []>} : vector<16x2048xbf16>, vector<2048x32xbf16>, vector<16x32xf32> -> vector<16x32xf32>
    %c0_58 = arith.constant 0 : index
    %c0_59 = arith.constant 0 : index
    %c0_60 = arith.constant 0 : index
    %148 = vector.load %arg11[%c0_58, %c0_59, %c0_60] : memref<1x1x32xf32, #tpu.memory_space<vmem>>, vector<1x1x32xf32>
    %149 = vector.shape_cast %148 : vector<1x1x32xf32> to vector<1x32xf32>
    %150 = vector.broadcast %149 : vector<1x32xf32> to vector<16x32xf32>
    %151 = arith.addf %147, %150 : vector<16x32xf32>
    %152 = arith.addf %133, %151 : vector<16x32xf32>
    %c0_61 = arith.constant 0 : index
    %c0_62 = arith.constant 0 : index
    %c0_63 = arith.constant 0 : index
    %153 = vector.load %arg14[%c0_61, %c0_62, %c0_63] : memref<1x1x32xf32, #tpu.memory_space<vmem>>, vector<1x1x32xf32>
    %154 = vector.shape_cast %153 : vector<1x1x32xf32> to vector<1x32xf32>
    %c0_64 = arith.constant 0 : index
    %c0_65 = arith.constant 0 : index
    %c0_66 = arith.constant 0 : index
    %155 = vector.load %arg15[%c0_64, %c0_65, %c0_66] : memref<1x1x32xf32, #tpu.memory_space<vmem>>, vector<1x1x32xf32>
    %156 = vector.shape_cast %155 : vector<1x1x32xf32> to vector<1x32xf32>
    %cst_67 = arith.constant dense<0.000000e+00> : vector<16xf32>
    %157 = vector.multi_reduction <add>, %152, %cst_67 [1] : vector<16x32xf32> to vector<16xf32>
    %158 = vector.shape_cast %157 : vector<16xf32> to vector<16x1xf32>
    %cst_68 = arith.constant 3.200000e+01 : f32
    %159 = vector.broadcast %cst_68 : f32 to vector<16x1xf32>
    %160 = arith.divf %158, %159 : vector<16x1xf32>
    %161 = vector.broadcast %160 : vector<16x1xf32> to vector<16x32xf32>
    %162 = arith.subf %152, %161 : vector<16x32xf32>
    %163 = arith.mulf %162, %162 : vector<16x32xf32>
    %cst_69 = arith.constant dense<0.000000e+00> : vector<16xf32>
    %164 = vector.multi_reduction <add>, %163, %cst_69 [1] : vector<16x32xf32> to vector<16xf32>
    %165 = vector.shape_cast %164 : vector<16xf32> to vector<16x1xf32>
    %cst_70 = arith.constant 3.200000e+01 : f32
    %166 = vector.broadcast %cst_70 : f32 to vector<16x1xf32>
    %167 = arith.divf %165, %166 : vector<16x1xf32>
    %cst_71 = arith.constant 9.99999974E-6 : f32
    %168 = vector.broadcast %cst_71 : f32 to vector<16x1xf32>
    %169 = arith.addf %167, %168 : vector<16x1xf32>
    %170 = math.rsqrt %169 : vector<16x1xf32>
    %171 = vector.broadcast %170 : vector<16x1xf32> to vector<16x32xf32>
    %172 = arith.mulf %162, %171 : vector<16x32xf32>
    %173 = vector.broadcast %154 : vector<1x32xf32> to vector<16x32xf32>
    %174 = arith.mulf %172, %173 : vector<16x32xf32>
    %175 = vector.broadcast %156 : vector<1x32xf32> to vector<16x32xf32>
    %176 = arith.addf %174, %175 : vector<16x32xf32>
    %177 = vector.shape_cast %176 : vector<16x32xf32> to vector<2x8x32xf32>
    %c0_72 = arith.constant 0 : index
    %c0_73 = arith.constant 0 : index
    %c0_74 = arith.constant 0 : index
    %178 = vector.load %arg17[%c0_72, %c0_73, %c0_74] : memref<2x8x32xf32, #tpu.memory_space<vmem>>, vector<2x8x32xf32>
    tpu.vector_store %arg17[%c0_72, %c0_73, %c0_74], %177 {strides = array<i32>} : memref<2x8x32xf32, #tpu.memory_space<vmem>>, vector<2x8x32xf32>,
    %c1_i32 = arith.constant 1 : i32
    %179 = arith.cmpi eq, %arg1, %c1_i32 : i32
    %180 = arith.extui %179 : i1 to i32
    %c0_i32_75 = arith.constant 0 : i32
    %181 = arith.cmpi ne, %180, %c0_i32_75 : i32
    scf.if %181 {
      %c0_76 = arith.constant 0 : index
      %c0_77 = arith.constant 0 : index
      %c0_78 = arith.constant 0 : index
      %182 = vector.load %arg16[%c0_76, %c0_77, %c0_78] : memref<2x8x32xf32, #tpu.memory_space<vmem>>, vector<2x8x32xf32>
      tpu.vector_store %arg16[%c0_76, %c0_77, %c0_78], %177 {strides = array<i32>} : memref<2x8x32xf32, #tpu.memory_space<vmem>>, vector<2x8x32xf32>,
    } else {
    }
    return
  }
  func.func @transform_0(%arg0: i32, %arg1: i32) -> (i32, i32, i32) {
    %c0_i32 = arith.constant 0 : i32
    %c0_i32_0 = arith.constant 0 : i32
    %c0_i32_1 = arith.constant 0 : i32
    return %arg0, %c0_i32, %c0_i32_0 : i32, i32, i32
  }
  func.func @transform_1(%arg0: i32, %arg1: i32) -> (i32, i32, i32) {
    %c0_i32 = arith.constant 0 : i32
    %c0_i32_0 = arith.constant 0 : i32
    %c0_i32_1 = arith.constant 0 : i32
    return %arg0, %c0_i32, %c0_i32_0 : i32, i32, i32
  }
  func.func @transform_2(%arg0: i32, %arg1: i32) -> (i32, i32, i32) {
    %c0_i32 = arith.constant 0 : i32
    %c0_i32_0 = arith.constant 0 : i32
    %c0_i32_1 = arith.constant 0 : i32
    return %arg1, %c0_i32, %c0_i32_0 : i32, i32, i32
  }
  func.func @transform_3(%arg0: i32, %arg1: i32) -> (i32, i32, i32) {
    %c0_i32 = arith.constant 0 : i32
    %c0_i32_0 = arith.constant 0 : i32
    %c0_i32_1 = arith.constant 0 : i32
    return %arg1, %c0_i32, %c0_i32_0 : i32, i32, i32
  }
  func.func @transform_4(%arg0: i32, %arg1: i32) -> (i32, i32, i32) {
    %c0_i32 = arith.constant 0 : i32
    %c0_i32_0 = arith.constant 0 : i32
    %c0_i32_1 = arith.constant 0 : i32
    return %arg1, %c0_i32, %c0_i32_0 : i32, i32, i32
  }
  func.func @transform_5(%arg0: i32, %arg1: i32) -> (i32, i32, i32) {
    %c0_i32 = arith.constant 0 : i32
    %c0_i32_0 = arith.constant 0 : i32
    %c0_i32_1 = arith.constant 0 : i32
    return %arg1, %c0_i32, %c0_i32_0 : i32, i32, i32
  }
  func.func @transform_6(%arg0: i32, %arg1: i32) -> (i32, i32, i32) {
    %c0_i32 = arith.constant 0 : i32
    %c0_i32_0 = arith.constant 0 : i32
    %c0_i32_1 = arith.constant 0 : i32
    return %arg1, %c0_i32, %c0_i32_0 : i32, i32, i32
  }
  func.func @transform_7(%arg0: i32, %arg1: i32) -> (i32, i32, i32) {
    %c0_i32 = arith.constant 0 : i32
    %c0_i32_0 = arith.constant 0 : i32
    %c0_i32_1 = arith.constant 0 : i32
    return %arg1, %c0_i32, %c0_i32_0 : i32, i32, i32
  }
  func.func @transform_8(%arg0: i32, %arg1: i32) -> (i32, i32, i32) {
    %c0_i32 = arith.constant 0 : i32
    %c0_i32_0 = arith.constant 0 : i32
    %c0_i32_1 = arith.constant 0 : i32
    return %arg1, %c0_i32, %c0_i32_0 : i32, i32, i32
  }
  func.func @transform_9(%arg0: i32, %arg1: i32) -> (i32, i32, i32) {
    %c0_i32 = arith.constant 0 : i32
    %c0_i32_0 = arith.constant 0 : i32
    %c0_i32_1 = arith.constant 0 : i32
    return %arg1, %c0_i32, %c0_i32_0 : i32, i32, i32
  }
  func.func @transform_10(%arg0: i32, %arg1: i32) -> (i32, i32, i32) {
    %c0_i32 = arith.constant 0 : i32
    %c0_i32_0 = arith.constant 0 : i32
    %c0_i32_1 = arith.constant 0 : i32
    return %arg1, %c0_i32, %c0_i32_0 : i32, i32, i32
  }
  func.func @transform_11(%arg0: i32, %arg1: i32) -> (i32, i32, i32) {
    %c0_i32 = arith.constant 0 : i32
    %c0_i32_0 = arith.constant 0 : i32
    %c0_i32_1 = arith.constant 0 : i32
    return %arg1, %c0_i32, %c0_i32_0 : i32, i32, i32
  }
  func.func @transform_12(%arg0: i32, %arg1: i32) -> (i32, i32, i32) {
    %c0_i32 = arith.constant 0 : i32
    %c0_i32_0 = arith.constant 0 : i32
    %c0_i32_1 = arith.constant 0 : i32
    return %arg1, %c0_i32, %c0_i32_0 : i32, i32, i32
  }
  func.func @transform_13(%arg0: i32, %arg1: i32) -> (i32, i32, i32) {
    %c0_i32 = arith.constant 0 : i32
    %c0_i32_0 = arith.constant 0 : i32
    %c0_i32_1 = arith.constant 0 : i32
    return %arg1, %c0_i32, %c0_i32_0 : i32, i32, i32
  }
  func.func @transform_14(%arg0: i32, %arg1: i32) -> (i32, i32, i32) {
    %c0_i32 = arith.constant 0 : i32
    %c0_i32_0 = arith.constant 0 : i32
    %c0_i32_1 = arith.constant 0 : i32
    return %arg0, %c0_i32, %c0_i32_0 : i32, i32, i32
  }
}

</mosaic_0001>

<llo_original>
// kernel: tpu_custom_call.1
$region0: #{tpu_custom_call.1}
  #allocation0 [shape = 'u32[]', space=smem, size = 0x4, offset = 0x4, fixed_abs, tag = 'smem constant byte address 0x4 - core index']
  #allocation1 [shape = 'u32[72,128]{1,0:T(1,128)}', space=vmem, size = 0x9000, scoped, tag = 'internal scratch']
  #allocation2 [shape = 'f32[2,8,32]{2,1,0:T(8,128)}', space=vmem, size = 0x2000, scoped, tag = 'scratch operand']
  %s0 = inlined_call_operand.vmem [shape: f32[2,8,32], index: 0, kind: input, shape index: {}]
  %s1 = inlined_call_operand.vmem [shape: f32[2,1,8], index: 1, kind: input, shape index: {}]
  %s2 = inlined_call_operand.vmem [shape: bf16[2,32,96], index: 2, kind: input, shape index: {}]
  %s3 = inlined_call_operand.vmem [shape: f32[2,1,96], index: 3, kind: input, shape index: {}]
  %s4 = inlined_call_operand.vmem [shape: bf16[2,32,32], index: 4, kind: input, shape index: {}]
  %s5 = inlined_call_operand.vmem [shape: f32[2,1,32], index: 5, kind: input, shape index: {}]
  %s6 = inlined_call_operand.vmem [shape: bf16[2,32,2048], index: 6, kind: input, shape index: {}]
  %s7 = inlined_call_operand.vmem [shape: f32[2,1,2048], index: 7, kind: input, shape index: {}]
  %s8 = inlined_call_operand.vmem [shape: bf16[2,2048,32], index: 8, kind: input, shape index: {}]
  %s9 = inlined_call_operand.vmem [shape: f32[2,1,32], index: 9, kind: input, shape index: {}]
  %s10 = inlined_call_operand.vmem [shape: f32[2,1,32], index: 10, kind: input, shape index: {}]
  %s11 = inlined_call_operand.vmem [shape: f32[2,1,32], index: 11, kind: input, shape index: {}]
  %s12 = inlined_call_operand.vmem [shape: f32[2,1,32], index: 12, kind: input, shape index: {}]
  %s13 = inlined_call_operand.vmem [shape: f32[2,1,32], index: 13, kind: input, shape index: {}]
  %s14 = inlined_call_operand.hbm [shape: f32[2,8,32], index: 14, kind: output, shape index: {}]
  %s15 = sld [smem:[#allocation0]]
  $region97: #{tpu_custom_call.1} parent=0
    _
  %s17 = ssub.s32 1, %s15
  %s18 = scalar_select 0, %s17, %s15
  $region1: #{tpu_custom_call.1} parent=0
    #allocation3 [shape = 'u8[8192]{0}', space=vmem, size = 0x2000, scoped, tag = 'output window, operand 0, single buffered']
    #allocation4 [shape = 's32[2]{0}', space=sflag, size = 0x8, scoped, tag = 'scoped memory for tpu_custom_call.1']
    %19 = vsyncpa [#allocation4], 0
    loop: start=0, step=1, limit=4
    $region2: #{tpu_custom_call.1} parent=1 // loop_pre_header
      _
    $region3: #{tpu_custom_call.1} parent=1 // loop_header
      %s21 = sphi 0, %s25
      %p22 = scmp.ge.s32.totalorder %s21, 4
      %s28 = sphi 0, %s40
      %s29 = sphi 0, %s36
      %s30 = sphi 0, %s28
      %s31 = sphi 0, %s29
      %s32 = sphi 0, %s30
      %s33 = sphi 0, %s31
      %s43 = sphi 0, %s45
      %s46 = sphi 0, %s43
      %s47 = sphi 0, %s46
      %s63 = sphi 0, %s47
      %s69 = sphi 0, %s71
      %s72 = sphi 0, %s69
      %s73 = sphi 0, %s72
      %s89 = sphi 0, %s73
      %s95 = sphi 0, %s97
      %s98 = sphi 0, %s95
      %s99 = sphi 0, %s98
      %s115 = sphi 0, %s99
      %s121 = sphi 0, %s123
      %s124 = sphi 0, %s121
      %s125 = sphi 0, %s124
      %s141 = sphi 0, %s125
      %s147 = sphi 0, %s149
      %s150 = sphi 0, %s147
      %s151 = sphi 0, %s150
      %s167 = sphi 0, %s151
      %s173 = sphi 0, %s175
      %s176 = sphi 0, %s173
      %s177 = sphi 0, %s176
      %s193 = sphi 0, %s177
      %s199 = sphi 0, %s201
      %s202 = sphi 0, %s199
      %s203 = sphi 0, %s202
      %s219 = sphi 0, %s203
      %s225 = sphi 0, %s227
      %s228 = sphi 0, %s225
      %s229 = sphi 0, %s228
      %s245 = sphi 0, %s229
      %s251 = sphi 0, %s253
      %s254 = sphi 0, %s251
      %s255 = sphi 0, %s254
      %s271 = sphi 0, %s255
      %s277 = sphi 0, %s279
      %s280 = sphi 0, %s277
      %s281 = sphi 0, %s280
      %s297 = sphi 0, %s281
      %s303 = sphi 0, %s305
      %s306 = sphi 0, %s303
      %s307 = sphi 0, %s306
      %s323 = sphi 0, %s307
      %s329 = sphi 0, %s331
      %s332 = sphi 0, %s329
      %s333 = sphi 0, %s332
      %s349 = sphi 0, %s333
      %s355 = sphi 0, %s357
      %s358 = sphi 0, %s355
      %s359 = sphi 0, %s358
      %s375 = sphi 0, %s359
      %s381 = sphi 0, %s383
      %s384 = sphi 0, %s381
      %s385 = sphi 0, %s384
      %s401 = sphi 0, %s385
      %s407 = sphi 0, %s409
      %s410 = sphi 0, %s407
      %s411 = sphi 0, %s410
      %s427 = sphi 0, %s411
    $region4: #{tpu_custom_call.1} parent=1 // loop_header_branch
      %24 = sbr.rel (%p22) target = $region8
    $region5: #{tpu_custom_call.1} parent=1 // loop_body
      %s26 = ssub.s32 %s21, 1
      %s27 = ssub.s32 %s21, 2
      %s34 = sadd.s32 1, %s29
      %p35 = scmp.ge.s32.totalorder %s34, 2
      %s36 = scalar_select %p35, 0, %s34
      %s37 = sadd.s32 1, %s28
      %s38 = scalar_select %p35, %s37, %s28
      %p39 = scmp.ge.s32.totalorder %s38, 1
      %s40 = scalar_select %p39, 0, %s38
      %s41 = ssub.s32 %s28, %s40
      %p42 = scmp.eq.s32.totalorder %s41, 0
      %s44 = sadd.s32 %s43, 1
      %s45 = scalar_select %p42, %s43, %s44
      %p48 = pneg %p42
      %p49 = scmp.eq.s32.totalorder %s21, 1
      %p50 = por %p48, %p49
      %p51 = scmp.ne.s32.totalorder %s43, %s46
      %p52 = scmp.eq.s32.totalorder %s21, 0
      %p53 = por %p51, %p52
      %p54 = scmp.ne.s32.totalorder %s43, %s46
      %p55 = scmp.eq.s32.totalorder %s26, 1
      %p56 = por %p54, %p55
      %p57 = scmp.ne.s32.totalorder %s46, %s47
      %p58 = scmp.eq.s32.totalorder %s26, 0
      %p59 = por %p57, %p58
      %p60 = scmp.ne.s32.totalorder %s46, %s47
      %p61 = scmp.eq.s32.totalorder %s27, 1
      %p62 = por %p60, %p61
      %p64 = scmp.ne.s32.totalorder %s47, %s63
      %p65 = scmp.eq.s32.totalorder %s27, 0
      %p66 = por %p64, %p65
      %s67 = ssub.s32 %s28, %s40
      %p68 = scmp.eq.s32.totalorder %s67, 0
      %s70 = sadd.s32 %s69, 1
      %s71 = scalar_select %p68, %s69, %s70
      %p74 = pneg %p68
      %p75 = scmp.eq.s32.totalorder %s21, 1
      %p76 = por %p74, %p75
      %p77 = scmp.ne.s32.totalorder %s69, %s72
      %p78 = scmp.eq.s32.totalorder %s21, 0
      %p79 = por %p77, %p78
      %p80 = scmp.ne.s32.totalorder %s69, %s72
      %p81 = scmp.eq.s32.totalorder %s26, 1
      %p82 = por %p80, %p81
      %p83 = scmp.ne.s32.totalorder %s72, %s73
      %p84 = scmp.eq.s32.totalorder %s26, 0
      %p85 = por %p83, %p84
      %p86 = scmp.ne.s32.totalorder %s72, %s73
      %p87 = scmp.eq.s32.totalorder %s27, 1
      %p88 = por %p86, %p87
      %p90 = scmp.ne.s32.totalorder %s73, %s89
      %p91 = scmp.eq.s32.totalorder %s27, 0
      %p92 = por %p90, %p91
      %s93 = ssub.s32 %s29, %s36
      %p94 = scmp.eq.s32.totalorder %s93, 0
      %s96 = sadd.s32 %s95, 1
      %s97 = scalar_select %p94, %s95, %s96
      %p100 = pneg %p94
      %p101 = scmp.eq.s32.totalorder %s21, 1
      %p102 = por %p100, %p101
      %p103 = scmp.ne.s32.totalorder %s95, %s98
      %p104 = scmp.eq.s32.totalorder %s21, 0
      %p105 = por %p103, %p104
      %p106 = scmp.ne.s32.totalorder %s95, %s98
      %p107 = scmp.eq.s32.totalorder %s26, 1
      %p108 = por %p106, %p107
      %p109 = scmp.ne.s32.totalorder %s98, %s99
      %p110 = scmp.eq.s32.totalorder %s26, 0
      %p111 = por %p109, %p110
      %p112 = scmp.ne.s32.totalorder %s98, %s99
      %p113 = scmp.eq.s32.totalorder %s27, 1
      %p114 = por %p112, %p113
      %p116 = scmp.ne.s32.totalorder %s99, %s115
      %p117 = scmp.eq.s32.totalorder %s27, 0
      %p118 = por %p116, %p117
      %s119 = ssub.s32 %s29, %s36
      %p120 = scmp.eq.s32.totalorder %s119, 0
      %s122 = sadd.s32 %s121, 1
      %s123 = scalar_select %p120, %s121, %s122
      %p126 = pneg %p120
      %p127 = scmp.eq.s32.totalorder %s21, 1
      %p128 = por %p126, %p127
      %p129 = scmp.ne.s32.totalorder %s121, %s124
      %p130 = scmp.eq.s32.totalorder %s21, 0
      %p131 = por %p129, %p130
      %p132 = scmp.ne.s32.totalorder %s121, %s124
      %p133 = scmp.eq.s32.totalorder %s26, 1
      %p134 = por %p132, %p133
      %p135 = scmp.ne.s32.totalorder %s124, %s125
      %p136 = scmp.eq.s32.totalorder %s26, 0
      %p137 = por %p135, %p136
      %p138 = scmp.ne.s32.totalorder %s124, %s125
      %p139 = scmp.eq.s32.totalorder %s27, 1
      %p140 = por %p138, %p139
      %p142 = scmp.ne.s32.totalorder %s125, %s141
      %p143 = scmp.eq.s32.totalorder %s27, 0
      %p144 = por %p142, %p143
      %s145 = ssub.s32 %s29, %s36
      %p146 = scmp.eq.s32.totalorder %s145, 0
      %s148 = sadd.s32 %s147, 1
      %s149 = scalar_select %p146, %s147, %s148
      %p152 = pneg %p146
      %p153 = scmp.eq.s32.totalorder %s21, 1
      %p154 = por %p152, %p153
      %p155 = scmp.ne.s32.totalorder %s147, %s150
      %p156 = scmp.eq.s32.totalorder %s21, 0
      %p157 = por %p155, %p156
      %p158 = scmp.ne.s32.totalorder %s147, %s150
      %p159 = scmp.eq.s32.totalorder %s26, 1
      %p160 = por %p158, %p159
      %p161 = scmp.ne.s32.totalorder %s150, %s151
      %p162 = scmp.eq.s32.totalorder %s26, 0
      %p163 = por %p161, %p162
      %p164 = scmp.ne.s32.totalorder %s150, %s151
      %p165 = scmp.eq.s32.totalorder %s27, 1
      %p166 = por %p164, %p165
      %p168 = scmp.ne.s32.totalorder %s151, %s167
      %p169 = scmp.eq.s32.totalorder %s27, 0
      %p170 = por %p168, %p169
      %s171 = ssub.s32 %s29, %s36
      %p172 = scmp.eq.s32.totalorder %s171, 0
      %s174 = sadd.s32 %s173, 1
      %s175 = scalar_select %p172, %s173, %s174
      %p178 = pneg %p172
      %p179 = scmp.eq.s32.totalorder %s21, 1
      %p180 = por %p178, %p179
      %p181 = scmp.ne.s32.totalorder %s173, %s176
      %p182 = scmp.eq.s32.totalorder %s21, 0
      %p183 = por %p181, %p182
      %p184 = scmp.ne.s32.totalorder %s173, %s176
      %p185 = scmp.eq.s32.totalorder %s26, 1
      %p186 = por %p184, %p185
      %p187 = scmp.ne.s32.totalorder %s176, %s177
      %p188 = scmp.eq.s32.totalorder %s26, 0
      %p189 = por %p187, %p188
      %p190 = scmp.ne.s32.totalorder %s176, %s177
      %p191 = scmp.eq.s32.totalorder %s27, 1
      %p192 = por %p190, %p191
      %p194 = scmp.ne.s32.totalorder %s177, %s193
      %p195 = scmp.eq.s32.totalorder %s27, 0
      %p196 = por %p194, %p195
      %s197 = ssub.s32 %s29, %s36
      %p198 = scmp.eq.s32.totalorder %s197, 0
      %s200 = sadd.s32 %s199, 1
      %s201 = scalar_select %p198, %s199, %s200
      %p204 = pneg %p198
      %p205 = scmp.eq.s32.totalorder %s21, 1
      %p206 = por %p204, %p205
      %p207 = scmp.ne.s32.totalorder %s199, %s202
      %p208 = scmp.eq.s32.totalorder %s21, 0
      %p209 = por %p207, %p208
      %p210 = scmp.ne.s32.totalorder %s199, %s202
      %p211 = scmp.eq.s32.totalorder %s26, 1
      %p212 = por %p210, %p211
      %p213 = scmp.ne.s32.totalorder %s202, %s203
      %p214 = scmp.eq.s32.totalorder %s26, 0
      %p215 = por %p213, %p214
      %p216 = scmp.ne.s32.totalorder %s202, %s203
      %p217 = scmp.eq.s32.totalorder %s27, 1
      %p218 = por %p216, %p217
      %p220 = scmp.ne.s32.totalorder %s203, %s219
      %p221 = scmp.eq.s32.totalorder %s27, 0
      %p222 = por %p220, %p221
      %s223 = ssub.s32 %s29, %s36
      %p224 = scmp.eq.s32.totalorder %s223, 0
      %s226 = sadd.s32 %s225, 1
      %s227 = scalar_select %p224, %s225, %s226
      %p230 = pneg %p224
      %p231 = scmp.eq.s32.totalorder %s21, 1
      %p232 = por %p230, %p231
      %p233 = scmp.ne.s32.totalorder %s225, %s228
      %p234 = scmp.eq.s32.totalorder %s21, 0
      %p235 = por %p233, %p234
      %p236 = scmp.ne.s32.totalorder %s225, %s228
      %p237 = scmp.eq.s32.totalorder %s26, 1
      %p238 = por %p236, %p237
      %p239 = scmp.ne.s32.totalorder %s228, %s229
      %p240 = scmp.eq.s32.totalorder %s26, 0
      %p241 = por %p239, %p240
      %p242 = scmp.ne.s32.totalorder %s228, %s229
      %p243 = scmp.eq.s32.totalorder %s27, 1
      %p244 = por %p242, %p243
      %p246 = scmp.ne.s32.totalorder %s229, %s245
      %p247 = scmp.eq.s32.totalorder %s27, 0
      %p248 = por %p246, %p247
      %s249 = ssub.s32 %s29, %s36
      %p250 = scmp.eq.s32.totalorder %s249, 0
      %s252 = sadd.s32 %s251, 1
      %s253 = scalar_select %p250, %s251, %s252
      %p256 = pneg %p250
      %p257 = scmp.eq.s32.totalorder %s21, 1
      %p258 = por %p256, %p257
      %p259 = scmp.ne.s32.totalorder %s251, %s254
      %p260 = scmp.eq.s32.totalorder %s21, 0
      %p261 = por %p259, %p260
      %p262 = scmp.ne.s32.totalorder %s251, %s254
      %p263 = scmp.eq.s32.totalorder %s26, 1
      %p264 = por %p262, %p263
      %p265 = scmp.ne.s32.totalorder %s254, %s255
      %p266 = scmp.eq.s32.totalorder %s26, 0
      %p267 = por %p265, %p266
      %p268 = scmp.ne.s32.totalorder %s254, %s255
      %p269 = scmp.eq.s32.totalorder %s27, 1
      %p270 = por %p268, %p269
      %p272 = scmp.ne.s32.totalorder %s255, %s271
      %p273 = scmp.eq.s32.totalorder %s27, 0
      %p274 = por %p272, %p273
      %s275 = ssub.s32 %s29, %s36
      %p276 = scmp.eq.s32.totalorder %s275, 0
      %s278 = sadd.s32 %s277, 1
      %s279 = scalar_select %p276, %s277, %s278
      %p282 = pneg %p276
      %p283 = scmp.eq.s32.totalorder %s21, 1
      %p284 = por %p282, %p283
      %p285 = scmp.ne.s32.totalorder %s277, %s280
      %p286 = scmp.eq.s32.totalorder %s21, 0
      %p287 = por %p285, %p286
      %p288 = scmp.ne.s32.totalorder %s277, %s280
      %p289 = scmp.eq.s32.totalorder %s26, 1
      %p290 = por %p288, %p289
      %p291 = scmp.ne.s32.totalorder %s280, %s281
      %p292 = scmp.eq.s32.totalorder %s26, 0
      %p293 = por %p291, %p292
      %p294 = scmp.ne.s32.totalorder %s280, %s281
      %p295 = scmp.eq.s32.totalorder %s27, 1
      %p296 = por %p294, %p295
      %p298 = scmp.ne.s32.totalorder %s281, %s297
      %p299 = scmp.eq.s32.totalorder %s27, 0
      %p300 = por %p298, %p299
      %s301 = ssub.s32 %s29, %s36
      %p302 = scmp.eq.s32.totalorder %s301, 0
      %s304 = sadd.s32 %s303, 1
      %s305 = scalar_select %p302, %s303, %s304
      %p308 = pneg %p302
      %p309 = scmp.eq.s32.totalorder %s21, 1
      %p310 = por %p308, %p309
      %p311 = scmp.ne.s32.totalorder %s303, %s306
      %p312 = scmp.eq.s32.totalorder %s21, 0
      %p313 = por %p311, %p312
      %p314 = scmp.ne.s32.totalorder %s303, %s306
      %p315 = scmp.eq.s32.totalorder %s26, 1
      %p316 = por %p314, %p315
      %p317 = scmp.ne.s32.totalorder %s306, %s307
      %p318 = scmp.eq.s32.totalorder %s26, 0
      %p319 = por %p317, %p318
      %p320 = scmp.ne.s32.totalorder %s306, %s307
      %p321 = scmp.eq.s32.totalorder %s27, 1
      %p322 = por %p320, %p321
      %p324 = scmp.ne.s32.totalorder %s307, %s323
      %p325 = scmp.eq.s32.totalorder %s27, 0
      %p326 = por %p324, %p325
      %s327 = ssub.s32 %s29, %s36
      %p328 = scmp.eq.s32.totalorder %s327, 0
      %s330 = sadd.s32 %s329, 1
      %s331 = scalar_select %p328, %s329, %s330
      %p334 = pneg %p328
      %p335 = scmp.eq.s32.totalorder %s21, 1
      %p336 = por %p334, %p335
      %p337 = scmp.ne.s32.totalorder %s329, %s332
      %p338 = scmp.eq.s32.totalorder %s21, 0
      %p339 = por %p337, %p338
      %p340 = scmp.ne.s32.totalorder %s329, %s332
      %p341 = scmp.eq.s32.totalorder %s26, 1
      %p342 = por %p340, %p341
      %p343 = scmp.ne.s32.totalorder %s332, %s333
      %p344 = scmp.eq.s32.totalorder %s26, 0
      %p345 = por %p343, %p344
      %p346 = scmp.ne.s32.totalorder %s332, %s333
      %p347 = scmp.eq.s32.totalorder %s27, 1
      %p348 = por %p346, %p347
      %p350 = scmp.ne.s32.totalorder %s333, %s349
      %p351 = scmp.eq.s32.totalorder %s27, 0
      %p352 = por %p350, %p351
      %s353 = ssub.s32 %s29, %s36
      %p354 = scmp.eq.s32.totalorder %s353, 0
      %s356 = sadd.s32 %s355, 1
      %s357 = scalar_select %p354, %s355, %s356
      %p360 = pneg %p354
      %p361 = scmp.eq.s32.totalorder %s21, 1
      %p362 = por %p360, %p361
      %p363 = scmp.ne.s32.totalorder %s355, %s358
      %p364 = scmp.eq.s32.totalorder %s21, 0
      %p365 = por %p363, %p364
      %p366 = scmp.ne.s32.totalorder %s355, %s358
      %p367 = scmp.eq.s32.totalorder %s26, 1
      %p368 = por %p366, %p367
      %p369 = scmp.ne.s32.totalorder %s358, %s359
      %p370 = scmp.eq.s32.totalorder %s26, 0
      %p371 = por %p369, %p370
      %p372 = scmp.ne.s32.totalorder %s358, %s359
      %p373 = scmp.eq.s32.totalorder %s27, 1
      %p374 = por %p372, %p373
      %p376 = scmp.ne.s32.totalorder %s359, %s375
      %p377 = scmp.eq.s32.totalorder %s27, 0
      %p378 = por %p376, %p377
      %s379 = ssub.s32 %s29, %s36
      %p380 = scmp.eq.s32.totalorder %s379, 0
      %s382 = sadd.s32 %s381, 1
      %s383 = scalar_select %p380, %s381, %s382
      %p386 = pneg %p380
      %p387 = scmp.eq.s32.totalorder %s21, 1
      %p388 = por %p386, %p387
      %p389 = scmp.ne.s32.totalorder %s381, %s384
      %p390 = scmp.eq.s32.totalorder %s21, 0
      %p391 = por %p389, %p390
      %p392 = scmp.ne.s32.totalorder %s381, %s384
      %p393 = scmp.eq.s32.totalorder %s26, 1
      %p394 = por %p392, %p393
      %p395 = scmp.ne.s32.totalorder %s384, %s385
      %p396 = scmp.eq.s32.totalorder %s26, 0
      %p397 = por %p395, %p396
      %p398 = scmp.ne.s32.totalorder %s384, %s385
      %p399 = scmp.eq.s32.totalorder %s27, 1
      %p400 = por %p398, %p399
      %p402 = scmp.ne.s32.totalorder %s385, %s401
      %p403 = scmp.eq.s32.totalorder %s27, 0
      %p404 = por %p402, %p403
      %s405 = ssub.s32 %s28, %s40
      %p406 = scmp.eq.s32.totalorder %s405, 0
      %s408 = sadd.s32 %s407, 1
      %s409 = scalar_select %p406, %s407, %s408
      %p412 = pneg %p406
      %p413 = scmp.eq.s32.totalorder %s21, 1
      %p414 = por %p412, %p413
      %p415 = scmp.ne.s32.totalorder %s407, %s410
      %p416 = scmp.eq.s32.totalorder %s21, 0
      %p417 = por %p415, %p416
      %p418 = scmp.ne.s32.totalorder %s407, %s410
      %p419 = scmp.eq.s32.totalorder %s26, 1
      %p420 = por %p418, %p419
      %p421 = scmp.ne.s32.totalorder %s410, %s411
      %p422 = scmp.eq.s32.totalorder %s26, 0
      %p423 = por %p421, %p422
      %p424 = scmp.ne.s32.totalorder %s410, %s411
      %p425 = scmp.eq.s32.totalorder %s27, 1
      %p426 = por %p424, %p425
      %p428 = scmp.ne.s32.totalorder %s411, %s427
      %p429 = scmp.eq.s32.totalorder %s27, 0
      %p430 = por %p428, %p429
      %p431 = scmp.le.s32.totalorder 1, %s21
      %p432 = scmp.lt.s32.totalorder %s21, 3
      %p433 = pnand %p431, %p432
      %p434 = pneg %p433
      // Predicated region
      $region9: #{tpu_custom_call.1} parent=5 // pred_check
        _
      $region10: #{tpu_custom_call.1} parent=5 // pred_check_branch
        %436 = sbr.rel (%p433) target = $region12
      $region11: #{tpu_custom_call.1} parent=5 // pred_region
        %s437 = ssub.s32 %s21, 1
        // Predicated region
        $region13: #{tpu_custom_call.1} parent=11 // pred_check
          %p438 = pneg %p59
        $region14: #{tpu_custom_call.1} parent=11 // pred_check_branch
          %440 = sbr.rel (%p438) target = $region16
        $region15: #{tpu_custom_call.1} parent=11 // pred_region
          %s441 = smul.u32 2, %s30
          %p442 = scmp.lt.s32.totalorder %s441, 1
          %s443 = scalar_select %p442, %s441, 1
          %s444 = smul.addr %s443, 8
          %s445 = scalar_lea.vmem %s0, %s444
          %s446 = smul.u32 2, %s30
        $region16: #{tpu_custom_call.1} parent=11 // pred_fallthru
          _
        // Predicated region
        $region17: #{tpu_custom_call.1} parent=11 // pred_check
          %p447 = pneg %p85
        $region18: #{tpu_custom_call.1} parent=11 // pred_check_branch
          %449 = sbr.rel (%p447) target = $region20
        $region19: #{tpu_custom_call.1} parent=11 // pred_region
          %s450 = smul.u32 2, %s30
          %p451 = scmp.lt.s32.totalorder %s450, 1
          %s452 = scalar_select %p451, %s450, 1
          %s453 = scalar_lea.vmem %s1, %s452
          %s454 = smul.u32 2, %s30
        $region20: #{tpu_custom_call.1} parent=11 // pred_fallthru
          _
      $region12: #{tpu_custom_call.1} parent=5 // pred_fallthru
        _
      %p455 = scmp.lt.s32.totalorder %s21, 2
      // Predicated region
      $region21: #{tpu_custom_call.1} parent=5 // pred_check
        %p456 = pneg %p455
      $region22: #{tpu_custom_call.1} parent=5 // pred_check_branch
        %458 = sbr.rel (%p456) target = $region24
      $region23: #{tpu_custom_call.1} parent=5 // pred_region
        // Predicated region
        $region25: #{tpu_custom_call.1} parent=23 // pred_check
          %p459 = pneg %p105
        $region26: #{tpu_custom_call.1} parent=23 // pred_check_branch
          %461 = sbr.rel (%p459) target = $region28
        $region27: #{tpu_custom_call.1} parent=23 // pred_region
          %p462 = scmp.lt.s32.totalorder %s29, 1
          %s463 = scalar_select %p462, %s29, 1
          %s464 = smul.addr %s463, 4
          %s465 = smul.addr %s464, 4
          %s466 = scalar_lea.vmem %s2, %s465
        $region28: #{tpu_custom_call.1} parent=23 // pred_fallthru
          _
        // Predicated region
        $region29: #{tpu_custom_call.1} parent=23 // pred_check
          %p467 = pneg %p131
        $region30: #{tpu_custom_call.1} parent=23 // pred_check_branch
          %469 = sbr.rel (%p467) target = $region32
        $region31: #{tpu_custom_call.1} parent=23 // pred_region
          %p470 = scmp.lt.s32.totalorder %s29, 1
          %s471 = scalar_select %p470, %s29, 1
          %s472 = scalar_lea.vmem %s3, %s471
        $region32: #{tpu_custom_call.1} parent=23 // pred_fallthru
          _
        // Predicated region
        $region33: #{tpu_custom_call.1} parent=23 // pred_check
          %p473 = pneg %p157
        $region34: #{tpu_custom_call.1} parent=23 // pred_check_branch
          %475 = sbr.rel (%p473) target = $region36
        $region35: #{tpu_custom_call.1} parent=23 // pred_region
          %p476 = scmp.lt.s32.totalorder %s29, 1
          %s477 = scalar_select %p476, %s29, 1
          %s478 = smul.addr %s477, 4
          %s479 = smul.addr %s478, 4
          %s480 = scalar_lea.vmem %s4, %s479
        $region36: #{tpu_custom_call.1} parent=23 // pred_fallthru
          _
        // Predicated region
        $region37: #{tpu_custom_call.1} parent=23 // pred_check
          %p481 = pneg %p183
        $region38: #{tpu_custom_call.1} parent=23 // pred_check_branch
          %483 = sbr.rel (%p481) target = $region40
        $region39: #{tpu_custom_call.1} parent=23 // pred_region
          %p484 = scmp.lt.s32.totalorder %s29, 1
          %s485 = scalar_select %p484, %s29, 1
          %s486 = scalar_lea.vmem %s5, %s485
        $region40: #{tpu_custom_call.1} parent=23 // pred_fallthru
          _
        // Predicated region
        $region41: #{tpu_custom_call.1} parent=23 // pred_check
          %p487 = pneg %p209
        $region42: #{tpu_custom_call.1} parent=23 // pred_check_branch
          %489 = sbr.rel (%p487) target = $region44
        $region43: #{tpu_custom_call.1} parent=23 // pred_region
          %p490 = scmp.lt.s32.totalorder %s29, 1
          %s491 = scalar_select %p490, %s29, 1
          %s492 = smul.addr %s491, 64
          %s493 = smul.addr %s492, 4
          %s494 = scalar_lea.vmem %s6, %s493
        $region44: #{tpu_custom_call.1} parent=23 // pred_fallthru
          _
        // Predicated region
        $region45: #{tpu_custom_call.1} parent=23 // pred_check
          %p495 = pneg %p235
        $region46: #{tpu_custom_call.1} parent=23 // pred_check_branch
          %497 = sbr.rel (%p495) target = $region48
        $region47: #{tpu_custom_call.1} parent=23 // pred_region
          %p498 = scmp.lt.s32.totalorder %s29, 1
          %s499 = scalar_select %p498, %s29, 1
          %s500 = smul.addr %s499, 16
          %s501 = scalar_lea.vmem %s7, %s500
        $region48: #{tpu_custom_call.1} parent=23 // pred_fallthru
          _
        // Predicated region
        $region49: #{tpu_custom_call.1} parent=23 // pred_check
          %p502 = pneg %p261
        $region50: #{tpu_custom_call.1} parent=23 // pred_check_branch
          %504 = sbr.rel (%p502) target = $region52
        $region51: #{tpu_custom_call.1} parent=23 // pred_region
          %p505 = scmp.lt.s32.totalorder %s29, 1
          %s506 = scalar_select %p505, %s29, 1
          %s507 = smul.addr %s506, 256
          %s508 = smul.addr %s507, 4
          %s509 = scalar_lea.vmem %s8, %s508
        $region52: #{tpu_custom_call.1} parent=23 // pred_fallthru
          _
        // Predicated region
        $region53: #{tpu_custom_call.1} parent=23 // pred_check
          %p510 = pneg %p287
        $region54: #{tpu_custom_call.1} parent=23 // pred_check_branch
          %512 = sbr.rel (%p510) target = $region56
        $region55: #{tpu_custom_call.1} parent=23 // pred_region
          %p513 = scmp.lt.s32.totalorder %s29, 1
          %s514 = scalar_select %p513, %s29, 1
          %s515 = scalar_lea.vmem %s9, %s514
        $region56: #{tpu_custom_call.1} parent=23 // pred_fallthru
          _
        // Predicated region
        $region57: #{tpu_custom_call.1} parent=23 // pred_check
          %p516 = pneg %p313
        $region58: #{tpu_custom_call.1} parent=23 // pred_check_branch
          %518 = sbr.rel (%p516) target = $region60
        $region59: #{tpu_custom_call.1} parent=23 // pred_region
          %p519 = scmp.lt.s32.totalorder %s29, 1
          %s520 = scalar_select %p519, %s29, 1
          %s521 = scalar_lea.vmem %s10, %s520
        $region60: #{tpu_custom_call.1} parent=23 // pred_fallthru
          _
        // Predicated region
        $region61: #{tpu_custom_call.1} parent=23 // pred_check
          %p522 = pneg %p339
        $region62: #{tpu_custom_call.1} parent=23 // pred_check_branch
          %524 = sbr.rel (%p522) target = $region64
        $region63: #{tpu_custom_call.1} parent=23 // pred_region
          %p525 = scmp.lt.s32.totalorder %s29, 1
          %s526 = scalar_select %p525, %s29, 1
          %s527 = scalar_lea.vmem %s11, %s526
        $region64: #{tpu_custom_call.1} parent=23 // pred_fallthru
          _
        // Predicated region
        $region65: #{tpu_custom_call.1} parent=23 // pred_check
          %p528 = pneg %p365
        $region66: #{tpu_custom_call.1} parent=23 // pred_check_branch
          %530 = sbr.rel (%p528) target = $region68
        $region67: #{tpu_custom_call.1} parent=23 // pred_region
          %p531 = scmp.lt.s32.totalorder %s29, 1
          %s532 = scalar_select %p531, %s29, 1
          %s533 = scalar_lea.vmem %s12, %s532
        $region68: #{tpu_custom_call.1} parent=23 // pred_fallthru
          _
        // Predicated region
        $region69: #{tpu_custom_call.1} parent=23 // pred_check
          %p534 = pneg %p391
        $region70: #{tpu_custom_call.1} parent=23 // pred_check_branch
          %536 = sbr.rel (%p534) target = $region72
        $region71: #{tpu_custom_call.1} parent=23 // pred_region
          %p537 = scmp.lt.s32.totalorder %s29, 1
          %s538 = scalar_select %p537, %s29, 1
          %s539 = scalar_lea.vmem %s13, %s538
        $region72: #{tpu_custom_call.1} parent=23 // pred_fallthru
          _
      $region24: #{tpu_custom_call.1} parent=5 // pred_fallthru
        _
      %p540 = scmp.le.s32.totalorder 1, %s21
      %p541 = scmp.lt.s32.totalorder %s21, 3
      %p542 = pnand %p540, %p541
      %p543 = pneg %p542
      // Predicated region
      $region73: #{tpu_custom_call.1} parent=5 // pred_check
        _
      $region74: #{tpu_custom_call.1} parent=5 // pred_check_branch
        %545 = sbr.rel (%p542) target = $region76
      $region75: #{tpu_custom_call.1} parent=5 // pred_region
        %s546 = ssub.s32 %s21, 1
        %s547 = smul.u32 2, %s30
        %p548 = scmp.lt.s32.totalorder %s547, 1
        %s549 = scalar_select %p548, %s547, 1
        %s550 = smul.addr %s549, 8
        %s551 = scalar_lea.vmem %s0, %s550
        %p552 = pneg %p59
        %p553 = pneg %p56
        %s554 = smul.u32 2, %s30
        %p555 = scmp.lt.s32.totalorder %s554, 1
        %s556 = scalar_select %p555, %s554, 1
        %s557 = scalar_lea.vmem %s1, %s556
        %p558 = pneg %p85
        %p559 = pneg %p82
        %p560 = scmp.lt.s32.totalorder %s31, 1
        %s561 = scalar_select %p560, %s31, 1
        %s562 = smul.addr %s561, 4
        %s563 = smul.addr %s562, 4
        %s564 = scalar_lea.vmem %s2, %s563
        %p565 = pneg %p111
        %p566 = pneg %p108
        %p567 = scmp.lt.s32.totalorder %s31, 1
        %s568 = scalar_select %p567, %s31, 1
        %s569 = scalar_lea.vmem %s3, %s568
        %p570 = pneg %p137
        %p571 = pneg %p134
        %p572 = scmp.lt.s32.totalorder %s31, 1
        %s573 = scalar_select %p572, %s31, 1
        %s574 = smul.addr %s573, 4
        %s575 = smul.addr %s574, 4
        %s576 = scalar_lea.vmem %s4, %s575
        %p577 = pneg %p163
        %p578 = pneg %p160
        %p579 = scmp.lt.s32.totalorder %s31, 1
        %s580 = scalar_select %p579, %s31, 1
        %s581 = scalar_lea.vmem %s5, %s580
        %p582 = pneg %p189
        %p583 = pneg %p186
        %p584 = scmp.lt.s32.totalorder %s31, 1
        %s585 = scalar_select %p584, %s31, 1
        %s586 = smul.addr %s585, 64
        %s587 = smul.addr %s586, 4
        %s588 = scalar_lea.vmem %s6, %s587
        %p589 = pneg %p215
        %p590 = pneg %p212
        %p591 = scmp.lt.s32.totalorder %s31, 1
        %s592 = scalar_select %p591, %s31, 1
        %s593 = smul.addr %s592, 16
        %s594 = scalar_lea.vmem %s7, %s593
        %p595 = pneg %p241
        %p596 = pneg %p238
        %p597 = scmp.lt.s32.totalorder %s31, 1
        %s598 = scalar_select %p597, %s31, 1
        %s599 = smul.addr %s598, 256
        %s600 = smul.addr %s599, 4
        %s601 = scalar_lea.vmem %s8, %s600
        %p602 = pneg %p267
        %p603 = pneg %p264
        %p604 = scmp.lt.s32.totalorder %s31, 1
        %s605 = scalar_select %p604, %s31, 1
        %s606 = scalar_lea.vmem %s9, %s605
        %p607 = pneg %p293
        %p608 = pneg %p290
        %p609 = scmp.lt.s32.totalorder %s31, 1
        %s610 = scalar_select %p609, %s31, 1
        %s611 = scalar_lea.vmem %s10, %s610
        %p612 = pneg %p319
        %p613 = pneg %p316
        %p614 = scmp.lt.s32.totalorder %s31, 1
        %s615 = scalar_select %p614, %s31, 1
        %s616 = scalar_lea.vmem %s11, %s615
        %p617 = pneg %p345
        %p618 = pneg %p342
        %p619 = scmp.lt.s32.totalorder %s31, 1
        %s620 = scalar_select %p619, %s31, 1
        %s621 = scalar_lea.vmem %s12, %s620
        %p622 = pneg %p371
        %p623 = pneg %p368
        %p624 = scmp.lt.s32.totalorder %s31, 1
        %s625 = scalar_select %p624, %s31, 1
        %s626 = scalar_lea.vmem %s13, %s625
        %p627 = pneg %p397
        %p628 = pneg %p394
        %p629 = pneg %p423
        %p630 = pneg %p420
        %s631 = smul.u32 2, %s30
        %p632 = scmp.lt.s32.totalorder %s631, 1
        %s633 = scalar_select %p632, %s631, 1
        %s634 = smul.addr %s633, 8
        %s635 = scalar_lea.vmem %s0, %s634
        %s636 = smul.u32 2, %s30
        %s637 = smul.u32 2, %s30
        %p638 = scmp.lt.s32.totalorder %s637, 1
        %s639 = scalar_select %p638, %s637, 1
        %s640 = scalar_lea.vmem %s1, %s639
        %s641 = smul.u32 2, %s30
        %p642 = scmp.lt.s32.totalorder %s31, 1
        %s643 = scalar_select %p642, %s31, 1
        %s644 = smul.addr %s643, 4
        %s645 = smul.addr %s644, 4
        %s646 = scalar_lea.vmem %s2, %s645
        %p647 = scmp.lt.s32.totalorder %s31, 1
        %s648 = scalar_select %p647, %s31, 1
        %s649 = scalar_lea.vmem %s3, %s648
        %p650 = scmp.lt.s32.totalorder %s31, 1
        %s651 = scalar_select %p650, %s31, 1
        %s652 = smul.addr %s651, 4
        %s653 = smul.addr %s652, 4
        %s654 = scalar_lea.vmem %s4, %s653
        %p655 = scmp.lt.s32.totalorder %s31, 1
        %s656 = scalar_select %p655, %s31, 1
        %s657 = scalar_lea.vmem %s5, %s656
        %p658 = scmp.lt.s32.totalorder %s31, 1
        %s659 = scalar_select %p658, %s31, 1
        %s660 = smul.addr %s659, 64
        %s661 = smul.addr %s660, 4
        %s662 = scalar_lea.vmem %s6, %s661
        %p663 = scmp.lt.s32.totalorder %s31, 1
        %s664 = scalar_select %p663, %s31, 1
        %s665 = smul.addr %s664, 16
        %s666 = scalar_lea.vmem %s7, %s665
        %p667 = scmp.lt.s32.totalorder %s31, 1
        %s668 = scalar_select %p667, %s31, 1
        %s669 = smul.addr %s668, 256
        %s670 = smul.addr %s669, 4
        %s671 = scalar_lea.vmem %s8, %s670
        %p672 = scmp.lt.s32.totalorder %s31, 1
        %s673 = scalar_select %p672, %s31, 1
        %s674 = scalar_lea.vmem %s9, %s673
        %p675 = scmp.lt.s32.totalorder %s31, 1
        %s676 = scalar_select %p675, %s31, 1
        %s677 = scalar_lea.vmem %s10, %s676
        %p678 = scmp.lt.s32.totalorder %s31, 1
        %s679 = scalar_select %p678, %s31, 1
        %s680 = scalar_lea.vmem %s11, %s679
        %p681 = scmp.lt.s32.totalorder %s31, 1
        %s682 = scalar_select %p681, %s31, 1
        %s683 = scalar_lea.vmem %s12, %s682
        %p684 = scmp.lt.s32.totalorder %s31, 1
        %s685 = scalar_select %p684, %s31, 1
        %s686 = scalar_lea.vmem %s13, %s685
        %s687 = smul.u32 2, %s30
        %p689 = scmp.eq.s32.totalorder %s31, 0
        // Predicated region
        $region77: #{tpu_custom_call.1} parent=75 // pred_check
          %p690 = pneg %p689
        $region78: #{tpu_custom_call.1} parent=75 // pred_check_branch
          %692 = sbr.rel (%p690) target = $region80
        $region79: #{tpu_custom_call.1} parent=75 // pred_region
          %v693 = vld [vmem:[%s635] sm:$0xff]
          %v694 = vld [vmem:[%s635 + $0x8] sm:$0xff]
          %vm695 = vcmask 261120
          %696 = vst.msk [vmem:[#allocation2] sm:$0xff] %vm695, %v693
          %697 = vst.msk [vmem:[#allocation2 + $0x8] sm:$0xff] %vm695, %v694
        $region80: #{tpu_custom_call.1} parent=75 // pred_fallthru
          _
        %v698 = vld [vmem:[#allocation2] sm:$0xff]
        %v699 = vld [vmem:[#allocation2 + $0x8] sm:$0xff]
        %v700 = vpack.c.bf16 %v699, %v698
        %v701 = vld [vmem:[%s646] sm:$0xf]
        %v702 = vld [vmem:[%s646 + $0x4] sm:$0xf]
        %v703 = vld [vmem:[%s646 + $0x8] sm:$0xf]
        %v704 = vld [vmem:[%s646 + $0xc] sm:$0xf]
        %v705 = vld [vmem:[%s649] sm:$0x1]
        %v707 = vperm.slane %v705, 0
        %v713 = vunpack.c.l.b16 %v701
        %v714 = vunpack.c.l.b16 %v702
        %v715 = vunpack.c.l.b16 %v703
        %v716 = vunpack.c.l.b16 %v704
        %v717 = vpack.c.b16 %v714, %v713
        %v718 = vpack.c.b16 %v716, %v715
        %vm721 = vcmask 261120
        %v723 = vsel %vm721, %v700, 0
        %725 = vmatpush.bf16.msra.mxu0 0
        %726 = vmatpush.bf16.msra.mxu0 0
        %727 = vmatpush.bf16.msra.mxu0 0
        %728 = vmatpush.bf16.msra.mxu0 0
        %729 = vmatpush.bf16.msra.mxu0 0
        %730 = vmatpush.bf16.msra.mxu0 0
        %731 = vmatpush.bf16.msra.mxu0 %v718
        %732 = vmatpush.bf16.msra.mxu0 %v717
        %733 = vmatmul.bf16.gmra.mxu0 %v723
        %v734 = vpop.f32.mrf.mxu0
        %v735 = vadd.f32 %v707, %v734
        %v736 = vpop.f32.mrf.mxu0
        %v737 = vadd.f32 %v707, %v736
        %738 = vdwg.mxu0
        %v739 = vld [vmem:[%s640] sm:$0x1]
        %v740 = vld [vmem:[%s640 + $0x1] sm:$0x1]
        %v741 = vpack.c.bf16 %v735, %v735
        %v742 = vpack.c.bf16 %v737, %v737
        %v745 = vperm.slane %v739, 0
        %v746 = vperm.slane %v740, 0
        %v750 = vunpack.c.l.b16 %v741
        %v751 = vpack.c.b16 %v750, %v750
        %752 = vrot.lane.b32.xlu0 %v751, 96
        %v753 = vpop.permute.xlu0 %752
        %vm754 = vcmask 64512
        %v756 = vsel %vm754, %v741, 0
        %v759 = vsel %vm754, %v753, 0
        %761 = vmatpush.bf16.xpose.msra.mxu0 0
        %762 = vmatpush.bf16.xpose.msra.mxu0 0
        %763 = vmatpush.bf16.xpose.msra.mxu0 0
        %764 = vmatpush.bf16.xpose.msra.mxu0 0
        %765 = vmatpush.bf16.xpose.msra.mxu0 0
        %766 = vmatpush.bf16.xpose.msra.mxu0 0
        %767 = vmatpush.bf16.xpose.msra.mxu0 0
        %768 = vmatpush.bf16.xpose.msra.mxu0 %v759
        %769 = vmatmul.bf16.gmra.mxu0 %v756
        %v770 = vpop.f32.mrf.mxu0
        %v771 = vadd.f32 %v745, %v770
        %v772 = vpop.f32.mrf.mxu0
        %773 = vdwg.mxu0
        %v775 = vunpack.c.l.b16 %v742
        %v776 = vpack.c.b16 %v775, %v775
        %777 = vrot.lane.b32.xlu0 %v776, 96
        %v778 = vpop.permute.xlu0 %777
        %v780 = vsel %vm754, %v742, 0
        %v783 = vsel %vm754, %v778, 0
        %785 = vmatpush.bf16.xpose.msra.mxu0 0
        %786 = vmatpush.bf16.xpose.msra.mxu0 0
        %787 = vmatpush.bf16.xpose.msra.mxu0 0
        %788 = vmatpush.bf16.xpose.msra.mxu0 0
        %789 = vmatpush.bf16.xpose.msra.mxu0 0
        %790 = vmatpush.bf16.xpose.msra.mxu0 0
        %791 = vmatpush.bf16.xpose.msra.mxu0 0
        %792 = vmatpush.bf16.xpose.msra.mxu0 %v783
        %793 = vmatmul.bf16.gmra.mxu0 %v780
        %v794 = vpop.f32.mrf.mxu0
        %v795 = vadd.f32 %v746, %v794
        %v796 = vpop.f32.mrf.mxu0
        %797 = vdwg.mxu0
        %v798 = vsel %vm754, %v771, -inf
        %799 = vmax.xlane.f32.xlu0 %v798
        %v800 = vpop.xlane.xlu0 %799
        %v801 = vsel %vm754, %v795, -inf
        %802 = vmax.xlane.f32.xlu0 %v801
        %v803 = vpop.xlane.xlu0 %802
        %v804 = vsub.f32 %v771, %v800
        %v805 = vsub.f32 %v795, %v803
        %v806 = vmul.f32 %v804, 1.442695
        %v807 = vpow.pop %v806
        %v808 = vmul.f32 %v805, 1.442695
        %v809 = vpow.pop %v808
        %v810 = vsel %vm754, %v807, 0.0
        %811 = vadd.xlane.f32.xlu0 %v810
        %v812 = vpop.xlane.xlu0 %811
        %v813 = vsel %vm754, %v809, 0.0
        %814 = vadd.xlane.f32.xlu0 %v813
        %v815 = vpop.xlane.xlu0 %814
        %v816 = vrcp.pop %v812
        %v817 = vrcp.pop %v815
        %v818 = vmul.f32 %v807, %v816
        %v819 = vmul.f32 %v809, %v817
        %v820 = vpack.c.bf16 %v818, %v818
        %v821 = vpack.c.bf16 %v819, %v819
        %822 = vrot.lane.b32.xlu0 %v751, 64
        %v823 = vpop.permute.xlu0 %822
        %v825 = vsel %vm754, %v820, 0
        %vm827 = vcmask 1043456
        %v829 = vsel %vm827, %v823, 0
        %831 = vmatpush.bf16.msra.mxu0 0
        %832 = vmatpush.bf16.msra.mxu0 0
        %833 = vmatpush.bf16.msra.mxu0 0
        %834 = vmatpush.bf16.msra.mxu0 0
        %835 = vmatpush.bf16.msra.mxu0 0
        %836 = vmatpush.bf16.msra.mxu0 0
        %837 = vmatpush.bf16.msra.mxu0 0
        %838 = vmatpush.bf16.msra.mxu0 %v829
        %839 = vmatmul.bf16.gmra.mxu0 %v825
        %v840 = vpop.f32.mrf.mxu0
        %v841 = vadd.f32 0.0, %v840
        %v842 = vpop.f32.mrf.mxu0
        %843 = vdwg.mxu0
        %844 = vrot.lane.b32.xlu0 %v776, 64
        %v845 = vpop.permute.xlu0 %844
        %v847 = vsel %vm754, %v821, 0
        %v850 = vsel %vm827, %v845, 0
        %852 = vmatpush.bf16.msra.mxu0 0
        %853 = vmatpush.bf16.msra.mxu0 0
        %854 = vmatpush.bf16.msra.mxu0 0
        %855 = vmatpush.bf16.msra.mxu0 0
        %856 = vmatpush.bf16.msra.mxu0 0
        %857 = vmatpush.bf16.msra.mxu0 0
        %858 = vmatpush.bf16.msra.mxu0 0
        %859 = vmatpush.bf16.msra.mxu0 %v850
        %860 = vmatmul.bf16.gmra.mxu0 %v847
        %v861 = vpop.f32.mrf.mxu0
        %v862 = vadd.f32 0.0, %v861
        %v863 = vpop.f32.mrf.mxu0
        %864 = vdwg.mxu0
        %865 = vrot.lane.b32.xlu0 %v751, 120
        %v866 = vpop.permute.xlu0 %865
        %867 = vrot.lane.b32.xlu0 %v751, 88
        %v868 = vpop.permute.xlu0 %867
        %v870 = vsel %vm754, %v866, 0
        %v873 = vsel %vm754, %v868, 0
        %875 = vmatpush.bf16.xpose.msra.mxu0 0
        %876 = vmatpush.bf16.xpose.msra.mxu0 0
        %877 = vmatpush.bf16.xpose.msra.mxu0 0
        %878 = vmatpush.bf16.xpose.msra.mxu0 0
        %879 = vmatpush.bf16.xpose.msra.mxu0 0
        %880 = vmatpush.bf16.xpose.msra.mxu0 0
        %881 = vmatpush.bf16.xpose.msra.mxu0 0
        %882 = vmatpush.bf16.xpose.msra.mxu0 %v873
        %883 = vmatmul.bf16.gmra.mxu0 %v870
        %v884 = vpop.f32.mrf.mxu0
        %v885 = vadd.f32 %v745, %v884
        %v886 = vpop.f32.mrf.mxu0
        %887 = vdwg.mxu0
        %888 = vrot.lane.b32.xlu0 %v776, 120
        %v889 = vpop.permute.xlu0 %888
        %890 = vrot.lane.b32.xlu0 %v776, 88
        %v891 = vpop.permute.xlu0 %890
        %v893 = vsel %vm754, %v889, 0
        %v896 = vsel %vm754, %v891, 0
        %898 = vmatpush.bf16.xpose.msra.mxu0 0
        %899 = vmatpush.bf16.xpose.msra.mxu0 0
        %900 = vmatpush.bf16.xpose.msra.mxu0 0
        %901 = vmatpush.bf16.xpose.msra.mxu0 0
        %902 = vmatpush.bf16.xpose.msra.mxu0 0
        %903 = vmatpush.bf16.xpose.msra.mxu0 0
        %904 = vmatpush.bf16.xpose.msra.mxu0 0
        %905 = vmatpush.bf16.xpose.msra.mxu0 %v896
        %906 = vmatmul.bf16.gmra.mxu0 %v893
        %v907 = vpop.f32.mrf.mxu0
        %v908 = vadd.f32 %v746, %v907
        %v909 = vpop.f32.mrf.mxu0
        %910 = vdwg.mxu0
        %v911 = vsel %vm754, %v885, -inf
        %912 = vmax.xlane.f32.xlu0 %v911
        %v913 = vpop.xlane.xlu0 %912
        %v914 = vsel %vm754, %v908, -inf
        %915 = vmax.xlane.f32.xlu0 %v914
        %v916 = vpop.xlane.xlu0 %915
        %v917 = vsub.f32 %v885, %v913
        %v918 = vsub.f32 %v908, %v916
        %v919 = vmul.f32 %v917, 1.442695
        %v920 = vpow.pop %v919
        %v921 = vmul.f32 %v918, 1.442695
        %v922 = vpow.pop %v921
        %v923 = vsel %vm754, %v920, 0.0
        %924 = vadd.xlane.f32.xlu0 %v923
        %v925 = vpop.xlane.xlu0 %924
        %v926 = vsel %vm754, %v922, 0.0
        %927 = vadd.xlane.f32.xlu0 %v926
        %v928 = vpop.xlane.xlu0 %927
        %v929 = vrcp.pop %v925
        %v930 = vrcp.pop %v928
        %v931 = vmul.f32 %v920, %v929
        %v932 = vmul.f32 %v922, %v930
        %v933 = vpack.c.bf16 %v931, %v931
        %v934 = vpack.c.bf16 %v932, %v932
        %935 = vrot.lane.b32.xlu0 %v751, 56
        %v936 = vpop.permute.xlu0 %935
        %v938 = vsel %vm754, %v933, 0
        %v941 = vsel %vm827, %v936, 0
        %943 = vmatpush.bf16.msra.mxu0 0
        %944 = vmatpush.bf16.msra.mxu0 0
        %945 = vmatpush.bf16.msra.mxu0 0
        %946 = vmatpush.bf16.msra.mxu0 0
        %947 = vmatpush.bf16.msra.mxu0 0
        %948 = vmatpush.bf16.msra.mxu0 0
        %949 = vmatpush.bf16.msra.mxu0 0
        %950 = vmatpush.bf16.msra.mxu0 %v941
        %951 = vmatmul.bf16.gmra.mxu0 %v938
        %v952 = vpop.f32.mrf.mxu0
        %v953 = vadd.f32 0.0, %v952
        %v954 = vpop.f32.mrf.mxu0
        %955 = vdwg.mxu0
        %956 = vrot.lane.b32.xlu0 %v776, 56
        %v957 = vpop.permute.xlu0 %956
        %v959 = vsel %vm754, %v934, 0
        %v962 = vsel %vm827, %v957, 0
        %964 = vmatpush.bf16.msra.mxu0 0
        %965 = vmatpush.bf16.msra.mxu0 0
        %966 = vmatpush.bf16.msra.mxu0 0
        %967 = vmatpush.bf16.msra.mxu0 0
        %968 = vmatpush.bf16.msra.mxu0 0
        %969 = vmatpush.bf16.msra.mxu0 0
        %970 = vmatpush.bf16.msra.mxu0 0
        %971 = vmatpush.bf16.msra.mxu0 %v962
        %972 = vmatmul.bf16.gmra.mxu0 %v959
        %v973 = vpop.f32.mrf.mxu0
        %v974 = vadd.f32 0.0, %v973
        %v975 = vpop.f32.mrf.mxu0
        %976 = vdwg.mxu0
        %977 = vrot.lane.b32.xlu0 %v751, 112
        %v978 = vpop.permute.xlu0 %977
        %979 = vrot.lane.b32.xlu0 %v751, 80
        %v980 = vpop.permute.xlu0 %979
        %v982 = vsel %vm754, %v978, 0
        %v985 = vsel %vm754, %v980, 0
        %987 = vmatpush.bf16.xpose.msra.mxu0 0
        %988 = vmatpush.bf16.xpose.msra.mxu0 0
        %989 = vmatpush.bf16.xpose.msra.mxu0 0
        %990 = vmatpush.bf16.xpose.msra.mxu0 0
        %991 = vmatpush.bf16.xpose.msra.mxu0 0
        %992 = vmatpush.bf16.xpose.msra.mxu0 0
        %993 = vmatpush.bf16.xpose.msra.mxu0 0
        %994 = vmatpush.bf16.xpose.msra.mxu0 %v985
        %995 = vmatmul.bf16.gmra.mxu0 %v982
        %v996 = vpop.f32.mrf.mxu0
        %v997 = vadd.f32 %v745, %v996
        %v998 = vpop.f32.mrf.mxu0
        %999 = vdwg.mxu0
        %1000 = vrot.lane.b32.xlu0 %v776, 112
        %v1001 = vpop.permute.xlu0 %1000
        %1002 = vrot.lane.b32.xlu0 %v776, 80
        %v1003 = vpop.permute.xlu0 %1002
        %v1005 = vsel %vm754, %v1001, 0
        %v1008 = vsel %vm754, %v1003, 0
        %1010 = vmatpush.bf16.xpose.msra.mxu0 0
        %1011 = vmatpush.bf16.xpose.msra.mxu0 0
        %1012 = vmatpush.bf16.xpose.msra.mxu0 0
        %1013 = vmatpush.bf16.xpose.msra.mxu0 0
        %1014 = vmatpush.bf16.xpose.msra.mxu0 0
        %1015 = vmatpush.bf16.xpose.msra.mxu0 0
        %1016 = vmatpush.bf16.xpose.msra.mxu0 0
        %1017 = vmatpush.bf16.xpose.msra.mxu0 %v1008
        %1018 = vmatmul.bf16.gmra.mxu0 %v1005
        %v1019 = vpop.f32.mrf.mxu0
        %v1020 = vadd.f32 %v746, %v1019
        %v1021 = vpop.f32.mrf.mxu0
        %1022 = vdwg.mxu0
        %v1023 = vsel %vm754, %v997, -inf
        %1024 = vmax.xlane.f32.xlu0 %v1023
        %v1025 = vpop.xlane.xlu0 %1024
        %v1026 = vsel %vm754, %v1020, -inf
        %1027 = vmax.xlane.f32.xlu0 %v1026
        %v1028 = vpop.xlane.xlu0 %1027
        %v1029 = vsub.f32 %v997, %v1025
        %v1030 = vsub.f32 %v1020, %v1028
        %v1031 = vmul.f32 %v1029, 1.442695
        %v1032 = vpow.pop %v1031
        %v1033 = vmul.f32 %v1030, 1.442695
        %v1034 = vpow.pop %v1033
        %v1035 = vsel %vm754, %v1032, 0.0
        %1036 = vadd.xlane.f32.xlu0 %v1035
        %v1037 = vpop.xlane.xlu0 %1036
        %v1038 = vsel %vm754, %v1034, 0.0
        %1039 = vadd.xlane.f32.xlu0 %v1038
        %v1040 = vpop.xlane.xlu0 %1039
        %v1041 = vrcp.pop %v1037
        %v1042 = vrcp.pop %v1040
        %v1043 = vmul.f32 %v1032, %v1041
        %v1044 = vmul.f32 %v1034, %v1042
        %v1045 = vpack.c.bf16 %v1043, %v1043
        %v1046 = vpack.c.bf16 %v1044, %v1044
        %1047 = vrot.lane.b32.xlu0 %v751, 48
        %v1048 = vpop.permute.xlu0 %1047
        %v1050 = vsel %vm754, %v1045, 0
        %v1053 = vsel %vm827, %v1048, 0
        %1055 = vmatpush.bf16.msra.mxu0 0
        %1056 = vmatpush.bf16.msra.mxu0 0
        %1057 = vmatpush.bf16.msra.mxu0 0
        %1058 = vmatpush.bf16.msra.mxu0 0
        %1059 = vmatpush.bf16.msra.mxu0 0
        %1060 = vmatpush.bf16.msra.mxu0 0
        %1061 = vmatpush.bf16.msra.mxu0 0
        %1062 = vmatpush.bf16.msra.mxu0 %v1053
        %1063 = vmatmul.bf16.gmra.mxu0 %v1050
        %v1064 = vpop.f32.mrf.mxu0
        %v1065 = vadd.f32 0.0, %v1064
        %v1066 = vpop.f32.mrf.mxu0
        %1067 = vdwg.mxu0
        %1068 = vrot.lane.b32.xlu0 %v776, 48
        %v1069 = vpop.permute.xlu0 %1068
        %v1071 = vsel %vm754, %v1046, 0
        %v1074 = vsel %vm827, %v1069, 0
        %1076 = vmatpush.bf16.msra.mxu0 0
        %1077 = vmatpush.bf16.msra.mxu0 0
        %1078 = vmatpush.bf16.msra.mxu0 0
        %1079 = vmatpush.bf16.msra.mxu0 0
        %1080 = vmatpush.bf16.msra.mxu0 0
        %1081 = vmatpush.bf16.msra.mxu0 0
        %1082 = vmatpush.bf16.msra.mxu0 0
        %1083 = vmatpush.bf16.msra.mxu0 %v1074
        %1084 = vmatmul.bf16.gmra.mxu0 %v1071
        %v1085 = vpop.f32.mrf.mxu0
        %v1086 = vadd.f32 0.0, %v1085
        %v1087 = vpop.f32.mrf.mxu0
        %1088 = vdwg.mxu0
        %1089 = vrot.lane.b32.xlu0 %v751, 104
        %v1090 = vpop.permute.xlu0 %1089
        %1091 = vrot.lane.b32.xlu0 %v751, 72
        %v1092 = vpop.permute.xlu0 %1091
        %v1094 = vsel %vm754, %v1090, 0
        %v1097 = vsel %vm754, %v1092, 0
        %1099 = vmatpush.bf16.xpose.msra.mxu0 0
        %1100 = vmatpush.bf16.xpose.msra.mxu0 0
        %1101 = vmatpush.bf16.xpose.msra.mxu0 0
        %1102 = vmatpush.bf16.xpose.msra.mxu0 0
        %1103 = vmatpush.bf16.xpose.msra.mxu0 0
        %1104 = vmatpush.bf16.xpose.msra.mxu0 0
        %1105 = vmatpush.bf16.xpose.msra.mxu0 0
        %1106 = vmatpush.bf16.xpose.msra.mxu0 %v1097
        %1107 = vmatmul.bf16.gmra.mxu0 %v1094
        %v1108 = vpop.f32.mrf.mxu0
        %v1109 = vadd.f32 %v745, %v1108
        %v1110 = vpop.f32.mrf.mxu0
        %1111 = vdwg.mxu0
        %1112 = vrot.lane.b32.xlu0 %v776, 104
        %v1113 = vpop.permute.xlu0 %1112
        %1114 = vrot.lane.b32.xlu0 %v776, 72
        %v1115 = vpop.permute.xlu0 %1114
        %v1117 = vsel %vm754, %v1113, 0
        %v1120 = vsel %vm754, %v1115, 0
        %1122 = vmatpush.bf16.xpose.msra.mxu0 0
        %1123 = vmatpush.bf16.xpose.msra.mxu0 0
        %1124 = vmatpush.bf16.xpose.msra.mxu0 0
        %1125 = vmatpush.bf16.xpose.msra.mxu0 0
        %1126 = vmatpush.bf16.xpose.msra.mxu0 0
        %1127 = vmatpush.bf16.xpose.msra.mxu0 0
        %1128 = vmatpush.bf16.xpose.msra.mxu0 0
        %1129 = vmatpush.bf16.xpose.msra.mxu0 %v1120
        %1130 = vmatmul.bf16.gmra.mxu0 %v1117
        %v1131 = vpop.f32.mrf.mxu0
        %v1132 = vadd.f32 %v746, %v1131
        %v1133 = vpop.f32.mrf.mxu0
        %1134 = vdwg.mxu0
        %v1135 = vsel %vm754, %v1109, -inf
        %1136 = vmax.xlane.f32.xlu0 %v1135
        %v1137 = vpop.xlane.xlu0 %1136
        %v1138 = vsel %vm754, %v1132, -inf
        %1139 = vmax.xlane.f32.xlu0 %v1138
        %v1140 = vpop.xlane.xlu0 %1139
        %v1141 = vsub.f32 %v1109, %v1137
        %v1142 = vsub.f32 %v1132, %v1140
        %v1143 = vmul.f32 %v1141, 1.442695
        %v1144 = vpow.pop %v1143
        %v1145 = vmul.f32 %v1142, 1.442695
        %v1146 = vpow.pop %v1145
        %v1147 = vsel %vm754, %v1144, 0.0
        %1148 = vadd.xlane.f32.xlu0 %v1147
        %v1149 = vpop.xlane.xlu0 %1148
        %v1150 = vsel %vm754, %v1146, 0.0
        %1151 = vadd.xlane.f32.xlu0 %v1150
        %v1152 = vpop.xlane.xlu0 %1151
        %v1153 = vrcp.pop %v1149
        %v1154 = vrcp.pop %v1152
        %v1155 = vmul.f32 %v1144, %v1153
        %v1156 = vmul.f32 %v1146, %v1154
        %v1157 = vpack.c.bf16 %v1155, %v1155
        %v1158 = vpack.c.bf16 %v1156, %v1156
        %1159 = vrot.lane.b32.xlu0 %v751, 40
        %v1160 = vpop.permute.xlu0 %1159
        %v1162 = vsel %vm754, %v1157, 0
        %v1165 = vsel %vm827, %v1160, 0
        %1167 = vmatpush.bf16.msra.mxu0 0
        %1168 = vmatpush.bf16.msra.mxu0 0
        %1169 = vmatpush.bf16.msra.mxu0 0
        %1170 = vmatpush.bf16.msra.mxu0 0
        %1171 = vmatpush.bf16.msra.mxu0 0
        %1172 = vmatpush.bf16.msra.mxu0 0
        %1173 = vmatpush.bf16.msra.mxu0 0
        %1174 = vmatpush.bf16.msra.mxu0 %v1165
        %1175 = vmatmul.bf16.gmra.mxu0 %v1162
        %v1176 = vpop.f32.mrf.mxu0
        %v1177 = vadd.f32 0.0, %v1176
        %v1178 = vpop.f32.mrf.mxu0
        %1179 = vdwg.mxu0
        %1180 = vrot.lane.b32.xlu0 %v776, 40
        %v1181 = vpop.permute.xlu0 %1180
        %v1183 = vsel %vm754, %v1158, 0
        %v1186 = vsel %vm827, %v1181, 0
        %1188 = vmatpush.bf16.msra.mxu0 0
        %1189 = vmatpush.bf16.msra.mxu0 0
        %1190 = vmatpush.bf16.msra.mxu0 0
        %1191 = vmatpush.bf16.msra.mxu0 0
        %1192 = vmatpush.bf16.msra.mxu0 0
        %1193 = vmatpush.bf16.msra.mxu0 0
        %1194 = vmatpush.bf16.msra.mxu0 0
        %1195 = vmatpush.bf16.msra.mxu0 %v1186
        %1196 = vmatmul.bf16.gmra.mxu0 %v1183
        %v1197 = vpop.f32.mrf.mxu0
        %v1198 = vadd.f32 0.0, %v1197
        %v1199 = vpop.f32.mrf.mxu0
        %1200 = vdwg.mxu0
        %1203 = vrot.lane.b32.xlu0 %v953, 8
        %v1204 = vpop.permute.xlu0 %1203
        %1205 = vrot.lane.b32.xlu0 %v974, 8
        %v1206 = vpop.permute.xlu0 %1205
        %1211 = vrot.lane.b32.xlu0 %v1065, 16
        %v1212 = vpop.permute.xlu0 %1211
        %1213 = vrot.lane.b32.xlu0 %v1086, 16
        %v1214 = vpop.permute.xlu0 %1213
        %1219 = vrot.lane.b32.xlu0 %v1177, 24
        %v1220 = vpop.permute.xlu0 %1219
        %1221 = vrot.lane.b32.xlu0 %v1198, 24
        %v1222 = vpop.permute.xlu0 %1221
        %v1225 = vsel %vm754, %v841, %v1204
        %v1226 = vsel %vm754, %v862, %v1206
        %vm1227 = vcmask 130048
        %v1228 = vsel %vm1227, %v1225, %v1212
        %v1229 = vsel %vm1227, %v1226, %v1214
        %vm1230 = vcmask 195584
        %v1231 = vsel %vm1230, %v1228, %v1220
        %v1232 = vsel %vm1230, %v1229, %v1222
        %v1233 = vpack.c.bf16 %v1232, %v1231
        %v1234 = vld [vmem:[%s654] sm:$0xf]
        %v1235 = vld [vmem:[%s654 + $0x4] sm:$0xf]
        %v1236 = vld [vmem:[%s654 + $0x8] sm:$0xf]
        %v1237 = vld [vmem:[%s654 + $0xc] sm:$0xf]
        %v1238 = vld [vmem:[%s657] sm:$0x1]
        %v1240 = vperm.slane %v1238, 0
        %v1246 = vunpack.c.l.b16 %v1234
        %v1247 = vunpack.c.l.b16 %v1235
        %v1248 = vunpack.c.l.b16 %v1236
        %v1249 = vunpack.c.l.b16 %v1237
        %v1250 = vpack.c.b16 %v1247, %v1246
        %v1251 = vpack.c.b16 %v1249, %v1248
        %v1255 = vsel %vm721, %v1233, 0
        %1257 = vmatpush.bf16.msra.mxu0 0
        %1258 = vmatpush.bf16.msra.mxu0 0
        %1259 = vmatpush.bf16.msra.mxu0 0
        %1260 = vmatpush.bf16.msra.mxu0 0
        %1261 = vmatpush.bf16.msra.mxu0 0
        %1262 = vmatpush.bf16.msra.mxu0 0
        %1263 = vmatpush.bf16.msra.mxu0 %v1251
        %1264 = vmatpush.bf16.msra.mxu0 %v1250
        %1265 = vmatmul.bf16.gmra.mxu0 %v1255
        %v1266 = vpop.f32.mrf.mxu0
        %v1267 = vadd.f32 %v1240, %v1266
        %v1268 = vpop.f32.mrf.mxu0
        %v1269 = vadd.f32 %v1240, %v1268
        %1270 = vdwg.mxu0
        %v1271 = vadd.f32 %v698, %v1267
        %v1272 = vadd.f32 %v699, %v1269
        %v1273 = vld [vmem:[%s677] sm:$0x1]
        %v1274 = vld [vmem:[%s680] sm:$0x1]
        %v1275 = vsel %vm721, %v1271, 0.0
        %1276 = vadd.xlane.f32.xlu0 %v1275
        %v1277 = vpop.xlane.xlu0 %1276
        %v1278 = vsel %vm721, %v1272, 0.0
        %1279 = vadd.xlane.f32.xlu0 %v1278
        %v1280 = vpop.xlane.xlu0 %1279
        %v1281 = vrcp.pop 32.0
        %v1282 = vmul.f32 32.0, %v1281
        %v1283 = vsub.f32 1.0, %v1282
        %v1284 = vmul.f32 %v1281, %v1283
        %v1285 = vadd.f32 %v1281, %v1284
        %vm1286 = vweird.f32 %v1281
        %v1287 = vsel %vm1286, %v1281, %v1285
        %v1288 = vmul.f32 %v1277, %v1287
        %v1289 = vmul.f32 %v1280, %v1287
        %v1290 = vsub.f32 %v1271, %v1288
        %v1291 = vsub.f32 %v1272, %v1289
        %v1292 = vmul.f32 %v1290, %v1290
        %v1293 = vmul.f32 %v1291, %v1291
        %v1294 = vsel %vm721, %v1292, 0.0
        %1295 = vadd.xlane.f32.xlu0 %v1294
        %v1296 = vpop.xlane.xlu0 %1295
        %v1297 = vsel %vm721, %v1293, 0.0
        %1298 = vadd.xlane.f32.xlu0 %v1297
        %v1299 = vpop.xlane.xlu0 %1298
        %v1300 = vmul.f32 %v1296, %v1287
        %v1301 = vmul.f32 %v1299, %v1287
        %v1302 = vadd.f32 %v1300, 1e-05
        %v1303 = vadd.f32 %v1301, 1e-05
        %v1304 = vrsqrt.pop %v1302
        %v1305 = vmul.f32 %v1304, %v1302
        %v1306 = vmul.f32 %v1305, %v1304
        %v1307 = vmul.f32 0.5, %v1306
        %v1308 = vsub.f32 1.5, %v1307
        %v1309 = vmul.f32 %v1304, %v1308
        %vm1310 = vweird.f32 %v1302
        %vm1311 = vweird.f32 %v1304
        %vm1312 = vmor %vm1310, %vm1311
        %v1313 = vsel %vm1312, %v1304, %v1309
        %v1314 = vrsqrt.pop %v1303
        %v1315 = vmul.f32 %v1314, %v1303
        %v1316 = vmul.f32 %v1315, %v1314
        %v1317 = vmul.f32 0.5, %v1316
        %v1318 = vsub.f32 1.5, %v1317
        %v1319 = vmul.f32 %v1314, %v1318
        %vm1320 = vweird.f32 %v1303
        %vm1321 = vweird.f32 %v1314
        %vm1322 = vmor %vm1320, %vm1321
        %v1323 = vsel %vm1322, %v1314, %v1319
        %v1324 = vmul.f32 %v1290, %v1313
        %v1325 = vmul.f32 %v1291, %v1323
        %v1327 = vperm.slane %v1273, 0
        %v1329 = vmul.f32 %v1324, %v1327
        %v1330 = vmul.f32 %v1325, %v1327
        %v1332 = vperm.slane %v1274, 0
        %v1334 = vadd.f32 %v1329, %v1332
        %v1335 = vadd.f32 %v1330, %v1332
        %v1336 = vpack.c.bf16 %v1335, %v1334
        %v1337 = vld [vmem:[%s662] sm:$0xff]
        %v1338 = vld [vmem:[%s662 + $0x8] sm:$0xff]
        %v1339 = vld [vmem:[%s662 + $0x10] sm:$0xff]
        %v1340 = vld [vmem:[%s662 + $0x18] sm:$0xff]
        %v1341 = vld [vmem:[%s662 + $0x20] sm:$0xff]
        %v1342 = vld [vmem:[%s662 + $0x28] sm:$0xff]
        %v1343 = vld [vmem:[%s662 + $0x30] sm:$0xff]
        %v1344 = vld [vmem:[%s662 + $0x38] sm:$0xff]
        %v1345 = vld [vmem:[%s662 + $0x40] sm:$0xff]
        %v1346 = vld [vmem:[%s662 + $0x48] sm:$0xff]
        %v1347 = vld [vmem:[%s662 + $0x50] sm:$0xff]
        %v1348 = vld [vmem:[%s662 + $0x58] sm:$0xff]
        %v1349 = vld [vmem:[%s662 + $0x60] sm:$0xff]
        %v1350 = vld [vmem:[%s662 + $0x68] sm:$0xff]
        %v1351 = vld [vmem:[%s662 + $0x70] sm:$0xff]
        %v1352 = vld [vmem:[%s662 + $0x78] sm:$0xff]
        %v1353 = vld [vmem:[%s662 + $0x80] sm:$0xff]
        %v1354 = vld [vmem:[%s662 + $0x88] sm:$0xff]
        %v1355 = vld [vmem:[%s662 + $0x90] sm:$0xff]
        %v1356 = vld [vmem:[%s662 + $0x98] sm:$0xff]
        %v1357 = vld [vmem:[%s662 + $0xa0] sm:$0xff]
        %v1358 = vld [vmem:[%s662 + $0xa8] sm:$0xff]
        %v1359 = vld [vmem:[%s662 + $0xb0] sm:$0xff]
        %v1360 = vld [vmem:[%s662 + $0xb8] sm:$0xff]
        %v1361 = vld [vmem:[%s662 + $0xc0] sm:$0xff]
        %v1362 = vld [vmem:[%s662 + $0xc8] sm:$0xff]
        %v1363 = vld [vmem:[%s662 + $0xd0] sm:$0xff]
        %v1364 = vld [vmem:[%s662 + $0xd8] sm:$0xff]
        %v1365 = vld [vmem:[%s662 + $0xe0] sm:$0xff]
        %v1366 = vld [vmem:[%s662 + $0xe8] sm:$0xff]
        %v1367 = vld [vmem:[%s662 + $0xf0] sm:$0xff]
        %v1368 = vld [vmem:[%s662 + $0xf8] sm:$0xff]
        %v1369 = vld [vmem:[%s666] sm:$0xff]
        %v1370 = vld [vmem:[%s666 + $0x8] sm:$0xff]
        %v1373 = vperm.slane %v1369, 0
        %v1374 = vperm.slane %v1369, 1
        %v1375 = vperm.slane %v1369, 2
        %v1376 = vperm.slane %v1369, 3
        %v1377 = vperm.slane %v1369, 4
        %v1378 = vperm.slane %v1369, 5
        %v1379 = vperm.slane %v1369, 6
        %v1380 = vperm.slane %v1369, 7
        %v1381 = vperm.slane %v1370, 0
        %v1382 = vperm.slane %v1370, 1
        %v1383 = vperm.slane %v1370, 2
        %v1384 = vperm.slane %v1370, 3
        %v1385 = vperm.slane %v1370, 4
        %v1386 = vperm.slane %v1370, 5
        %v1387 = vperm.slane %v1370, 6
        %v1388 = vperm.slane %v1370, 7
        %v1437 = vunpack.c.l.b16 %v1337
        %v1438 = vunpack.c.h.b16 %v1337
        %v1439 = vunpack.c.l.b16 %v1338
        %v1440 = vunpack.c.h.b16 %v1338
        %v1441 = vunpack.c.l.b16 %v1339
        %v1442 = vunpack.c.h.b16 %v1339
        %v1443 = vunpack.c.l.b16 %v1340
        %v1444 = vunpack.c.h.b16 %v1340
        %v1445 = vunpack.c.l.b16 %v1341
        %v1446 = vunpack.c.h.b16 %v1341
        %v1447 = vunpack.c.l.b16 %v1342
        %v1448 = vunpack.c.h.b16 %v1342
        %v1449 = vunpack.c.l.b16 %v1343
        %v1450 = vunpack.c.h.b16 %v1343
        %v1451 = vunpack.c.l.b16 %v1344
        %v1452 = vunpack.c.h.b16 %v1344
        %v1453 = vunpack.c.l.b16 %v1345
        %v1454 = vunpack.c.h.b16 %v1345
        %v1455 = vunpack.c.l.b16 %v1346
        %v1456 = vunpack.c.h.b16 %v1346
        %v1457 = vunpack.c.l.b16 %v1347
        %v1458 = vunpack.c.h.b16 %v1347
        %v1459 = vunpack.c.l.b16 %v1348
        %v1460 = vunpack.c.h.b16 %v1348
        %v1461 = vunpack.c.l.b16 %v1349
        %v1462 = vunpack.c.h.b16 %v1349
        %v1463 = vunpack.c.l.b16 %v1350
        %v1464 = vunpack.c.h.b16 %v1350
        %v1465 = vunpack.c.l.b16 %v1351
        %v1466 = vunpack.c.h.b16 %v1351
        %v1467 = vunpack.c.l.b16 %v1352
        %v1468 = vunpack.c.h.b16 %v1352
        %v1469 = vunpack.c.l.b16 %v1353
        %v1470 = vunpack.c.h.b16 %v1353
        %v1471 = vunpack.c.l.b16 %v1354
        %v1472 = vunpack.c.h.b16 %v1354
        %v1473 = vunpack.c.l.b16 %v1355
        %v1474 = vunpack.c.h.b16 %v1355
        %v1475 = vunpack.c.l.b16 %v1356
        %v1476 = vunpack.c.h.b16 %v1356
        %v1477 = vunpack.c.l.b16 %v1357
        %v1478 = vunpack.c.h.b16 %v1357
        %v1479 = vunpack.c.l.b16 %v1358
        %v1480 = vunpack.c.h.b16 %v1358
        %v1481 = vunpack.c.l.b16 %v1359
        %v1482 = vunpack.c.h.b16 %v1359
        %v1483 = vunpack.c.l.b16 %v1360
        %v1484 = vunpack.c.h.b16 %v1360
        %v1485 = vunpack.c.l.b16 %v1361
        %v1486 = vunpack.c.h.b16 %v1361
        %v1487 = vunpack.c.l.b16 %v1362
        %v1488 = vunpack.c.h.b16 %v1362
        %v1489 = vunpack.c.l.b16 %v1363
        %v1490 = vunpack.c.h.b16 %v1363
        %v1491 = vunpack.c.l.b16 %v1364
        %v1492 = vunpack.c.h.b16 %v1364
        %v1493 = vunpack.c.l.b16 %v1365
        %v1494 = vunpack.c.h.b16 %v1365
        %v1495 = vunpack.c.l.b16 %v1366
        %v1496 = vunpack.c.h.b16 %v1366
        %v1497 = vunpack.c.l.b16 %v1367
        %v1498 = vunpack.c.h.b16 %v1367
        %v1499 = vunpack.c.l.b16 %v1368
        %v1500 = vunpack.c.h.b16 %v1368
        %v1501 = vpack.c.b16 %v1453, %v1437
        %v1502 = vpack.c.b16 %v1454, %v1438
        %v1503 = vpack.c.b16 %v1455, %v1439
        %v1504 = vpack.c.b16 %v1456, %v1440
        %v1505 = vpack.c.b16 %v1457, %v1441
        %v1506 = vpack.c.b16 %v1458, %v1442
        %v1507 = vpack.c.b16 %v1459, %v1443
        %v1508 = vpack.c.b16 %v1460, %v1444
        %v1509 = vpack.c.b16 %v1461, %v1445
        %v1510 = vpack.c.b16 %v1462, %v1446
        %v1511 = vpack.c.b16 %v1463, %v1447
        %v1512 = vpack.c.b16 %v1464, %v1448
        %v1513 = vpack.c.b16 %v1465, %v1449
        %v1514 = vpack.c.b16 %v1466, %v1450
        %v1515 = vpack.c.b16 %v1467, %v1451
        %v1516 = vpack.c.b16 %v1468, %v1452
        %v1517 = vpack.c.b16 %v1485, %v1469
        %v1518 = vpack.c.b16 %v1486, %v1470
        %v1519 = vpack.c.b16 %v1487, %v1471
        %v1520 = vpack.c.b16 %v1488, %v1472
        %v1521 = vpack.c.b16 %v1489, %v1473
        %v1522 = vpack.c.b16 %v1490, %v1474
        %v1523 = vpack.c.b16 %v1491, %v1475
        %v1524 = vpack.c.b16 %v1492, %v1476
        %v1525 = vpack.c.b16 %v1493, %v1477
        %v1526 = vpack.c.b16 %v1494, %v1478
        %v1527 = vpack.c.b16 %v1495, %v1479
        %v1528 = vpack.c.b16 %v1496, %v1480
        %v1529 = vpack.c.b16 %v1497, %v1481
        %v1530 = vpack.c.b16 %v1498, %v1482
        %v1531 = vpack.c.b16 %v1499, %v1483
        %v1532 = vpack.c.b16 %v1500, %v1484
        %v1566 = vsel %vm721, %v1336, 0
        %1568 = vmatpush.bf16.msra.mxu0 0
        %1569 = vmatpush.bf16.msra.mxu0 0
        %1570 = vmatpush.bf16.msra.mxu0 0
        %1571 = vmatpush.bf16.msra.mxu0 0
        %1572 = vmatpush.bf16.msra.mxu0 0
        %1573 = vmatpush.bf16.msra.mxu0 0
        %1574 = vmatpush.bf16.msra.mxu0 %v1517
        %1575 = vmatpush.bf16.msra.mxu0 %v1501
        %1576 = vmatmul.bf16.gmra.mxu0 %v1566
        %v1577 = vpop.f32.mrf.mxu0
        %v1578 = vadd.f32 %v1373, %v1577
        %v1579 = vpop.f32.mrf.mxu0
        %v1580 = vadd.f32 %v1373, %v1579
        %1581 = vdwg.mxu0
        %1582 = vmatpush.bf16.msra.mxu0 0
        %1583 = vmatpush.bf16.msra.mxu0 0
        %1584 = vmatpush.bf16.msra.mxu0 0
        %1585 = vmatpush.bf16.msra.mxu0 0
        %1586 = vmatpush.bf16.msra.mxu0 0
        %1587 = vmatpush.bf16.msra.mxu0 0
        %1588 = vmatpush.bf16.msra.mxu0 %v1518
        %1589 = vmatpush.bf16.msra.mxu0 %v1502
        %1590 = vmatmul.bf16.gmra.mxu0 %v1566
        %v1591 = vpop.f32.mrf.mxu0
        %v1592 = vadd.f32 %v1374, %v1591
        %v1593 = vpop.f32.mrf.mxu0
        %v1594 = vadd.f32 %v1374, %v1593
        %1595 = vdwg.mxu0
        %1596 = vmatpush.bf16.msra.mxu0 0
        %1597 = vmatpush.bf16.msra.mxu0 0
        %1598 = vmatpush.bf16.msra.mxu0 0
        %1599 = vmatpush.bf16.msra.mxu0 0
        %1600 = vmatpush.bf16.msra.mxu0 0
        %1601 = vmatpush.bf16.msra.mxu0 0
        %1602 = vmatpush.bf16.msra.mxu0 %v1519
        %1603 = vmatpush.bf16.msra.mxu0 %v1503
        %1604 = vmatmul.bf16.gmra.mxu0 %v1566
        %v1605 = vpop.f32.mrf.mxu0
        %v1606 = vadd.f32 %v1375, %v1605
        %v1607 = vpop.f32.mrf.mxu0
        %v1608 = vadd.f32 %v1375, %v1607
        %1609 = vdwg.mxu0
        %1610 = vmatpush.bf16.msra.mxu0 0
        %1611 = vmatpush.bf16.msra.mxu0 0
        %1612 = vmatpush.bf16.msra.mxu0 0
        %1613 = vmatpush.bf16.msra.mxu0 0
        %1614 = vmatpush.bf16.msra.mxu0 0
        %1615 = vmatpush.bf16.msra.mxu0 0
        %1616 = vmatpush.bf16.msra.mxu0 %v1520
        %1617 = vmatpush.bf16.msra.mxu0 %v1504
        %1618 = vmatmul.bf16.gmra.mxu0 %v1566
        %v1619 = vpop.f32.mrf.mxu0
        %v1620 = vadd.f32 %v1376, %v1619
        %v1621 = vpop.f32.mrf.mxu0
        %v1622 = vadd.f32 %v1376, %v1621
        %1623 = vdwg.mxu0
        %1624 = vmatpush.bf16.msra.mxu0 0
        %1625 = vmatpush.bf16.msra.mxu0 0
        %1626 = vmatpush.bf16.msra.mxu0 0
        %1627 = vmatpush.bf16.msra.mxu0 0
        %1628 = vmatpush.bf16.msra.mxu0 0
        %1629 = vmatpush.bf16.msra.mxu0 0
        %1630 = vmatpush.bf16.msra.mxu0 %v1521
        %1631 = vmatpush.bf16.msra.mxu0 %v1505
        %1632 = vmatmul.bf16.gmra.mxu0 %v1566
        %v1633 = vpop.f32.mrf.mxu0
        %v1634 = vadd.f32 %v1377, %v1633
        %v1635 = vpop.f32.mrf.mxu0
        %v1636 = vadd.f32 %v1377, %v1635
        %1637 = vdwg.mxu0
        %1638 = vmatpush.bf16.msra.mxu0 0
        %1639 = vmatpush.bf16.msra.mxu0 0
        %1640 = vmatpush.bf16.msra.mxu0 0
        %1641 = vmatpush.bf16.msra.mxu0 0
        %1642 = vmatpush.bf16.msra.mxu0 0
        %1643 = vmatpush.bf16.msra.mxu0 0
        %1644 = vmatpush.bf16.msra.mxu0 %v1522
        %1645 = vmatpush.bf16.msra.mxu0 %v1506
        %1646 = vmatmul.bf16.gmra.mxu0 %v1566
        %v1647 = vpop.f32.mrf.mxu0
        %v1648 = vadd.f32 %v1378, %v1647
        %v1649 = vpop.f32.mrf.mxu0
        %v1650 = vadd.f32 %v1378, %v1649
        %1651 = vdwg.mxu0
        %1652 = vmatpush.bf16.msra.mxu0 0
        %1653 = vmatpush.bf16.msra.mxu0 0
        %1654 = vmatpush.bf16.msra.mxu0 0
        %1655 = vmatpush.bf16.msra.mxu0 0
        %1656 = vmatpush.bf16.msra.mxu0 0
        %1657 = vmatpush.bf16.msra.mxu0 0
        %1658 = vmatpush.bf16.msra.mxu0 %v1523
        %1659 = vmatpush.bf16.msra.mxu0 %v1507
        %1660 = vmatmul.bf16.gmra.mxu0 %v1566
        %v1661 = vpop.f32.mrf.mxu0
        %v1662 = vadd.f32 %v1379, %v1661
        %v1663 = vpop.f32.mrf.mxu0
        %v1664 = vadd.f32 %v1379, %v1663
        %1665 = vdwg.mxu0
        %1666 = vmatpush.bf16.msra.mxu0 0
        %1667 = vmatpush.bf16.msra.mxu0 0
        %1668 = vmatpush.bf16.msra.mxu0 0
        %1669 = vmatpush.bf16.msra.mxu0 0
        %1670 = vmatpush.bf16.msra.mxu0 0
        %1671 = vmatpush.bf16.msra.mxu0 0
        %1672 = vmatpush.bf16.msra.mxu0 %v1524
        %1673 = vmatpush.bf16.msra.mxu0 %v1508
        %1674 = vmatmul.bf16.gmra.mxu0 %v1566
        %v1675 = vpop.f32.mrf.mxu0
        %v1676 = vadd.f32 %v1380, %v1675
        %v1677 = vpop.f32.mrf.mxu0
        %v1678 = vadd.f32 %v1380, %v1677
        %1679 = vdwg.mxu0
        %1680 = vmatpush.bf16.msra.mxu0 0
        %1681 = vmatpush.bf16.msra.mxu0 0
        %1682 = vmatpush.bf16.msra.mxu0 0
        %1683 = vmatpush.bf16.msra.mxu0 0
        %1684 = vmatpush.bf16.msra.mxu0 0
        %1685 = vmatpush.bf16.msra.mxu0 0
        %1686 = vmatpush.bf16.msra.mxu0 %v1525
        %1687 = vmatpush.bf16.msra.mxu0 %v1509
        %1688 = vmatmul.bf16.gmra.mxu0 %v1566
        %v1689 = vpop.f32.mrf.mxu0
        %v1690 = vadd.f32 %v1381, %v1689
        %v1691 = vpop.f32.mrf.mxu0
        %v1692 = vadd.f32 %v1381, %v1691
        %1693 = vdwg.mxu0
        %1694 = vmatpush.bf16.msra.mxu0 0
        %1695 = vmatpush.bf16.msra.mxu0 0
        %1696 = vmatpush.bf16.msra.mxu0 0
        %1697 = vmatpush.bf16.msra.mxu0 0
        %1698 = vmatpush.bf16.msra.mxu0 0
        %1699 = vmatpush.bf16.msra.mxu0 0
        %1700 = vmatpush.bf16.msra.mxu0 %v1526
        %1701 = vmatpush.bf16.msra.mxu0 %v1510
        %1702 = vmatmul.bf16.gmra.mxu0 %v1566
        %v1703 = vpop.f32.mrf.mxu0
        %v1704 = vadd.f32 %v1382, %v1703
        %v1705 = vpop.f32.mrf.mxu0
        %v1706 = vadd.f32 %v1382, %v1705
        %1707 = vdwg.mxu0
        %1708 = vmatpush.bf16.msra.mxu0 0
        %1709 = vmatpush.bf16.msra.mxu0 0
        %1710 = vmatpush.bf16.msra.mxu0 0
        %1711 = vmatpush.bf16.msra.mxu0 0
        %1712 = vmatpush.bf16.msra.mxu0 0
        %1713 = vmatpush.bf16.msra.mxu0 0
        %1714 = vmatpush.bf16.msra.mxu0 %v1527
        %1715 = vmatpush.bf16.msra.mxu0 %v1511
        %1716 = vmatmul.bf16.gmra.mxu0 %v1566
        %v1717 = vpop.f32.mrf.mxu0
        %v1718 = vadd.f32 %v1383, %v1717
        %v1719 = vpop.f32.mrf.mxu0
        %v1720 = vadd.f32 %v1383, %v1719
        %1721 = vdwg.mxu0
        %1722 = vmatpush.bf16.msra.mxu0 0
        %1723 = vmatpush.bf16.msra.mxu0 0
        %1724 = vmatpush.bf16.msra.mxu0 0
        %1725 = vmatpush.bf16.msra.mxu0 0
        %1726 = vmatpush.bf16.msra.mxu0 0
        %1727 = vmatpush.bf16.msra.mxu0 0
        %1728 = vmatpush.bf16.msra.mxu0 %v1528
        %1729 = vmatpush.bf16.msra.mxu0 %v1512
        %1730 = vmatmul.bf16.gmra.mxu0 %v1566
        %v1731 = vpop.f32.mrf.mxu0
        %v1732 = vadd.f32 %v1384, %v1731
        %v1733 = vpop.f32.mrf.mxu0
        %v1734 = vadd.f32 %v1384, %v1733
        %1735 = vdwg.mxu0
        %1736 = vmatpush.bf16.msra.mxu0 0
        %1737 = vmatpush.bf16.msra.mxu0 0
        %1738 = vmatpush.bf16.msra.mxu0 0
        %1739 = vmatpush.bf16.msra.mxu0 0
        %1740 = vmatpush.bf16.msra.mxu0 0
        %1741 = vmatpush.bf16.msra.mxu0 0
        %1742 = vmatpush.bf16.msra.mxu0 %v1529
        %1743 = vmatpush.bf16.msra.mxu0 %v1513
        %1744 = vmatmul.bf16.gmra.mxu0 %v1566
        %v1745 = vpop.f32.mrf.mxu0
        %v1746 = vadd.f32 %v1385, %v1745
        %v1747 = vpop.f32.mrf.mxu0
        %v1748 = vadd.f32 %v1385, %v1747
        %1749 = vdwg.mxu0
        %1750 = vmatpush.bf16.msra.mxu0 0
        %1751 = vmatpush.bf16.msra.mxu0 0
        %1752 = vmatpush.bf16.msra.mxu0 0
        %1753 = vmatpush.bf16.msra.mxu0 0
        %1754 = vmatpush.bf16.msra.mxu0 0
        %1755 = vmatpush.bf16.msra.mxu0 0
        %1756 = vmatpush.bf16.msra.mxu0 %v1530
        %1757 = vmatpush.bf16.msra.mxu0 %v1514
        %1758 = vmatmul.bf16.gmra.mxu0 %v1566
        %v1759 = vpop.f32.mrf.mxu0
        %v1760 = vadd.f32 %v1386, %v1759
        %v1761 = vpop.f32.mrf.mxu0
        %v1762 = vadd.f32 %v1386, %v1761
        %1763 = vdwg.mxu0
        %1764 = vmatpush.bf16.msra.mxu0 0
        %1765 = vmatpush.bf16.msra.mxu0 0
        %1766 = vmatpush.bf16.msra.mxu0 0
        %1767 = vmatpush.bf16.msra.mxu0 0
        %1768 = vmatpush.bf16.msra.mxu0 0
        %1769 = vmatpush.bf16.msra.mxu0 0
        %1770 = vmatpush.bf16.msra.mxu0 %v1531
        %1771 = vmatpush.bf16.msra.mxu0 %v1515
        %1772 = vmatmul.bf16.gmra.mxu0 %v1566
        %v1773 = vpop.f32.mrf.mxu0
        %v1774 = vadd.f32 %v1387, %v1773
        %v1775 = vpop.f32.mrf.mxu0
        %v1776 = vadd.f32 %v1387, %v1775
        %1777 = vdwg.mxu0
        %1778 = vmatpush.bf16.msra.mxu0 0
        %1779 = vmatpush.bf16.msra.mxu0 0
        %1780 = vmatpush.bf16.msra.mxu0 0
        %1781 = vmatpush.bf16.msra.mxu0 0
        %1782 = vmatpush.bf16.msra.mxu0 0
        %1783 = vmatpush.bf16.msra.mxu0 0
        %1784 = vmatpush.bf16.msra.mxu0 %v1532
        %1785 = vmatpush.bf16.msra.mxu0 %v1516
        %1786 = vmatmul.bf16.gmra.mxu0 %v1566
        %v1787 = vpop.f32.mrf.mxu0
        %v1788 = vadd.f32 %v1388, %v1787
        %v1789 = vpop.f32.mrf.mxu0
        %v1790 = vadd.f32 %v1388, %v1789
        %1791 = vdwg.mxu0
        %v1792 = vmax.f32 %v1578, 0.0
        %v1793 = vmax.f32 %v1592, 0.0
        %v1794 = vmax.f32 %v1606, 0.0
        %v1795 = vmax.f32 %v1620, 0.0
        %v1796 = vmax.f32 %v1634, 0.0
        %v1797 = vmax.f32 %v1648, 0.0
        %v1798 = vmax.f32 %v1662, 0.0
        %v1799 = vmax.f32 %v1676, 0.0
        %v1800 = vmax.f32 %v1690, 0.0
        %v1801 = vmax.f32 %v1704, 0.0
        %v1802 = vmax.f32 %v1718, 0.0
        %v1803 = vmax.f32 %v1732, 0.0
        %v1804 = vmax.f32 %v1746, 0.0
        %v1805 = vmax.f32 %v1760, 0.0
        %v1806 = vmax.f32 %v1774, 0.0
        %v1807 = vmax.f32 %v1788, 0.0
        %v1808 = vmax.f32 %v1580, 0.0
        %v1809 = vmax.f32 %v1594, 0.0
        %v1810 = vmax.f32 %v1608, 0.0
        %v1811 = vmax.f32 %v1622, 0.0
        %v1812 = vmax.f32 %v1636, 0.0
        %v1813 = vmax.f32 %v1650, 0.0
        %v1814 = vmax.f32 %v1664, 0.0
        %v1815 = vmax.f32 %v1678, 0.0
        %v1816 = vmax.f32 %v1692, 0.0
        %v1817 = vmax.f32 %v1706, 0.0
        %v1818 = vmax.f32 %v1720, 0.0
        %v1819 = vmax.f32 %v1734, 0.0
        %v1820 = vmax.f32 %v1748, 0.0
        %v1821 = vmax.f32 %v1762, 0.0
        %v1822 = vmax.f32 %v1776, 0.0
        %v1823 = vmax.f32 %v1790, 0.0
        %v1824 = vpack.c.bf16 %v1808, %v1792
        %v1825 = vpack.c.bf16 %v1809, %v1793
        %v1826 = vpack.c.bf16 %v1810, %v1794
        %v1827 = vpack.c.bf16 %v1811, %v1795
        %v1828 = vpack.c.bf16 %v1812, %v1796
        %v1829 = vpack.c.bf16 %v1813, %v1797
        %v1830 = vpack.c.bf16 %v1814, %v1798
        %v1831 = vpack.c.bf16 %v1815, %v1799
        %v1832 = vpack.c.bf16 %v1816, %v1800
        %v1833 = vpack.c.bf16 %v1817, %v1801
        %v1834 = vpack.c.bf16 %v1818, %v1802
        %v1835 = vpack.c.bf16 %v1819, %v1803
        %v1836 = vpack.c.bf16 %v1820, %v1804
        %v1837 = vpack.c.bf16 %v1821, %v1805
        %v1838 = vpack.c.bf16 %v1822, %v1806
        %v1839 = vpack.c.bf16 %v1823, %v1807
        %v1840 = vld [vmem:[%s671] sm:$0xf]
        %v1841 = vld [vmem:[%s671 + $0x4] sm:$0xf]
        %v1842 = vld [vmem:[%s671 + $0x8] sm:$0xf]
        %v1843 = vld [vmem:[%s671 + $0xc] sm:$0xf]
        %v1844 = vld [vmem:[%s671 + $0x10] sm:$0xf]
        %v1845 = vld [vmem:[%s671 + $0x14] sm:$0xf]
        %v1846 = vld [vmem:[%s671 + $0x18] sm:$0xf]
        %v1847 = vld [vmem:[%s671 + $0x1c] sm:$0xf]
        %v1848 = vld [vmem:[%s671 + $0x20] sm:$0xf]
        %v1849 = vld [vmem:[%s671 + $0x24] sm:$0xf]
        %v1850 = vld [vmem:[%s671 + $0x28] sm:$0xf]
        %v1851 = vld [vmem:[%s671 + $0x2c] sm:$0xf]
        %v1852 = vld [vmem:[%s671 + $0x30] sm:$0xf]
        %v1853 = vld [vmem:[%s671 + $0x34] sm:$0xf]
        %v1854 = vld [vmem:[%s671 + $0x38] sm:$0xf]
        %v1855 = vld [vmem:[%s671 + $0x3c] sm:$0xf]
        %v1856 = vld [vmem:[%s671 + $0x40] sm:$0xf]
        %v1857 = vld [vmem:[%s671 + $0x44] sm:$0xf]
        %v1858 = vld [vmem:[%s671 + $0x48] sm:$0xf]
        %v1859 = vld [vmem:[%s671 + $0x4c] sm:$0xf]
        %v1860 = vld [vmem:[%s671 + $0x50] sm:$0xf]
        %v1861 = vld [vmem:[%s671 + $0x54] sm:$0xf]
        %v1862 = vld [vmem:[%s671 + $0x58] sm:$0xf]
        %v1863 = vld [vmem:[%s671 + $0x5c] sm:$0xf]
        %v1864 = vld [vmem:[%s671 + $0x60] sm:$0xf]
        %v1865 = vld [vmem:[%s671 + $0x64] sm:$0xf]
        %v1866 = vld [vmem:[%s671 + $0x68] sm:$0xf]
        %v1867 = vld [vmem:[%s671 + $0x6c] sm:$0xf]
        %v1868 = vld [vmem:[%s671 + $0x70] sm:$0xf]
        %v1869 = vld [vmem:[%s671 + $0x74] sm:$0xf]
        %v1870 = vld [vmem:[%s671 + $0x78] sm:$0xf]
        %v1871 = vld [vmem:[%s671 + $0x7c] sm:$0xf]
        %v1872 = vld [vmem:[%s671 + $0x80] sm:$0xf]
        %v1873 = vld [vmem:[%s671 + $0x84] sm:$0xf]
        %v1874 = vld [vmem:[%s671 + $0x88] sm:$0xf]
        %v1875 = vld [vmem:[%s671 + $0x8c] sm:$0xf]
        %v1876 = vld [vmem:[%s671 + $0x90] sm:$0xf]
        %v1877 = vld [vmem:[%s671 + $0x94] sm:$0xf]
        %v1878 = vld [vmem:[%s671 + $0x98] sm:$0xf]
        %v1879 = vld [vmem:[%s671 + $0x9c] sm:$0xf]
        %v1880 = vld [vmem:[%s671 + $0xa0] sm:$0xf]
        %v1881 = vld [vmem:[%s671 + $0xa4] sm:$0xf]
        %v1882 = vld [vmem:[%s671 + $0xa8] sm:$0xf]
        %v1883 = vld [vmem:[%s671 + $0xac] sm:$0xf]
        %v1884 = vld [vmem:[%s671 + $0xb0] sm:$0xf]
        %v1885 = vld [vmem:[%s671 + $0xb4] sm:$0xf]
        %v1886 = vld [vmem:[%s671 + $0xb8] sm:$0xf]
        %v1887 = vld [vmem:[%s671 + $0xbc] sm:$0xf]
        %v1888 = vld [vmem:[%s671 + $0xc0] sm:$0xf]
        %v1889 = vld [vmem:[%s671 + $0xc4] sm:$0xf]
        %v1890 = vld [vmem:[%s671 + $0xc8] sm:$0xf]
        %v1891 = vld [vmem:[%s671 + $0xcc] sm:$0xf]
        %v1892 = vld [vmem:[%s671 + $0xd0] sm:$0xf]
        %v1893 = vld [vmem:[%s671 + $0xd4] sm:$0xf]
        %v1894 = vld [vmem:[%s671 + $0xd8] sm:$0xf]
        %v1895 = vld [vmem:[%s671 + $0xdc] sm:$0xf]
        %v1896 = vld [vmem:[%s671 + $0xe0] sm:$0xf]
        %v1897 = vld [vmem:[%s671 + $0xe4] sm:$0xf]
        %v1898 = vld [vmem:[%s671 + $0xe8] sm:$0xf]
        %v1899 = vld [vmem:[%s671 + $0xec] sm:$0xf]
        %v1900 = vld [vmem:[%s671 + $0xf0] sm:$0xf]
        %v1901 = vld [vmem:[%s671 + $0xf4] sm:$0xf]
        %v1902 = vld [vmem:[%s671 + $0xf8] sm:$0xf]
        %v1903 = vld [vmem:[%s671 + $0xfc] sm:$0xf]
        %v1904 = vld [vmem:[%s671 + $0x100] sm:$0xf]
        %v1905 = vld [vmem:[%s671 + $0x104] sm:$0xf]
        %v1906 = vld [vmem:[%s671 + $0x108] sm:$0xf]
        %v1907 = vld [vmem:[%s671 + $0x10c] sm:$0xf]
        %v1908 = vld [vmem:[%s671 + $0x110] sm:$0xf]
        %v1909 = vld [vmem:[%s671 + $0x114] sm:$0xf]
        %v1910 = vld [vmem:[%s671 + $0x118] sm:$0xf]
        %v1911 = vld [vmem:[%s671 + $0x11c] sm:$0xf]
        %v1912 = vld [vmem:[%s671 + $0x120] sm:$0xf]
        %v1913 = vld [vmem:[%s671 + $0x124] sm:$0xf]
        %v1914 = vld [vmem:[%s671 + $0x128] sm:$0xf]
        %v1915 = vld [vmem:[%s671 + $0x12c] sm:$0xf]
        %v1916 = vld [vmem:[%s671 + $0x130] sm:$0xf]
        %v1917 = vld [vmem:[%s671 + $0x134] sm:$0xf]
        %v1918 = vld [vmem:[%s671 + $0x138] sm:$0xf]
        %v1919 = vld [vmem:[%s671 + $0x13c] sm:$0xf]
        %v1920 = vld [vmem:[%s671 + $0x140] sm:$0xf]
        %v1921 = vld [vmem:[%s671 + $0x144] sm:$0xf]
        %v1922 = vld [vmem:[%s671 + $0x148] sm:$0xf]
        %v1923 = vld [vmem:[%s671 + $0x14c] sm:$0xf]
        %v1924 = vld [vmem:[%s671 + $0x150] sm:$0xf]
        %v1925 = vld [vmem:[%s671 + $0x154] sm:$0xf]
        %v1926 = vld [vmem:[%s671 + $0x158] sm:$0xf]
        %v1927 = vld [vmem:[%s671 + $0x15c] sm:$0xf]
        %v1928 = vld [vmem:[%s671 + $0x160] sm:$0xf]
        %v1929 = vld [vmem:[%s671 + $0x164] sm:$0xf]
        %v1930 = vld [vmem:[%s671 + $0x168] sm:$0xf]
        %v1931 = vld [vmem:[%s671 + $0x16c] sm:$0xf]
        %v1932 = vld [vmem:[%s671 + $0x170] sm:$0xf]
        %v1933 = vld [vmem:[%s671 + $0x174] sm:$0xf]
        %v1934 = vld [vmem:[%s671 + $0x178] sm:$0xf]
        %v1935 = vld [vmem:[%s671 + $0x17c] sm:$0xf]
        %v1936 = vld [vmem:[%s671 + $0x180] sm:$0xf]
        %v1937 = vld [vmem:[%s671 + $0x184] sm:$0xf]
        %v1938 = vld [vmem:[%s671 + $0x188] sm:$0xf]
        %v1939 = vld [vmem:[%s671 + $0x18c] sm:$0xf]
        %v1940 = vld [vmem:[%s671 + $0x190] sm:$0xf]
        %v1941 = vld [vmem:[%s671 + $0x194] sm:$0xf]
        %v1942 = vld [vmem:[%s671 + $0x198] sm:$0xf]
        %v1943 = vld [vmem:[%s671 + $0x19c] sm:$0xf]
        %v1944 = vld [vmem:[%s671 + $0x1a0] sm:$0xf]
        %v1945 = vld [vmem:[%s671 + $0x1a4] sm:$0xf]
        %v1946 = vld [vmem:[%s671 + $0x1a8] sm:$0xf]
        %v1947 = vld [vmem:[%s671 + $0x1ac] sm:$0xf]
        %v1948 = vld [vmem:[%s671 + $0x1b0] sm:$0xf]
        %v1949 = vld [vmem:[%s671 + $0x1b4] sm:$0xf]
        %v1950 = vld [vmem:[%s671 + $0x1b8] sm:$0xf]
        %v1951 = vld [vmem:[%s671 + $0x1bc] sm:$0xf]
        %v1952 = vld [vmem:[%s671 + $0x1c0] sm:$0xf]
        %v1953 = vld [vmem:[%s671 + $0x1c4] sm:$0xf]
        %v1954 = vld [vmem:[%s671 + $0x1c8] sm:$0xf]
        %v1955 = vld [vmem:[%s671 + $0x1cc] sm:$0xf]
        %v1956 = vld [vmem:[%s671 + $0x1d0] sm:$0xf]
        %v1957 = vld [vmem:[%s671 + $0x1d4] sm:$0xf]
        %v1958 = vld [vmem:[%s671 + $0x1d8] sm:$0xf]
        %v1959 = vld [vmem:[%s671 + $0x1dc] sm:$0xf]
        %v1960 = vld [vmem:[%s671 + $0x1e0] sm:$0xf]
        %v1961 = vld [vmem:[%s671 + $0x1e4] sm:$0xf]
        %v1962 = vld [vmem:[%s671 + $0x1e8] sm:$0xf]
        %v1963 = vld [vmem:[%s671 + $0x1ec] sm:$0xf]
        %v1964 = vld [vmem:[%s671 + $0x1f0] sm:$0xf]
        %v1965 = vld [vmem:[%s671 + $0x1f4] sm:$0xf]
        %v1966 = vld [vmem:[%s671 + $0x1f8] sm:$0xf]
        %v1967 = vld [vmem:[%s671 + $0x1fc] sm:$0xf]
        %v1968 = vld [vmem:[%s671 + $0x200] sm:$0xf]
        %v1969 = vld [vmem:[%s671 + $0x204] sm:$0xf]
        %v1970 = vld [vmem:[%s671 + $0x208] sm:$0xf]
        %v1971 = vld [vmem:[%s671 + $0x20c] sm:$0xf]
        %v1972 = vld [vmem:[%s671 + $0x210] sm:$0xf]
        %v1973 = vld [vmem:[%s671 + $0x214] sm:$0xf]
        %v1974 = vld [vmem:[%s671 + $0x218] sm:$0xf]
        %v1975 = vld [vmem:[%s671 + $0x21c] sm:$0xf]
        %v1976 = vld [vmem:[%s671 + $0x220] sm:$0xf]
        %v1977 = vld [vmem:[%s671 + $0x224] sm:$0xf]
        %v1978 = vld [vmem:[%s671 + $0x228] sm:$0xf]
        %v1979 = vld [vmem:[%s671 + $0x22c] sm:$0xf]
        %v1980 = vld [vmem:[%s671 + $0x230] sm:$0xf]
        %v1981 = vld [vmem:[%s671 + $0x234] sm:$0xf]
        %v1982 = vld [vmem:[%s671 + $0x238] sm:$0xf]
        %v1983 = vld [vmem:[%s671 + $0x23c] sm:$0xf]
        %v1984 = vld [vmem:[%s671 + $0x240] sm:$0xf]
        %v1985 = vld [vmem:[%s671 + $0x244] sm:$0xf]
        %v1986 = vld [vmem:[%s671 + $0x248] sm:$0xf]
        %v1987 = vld [vmem:[%s671 + $0x24c] sm:$0xf]
        %v1988 = vld [vmem:[%s671 + $0x250] sm:$0xf]
        %v1989 = vld [vmem:[%s671 + $0x254] sm:$0xf]
        %v1990 = vld [vmem:[%s671 + $0x258] sm:$0xf]
        %v1991 = vld [vmem:[%s671 + $0x25c] sm:$0xf]
        %v1992 = vld [vmem:[%s671 + $0x260] sm:$0xf]
        %v1993 = vld [vmem:[%s671 + $0x264] sm:$0xf]
        %v1994 = vld [vmem:[%s671 + $0x268] sm:$0xf]
        %v1995 = vld [vmem:[%s671 + $0x26c] sm:$0xf]
        %v1996 = vld [vmem:[%s671 + $0x270] sm:$0xf]
        %v1997 = vld [vmem:[%s671 + $0x274] sm:$0xf]
        %v1998 = vld [vmem:[%s671 + $0x278] sm:$0xf]
        %v1999 = vld [vmem:[%s671 + $0x27c] sm:$0xf]
        %v2000 = vld [vmem:[%s671 + $0x280] sm:$0xf]
        %v2001 = vld [vmem:[%s671 + $0x284] sm:$0xf]
        %v2002 = vld [vmem:[%s671 + $0x288] sm:$0xf]
        %v2003 = vld [vmem:[%s671 + $0x28c] sm:$0xf]
        %v2004 = vld [vmem:[%s671 + $0x290] sm:$0xf]
        %v2005 = vld [vmem:[%s671 + $0x294] sm:$0xf]
        %v2006 = vld [vmem:[%s671 + $0x298] sm:$0xf]
        %v2007 = vld [vmem:[%s671 + $0x29c] sm:$0xf]
        %v2008 = vld [vmem:[%s671 + $0x2a0] sm:$0xf]
        %v2009 = vld [vmem:[%s671 + $0x2a4] sm:$0xf]
        %v2010 = vld [vmem:[%s671 + $0x2a8] sm:$0xf]
        %v2011 = vld [vmem:[%s671 + $0x2ac] sm:$0xf]
        %v2012 = vld [vmem:[%s671 + $0x2b0] sm:$0xf]
        %v2013 = vld [vmem:[%s671 + $0x2b4] sm:$0xf]
        %v2014 = vld [vmem:[%s671 + $0x2b8] sm:$0xf]
        %v2015 = vld [vmem:[%s671 + $0x2bc] sm:$0xf]
        %v2016 = vld [vmem:[%s671 + $0x2c0] sm:$0xf]
        %v2017 = vld [vmem:[%s671 + $0x2c4] sm:$0xf]
        %v2018 = vld [vmem:[%s671 + $0x2c8] sm:$0xf]
        %v2019 = vld [vmem:[%s671 + $0x2cc] sm:$0xf]
        %v2020 = vld [vmem:[%s671 + $0x2d0] sm:$0xf]
        %v2021 = vld [vmem:[%s671 + $0x2d4] sm:$0xf]
        %v2022 = vld [vmem:[%s671 + $0x2d8] sm:$0xf]
        %v2023 = vld [vmem:[%s671 + $0x2dc] sm:$0xf]
        %v2024 = vld [vmem:[%s671 + $0x2e0] sm:$0xf]
        %v2025 = vld [vmem:[%s671 + $0x2e4] sm:$0xf]
        %v2026 = vld [vmem:[%s671 + $0x2e8] sm:$0xf]
        %v2027 = vld [vmem:[%s671 + $0x2ec] sm:$0xf]
        %v2028 = vld [vmem:[%s671 + $0x2f0] sm:$0xf]
        %v2029 = vld [vmem:[%s671 + $0x2f4] sm:$0xf]
        %v2030 = vld [vmem:[%s671 + $0x2f8] sm:$0xf]
        %v2031 = vld [vmem:[%s671 + $0x2fc] sm:$0xf]
        %v2032 = vld [vmem:[%s671 + $0x300] sm:$0xf]
        %v2033 = vld [vmem:[%s671 + $0x304] sm:$0xf]
        %v2034 = vld [vmem:[%s671 + $0x308] sm:$0xf]
        %v2035 = vld [vmem:[%s671 + $0x30c] sm:$0xf]
        %v2036 = vld [vmem:[%s671 + $0x310] sm:$0xf]
        %v2037 = vld [vmem:[%s671 + $0x314] sm:$0xf]
        %v2038 = vld [vmem:[%s671 + $0x318] sm:$0xf]
        %v2039 = vld [vmem:[%s671 + $0x31c] sm:$0xf]
        %v2040 = vld [vmem:[%s671 + $0x320] sm:$0xf]
        %v2041 = vld [vmem:[%s671 + $0x324] sm:$0xf]
        %v2042 = vld [vmem:[%s671 + $0x328] sm:$0xf]
        %v2043 = vld [vmem:[%s671 + $0x32c] sm:$0xf]
        %v2044 = vld [vmem:[%s671 + $0x330] sm:$0xf]
        %v2045 = vld [vmem:[%s671 + $0x334] sm:$0xf]
        %v2046 = vld [vmem:[%s671 + $0x338] sm:$0xf]
        %v2047 = vld [vmem:[%s671 + $0x33c] sm:$0xf]
        %v2048 = vld [vmem:[%s671 + $0x340] sm:$0xf]
        %v2049 = vld [vmem:[%s671 + $0x344] sm:$0xf]
        %v2050 = vld [vmem:[%s671 + $0x348] sm:$0xf]
        %v2051 = vld [vmem:[%s671 + $0x34c] sm:$0xf]
        %v2052 = vld [vmem:[%s671 + $0x350] sm:$0xf]
        %v2053 = vld [vmem:[%s671 + $0x354] sm:$0xf]
        %v2054 = vld [vmem:[%s671 + $0x358] sm:$0xf]
        %v2055 = vld [vmem:[%s671 + $0x35c] sm:$0xf]
        %v2056 = vld [vmem:[%s671 + $0x360] sm:$0xf]
        %v2057 = vld [vmem:[%s671 + $0x364] sm:$0xf]
        %v2058 = vld [vmem:[%s671 + $0x368] sm:$0xf]
        %v2059 = vld [vmem:[%s671 + $0x36c] sm:$0xf]
        %v2060 = vld [vmem:[%s671 + $0x370] sm:$0xf]
        %v2061 = vld [vmem:[%s671 + $0x374] sm:$0xf]
        %v2062 = vld [vmem:[%s671 + $0x378] sm:$0xf]
        %v2063 = vld [vmem:[%s671 + $0x37c] sm:$0xf]
        %v2064 = vld [vmem:[%s671 + $0x380] sm:$0xf]
        %v2065 = vld [vmem:[%s671 + $0x384] sm:$0xf]
        %v2066 = vld [vmem:[%s671 + $0x388] sm:$0xf]
        %v2067 = vld [vmem:[%s671 + $0x38c] sm:$0xf]
        %v2068 = vld [vmem:[%s671 + $0x390] sm:$0xf]
        %v2069 = vld [vmem:[%s671 + $0x394] sm:$0xf]
        %v2070 = vld [vmem:[%s671 + $0x398] sm:$0xf]
        %v2071 = vld [vmem:[%s671 + $0x39c] sm:$0xf]
        %v2072 = vld [vmem:[%s671 + $0x3a0] sm:$0xf]
        %v2073 = vld [vmem:[%s671 + $0x3a4] sm:$0xf]
        %v2074 = vld [vmem:[%s671 + $0x3a8] sm:$0xf]
        %v2075 = vld [vmem:[%s671 + $0x3ac] sm:$0xf]
        %v2076 = vld [vmem:[%s671 + $0x3b0] sm:$0xf]
        %v2077 = vld [vmem:[%s671 + $0x3b4] sm:$0xf]
        %v2078 = vld [vmem:[%s671 + $0x3b8] sm:$0xf]
        %v2079 = vld [vmem:[%s671 + $0x3bc] sm:$0xf]
        %v2080 = vld [vmem:[%s671 + $0x3c0] sm:$0xf]
        %v2081 = vld [vmem:[%s671 + $0x3c4] sm:$0xf]
        %v2082 = vld [vmem:[%s671 + $0x3c8] sm:$0xf]
        %v2083 = vld [vmem:[%s671 + $0x3cc] sm:$0xf]
        %v2084 = vld [vmem:[%s671 + $0x3d0] sm:$0xf]
        %v2085 = vld [vmem:[%s671 + $0x3d4] sm:$0xf]
        %v2086 = vld [vmem:[%s671 + $0x3d8] sm:$0xf]
        %v2087 = vld [vmem:[%s671 + $0x3dc] sm:$0xf]
        %v2088 = vld [vmem:[%s671 + $0x3e0] sm:$0xf]
        %v2089 = vld [vmem:[%s671 + $0x3e4] sm:$0xf]
        %v2090 = vld [vmem:[%s671 + $0x3e8] sm:$0xf]
        %v2091 = vld [vmem:[%s671 + $0x3ec] sm:$0xf]
        %v2092 = vld [vmem:[%s671 + $0x3f0] sm:$0xf]
        %v2093 = vld [vmem:[%s671 + $0x3f4] sm:$0xf]
        %v2094 = vld [vmem:[%s671 + $0x3f8] sm:$0xf]
        %v2095 = vld [vmem:[%s671 + $0x3fc] sm:$0xf]
        %v2096 = vld [vmem:[%s674] sm:$0x1]
        %v2098 = vperm.slane %v2096, 0
        %v2356 = vunpack.c.l.b16 %v1840
        %v2357 = vunpack.c.l.b16 %v1841
        %v2358 = vunpack.c.l.b16 %v1842
        %v2359 = vunpack.c.l.b16 %v1843
        %v2360 = vunpack.c.l.b16 %v1844
        %v2361 = vunpack.c.l.b16 %v1845
        %v2362 = vunpack.c.l.b16 %v1846
        %v2363 = vunpack.c.l.b16 %v1847
        %v2364 = vunpack.c.l.b16 %v1848
        %v2365 = vunpack.c.l.b16 %v1849
        %v2366 = vunpack.c.l.b16 %v1850
        %v2367 = vunpack.c.l.b16 %v1851
        %v2368 = vunpack.c.l.b16 %v1852
        %v2369 = vunpack.c.l.b16 %v1853
        %v2370 = vunpack.c.l.b16 %v1854
        %v2371 = vunpack.c.l.b16 %v1855
        %v2372 = vunpack.c.l.b16 %v1856
        %v2373 = vunpack.c.l.b16 %v1857
        %v2374 = vunpack.c.l.b16 %v1858
        %v2375 = vunpack.c.l.b16 %v1859
        %v2376 = vunpack.c.l.b16 %v1860
        %v2377 = vunpack.c.l.b16 %v1861
        %v2378 = vunpack.c.l.b16 %v1862
        %v2379 = vunpack.c.l.b16 %v1863
        %v2380 = vunpack.c.l.b16 %v1864
        %v2381 = vunpack.c.l.b16 %v1865
        %v2382 = vunpack.c.l.b16 %v1866
        %v2383 = vunpack.c.l.b16 %v1867
        %v2384 = vunpack.c.l.b16 %v1868
        %v2385 = vunpack.c.l.b16 %v1869
        %v2386 = vunpack.c.l.b16 %v1870
        %v2387 = vunpack.c.l.b16 %v1871
        %v2388 = vunpack.c.l.b16 %v1872
        %v2389 = vunpack.c.l.b16 %v1873
        %v2390 = vunpack.c.l.b16 %v1874
        %v2391 = vunpack.c.l.b16 %v1875
        %v2392 = vunpack.c.l.b16 %v1876
        %v2393 = vunpack.c.l.b16 %v1877
        %v2394 = vunpack.c.l.b16 %v1878
        %v2395 = vunpack.c.l.b16 %v1879
        %v2396 = vunpack.c.l.b16 %v1880
        %v2397 = vunpack.c.l.b16 %v1881
        %v2398 = vunpack.c.l.b16 %v1882
        %v2399 = vunpack.c.l.b16 %v1883
        %v2400 = vunpack.c.l.b16 %v1884
        %v2401 = vunpack.c.l.b16 %v1885
        %v2402 = vunpack.c.l.b16 %v1886
        %v2403 = vunpack.c.l.b16 %v1887
        %v2404 = vunpack.c.l.b16 %v1888
        %v2405 = vunpack.c.l.b16 %v1889
        %v2406 = vunpack.c.l.b16 %v1890
        %v2407 = vunpack.c.l.b16 %v1891
        %v2408 = vunpack.c.l.b16 %v1892
        %v2409 = vunpack.c.l.b16 %v1893
        %v2410 = vunpack.c.l.b16 %v1894
        %v2411 = vunpack.c.l.b16 %v1895
        %v2412 = vunpack.c.l.b16 %v1896
        %v2413 = vunpack.c.l.b16 %v1897
        %v2414 = vunpack.c.l.b16 %v1898
        %v2415 = vunpack.c.l.b16 %v1899
        %v2416 = vunpack.c.l.b16 %v1900
        %v2417 = vunpack.c.l.b16 %v1901
        %v2418 = vunpack.c.l.b16 %v1902
        %v2419 = vunpack.c.l.b16 %v1903
        %v2420 = vunpack.c.l.b16 %v1904
        %v2421 = vunpack.c.l.b16 %v1905
        %v2422 = vunpack.c.l.b16 %v1906
        %v2423 = vunpack.c.l.b16 %v1907
        %v2424 = vunpack.c.l.b16 %v1908
        %v2425 = vunpack.c.l.b16 %v1909
        %v2426 = vunpack.c.l.b16 %v1910
        %v2427 = vunpack.c.l.b16 %v1911
        %v2428 = vunpack.c.l.b16 %v1912
        %v2429 = vunpack.c.l.b16 %v1913
        %v2430 = vunpack.c.l.b16 %v1914
        %v2431 = vunpack.c.l.b16 %v1915
        %v2432 = vunpack.c.l.b16 %v1916
        %v2433 = vunpack.c.l.b16 %v1917
        %v2434 = vunpack.c.l.b16 %v1918
        %v2435 = vunpack.c.l.b16 %v1919
        %v2436 = vunpack.c.l.b16 %v1920
        %v2437 = vunpack.c.l.b16 %v1921
        %v2438 = vunpack.c.l.b16 %v1922
        %v2439 = vunpack.c.l.b16 %v1923
        %v2440 = vunpack.c.l.b16 %v1924
        %v2441 = vunpack.c.l.b16 %v1925
        %v2442 = vunpack.c.l.b16 %v1926
        %v2443 = vunpack.c.l.b16 %v1927
        %v2444 = vunpack.c.l.b16 %v1928
        %v2445 = vunpack.c.l.b16 %v1929
        %v2446 = vunpack.c.l.b16 %v1930
        %v2447 = vunpack.c.l.b16 %v1931
        %v2448 = vunpack.c.l.b16 %v1932
        %v2449 = vunpack.c.l.b16 %v1933
        %v2450 = vunpack.c.l.b16 %v1934
        %v2451 = vunpack.c.l.b16 %v1935
        %v2452 = vunpack.c.l.b16 %v1936
        %v2453 = vunpack.c.l.b16 %v1937
        %v2454 = vunpack.c.l.b16 %v1938
        %v2455 = vunpack.c.l.b16 %v1939
        %v2456 = vunpack.c.l.b16 %v1940
        %v2457 = vunpack.c.l.b16 %v1941
        %v2458 = vunpack.c.l.b16 %v1942
        %v2459 = vunpack.c.l.b16 %v1943
        %v2460 = vunpack.c.l.b16 %v1944
        %v2461 = vunpack.c.l.b16 %v1945
        %v2462 = vunpack.c.l.b16 %v1946
        %v2463 = vunpack.c.l.b16 %v1947
        %v2464 = vunpack.c.l.b16 %v1948
        %v2465 = vunpack.c.l.b16 %v1949
        %v2466 = vunpack.c.l.b16 %v1950
        %v2467 = vunpack.c.l.b16 %v1951
        %v2468 = vunpack.c.l.b16 %v1952
        %v2469 = vunpack.c.l.b16 %v1953
        %v2470 = vunpack.c.l.b16 %v1954
        %v2471 = vunpack.c.l.b16 %v1955
        %v2472 = vunpack.c.l.b16 %v1956
        %v2473 = vunpack.c.l.b16 %v1957
        %v2474 = vunpack.c.l.b16 %v1958
        %v2475 = vunpack.c.l.b16 %v1959
        %v2476 = vunpack.c.l.b16 %v1960
        %v2477 = vunpack.c.l.b16 %v1961
        %v2478 = vunpack.c.l.b16 %v1962
        %v2479 = vunpack.c.l.b16 %v1963
        %v2480 = vunpack.c.l.b16 %v1964
        %v2481 = vunpack.c.l.b16 %v1965
        %v2482 = vunpack.c.l.b16 %v1966
        %v2483 = vunpack.c.l.b16 %v1967
        %v2484 = vunpack.c.l.b16 %v1968
        %v2485 = vunpack.c.l.b16 %v1969
        %v2486 = vunpack.c.l.b16 %v1970
        %v2487 = vunpack.c.l.b16 %v1971
        %v2488 = vunpack.c.l.b16 %v1972
        %v2489 = vunpack.c.l.b16 %v1973
        %v2490 = vunpack.c.l.b16 %v1974
        %v2491 = vunpack.c.l.b16 %v1975
        %v2492 = vunpack.c.l.b16 %v1976
        %v2493 = vunpack.c.l.b16 %v1977
        %v2494 = vunpack.c.l.b16 %v1978
        %v2495 = vunpack.c.l.b16 %v1979
        %v2496 = vunpack.c.l.b16 %v1980
        %v2497 = vunpack.c.l.b16 %v1981
        %v2498 = vunpack.c.l.b16 %v1982
        %v2499 = vunpack.c.l.b16 %v1983
        %v2500 = vunpack.c.l.b16 %v1984
        %v2501 = vunpack.c.l.b16 %v1985
        %v2502 = vunpack.c.l.b16 %v1986
        %v2503 = vunpack.c.l.b16 %v1987
        %v2504 = vunpack.c.l.b16 %v1988
        %v2505 = vunpack.c.l.b16 %v1989
        %v2506 = vunpack.c.l.b16 %v1990
        %v2507 = vunpack.c.l.b16 %v1991
        %v2508 = vunpack.c.l.b16 %v1992
        %v2509 = vunpack.c.l.b16 %v1993
        %v2510 = vunpack.c.l.b16 %v1994
        %v2511 = vunpack.c.l.b16 %v1995
        %v2512 = vunpack.c.l.b16 %v1996
        %v2513 = vunpack.c.l.b16 %v1997
        %v2514 = vunpack.c.l.b16 %v1998
        %v2515 = vunpack.c.l.b16 %v1999
        %v2516 = vunpack.c.l.b16 %v2000
        %v2517 = vunpack.c.l.b16 %v2001
        %v2518 = vunpack.c.l.b16 %v2002
        %v2519 = vunpack.c.l.b16 %v2003
        %v2520 = vunpack.c.l.b16 %v2004
        %v2521 = vunpack.c.l.b16 %v2005
        %v2522 = vunpack.c.l.b16 %v2006
        %v2523 = vunpack.c.l.b16 %v2007
        %v2524 = vunpack.c.l.b16 %v2008
        %v2525 = vunpack.c.l.b16 %v2009
        %v2526 = vunpack.c.l.b16 %v2010
        %v2527 = vunpack.c.l.b16 %v2011
        %v2528 = vunpack.c.l.b16 %v2012
        %v2529 = vunpack.c.l.b16 %v2013
        %v2530 = vunpack.c.l.b16 %v2014
        %v2531 = vunpack.c.l.b16 %v2015
        %v2532 = vunpack.c.l.b16 %v2016
        %v2533 = vunpack.c.l.b16 %v2017
        %v2534 = vunpack.c.l.b16 %v2018
        %v2535 = vunpack.c.l.b16 %v2019
        %v2536 = vunpack.c.l.b16 %v2020
        %v2537 = vunpack.c.l.b16 %v2021
        %v2538 = vunpack.c.l.b16 %v2022
        %v2539 = vunpack.c.l.b16 %v2023
        %v2540 = vunpack.c.l.b16 %v2024
        %v2541 = vunpack.c.l.b16 %v2025
        %v2542 = vunpack.c.l.b16 %v2026
        %v2543 = vunpack.c.l.b16 %v2027
        %v2544 = vunpack.c.l.b16 %v2028
        %v2545 = vunpack.c.l.b16 %v2029
        %v2546 = vunpack.c.l.b16 %v2030
        %v2547 = vunpack.c.l.b16 %v2031
        %v2548 = vunpack.c.l.b16 %v2032
        %v2549 = vunpack.c.l.b16 %v2033
        %v2550 = vunpack.c.l.b16 %v2034
        %v2551 = vunpack.c.l.b16 %v2035
        %v2552 = vunpack.c.l.b16 %v2036
        %v2553 = vunpack.c.l.b16 %v2037
        %v2554 = vunpack.c.l.b16 %v2038
        %v2555 = vunpack.c.l.b16 %v2039
        %v2556 = vunpack.c.l.b16 %v2040
        %v2557 = vunpack.c.l.b16 %v2041
        %v2558 = vunpack.c.l.b16 %v2042
        %v2559 = vunpack.c.l.b16 %v2043
        %v2560 = vunpack.c.l.b16 %v2044
        %v2561 = vunpack.c.l.b16 %v2045
        %v2562 = vunpack.c.l.b16 %v2046
        %v2563 = vunpack.c.l.b16 %v2047
        %v2564 = vunpack.c.l.b16 %v2048
        %v2565 = vunpack.c.l.b16 %v2049
        %v2566 = vunpack.c.l.b16 %v2050
        %v2567 = vunpack.c.l.b16 %v2051
        %v2568 = vunpack.c.l.b16 %v2052
        %v2569 = vunpack.c.l.b16 %v2053
        %v2570 = vunpack.c.l.b16 %v2054
        %v2571 = vunpack.c.l.b16 %v2055
        %v2572 = vunpack.c.l.b16 %v2056
        %v2573 = vunpack.c.l.b16 %v2057
        %v2574 = vunpack.c.l.b16 %v2058
        %v2575 = vunpack.c.l.b16 %v2059
        %v2576 = vunpack.c.l.b16 %v2060
        %v2577 = vunpack.c.l.b16 %v2061
        %v2578 = vunpack.c.l.b16 %v2062
        %v2579 = vunpack.c.l.b16 %v2063
        %v2580 = vunpack.c.l.b16 %v2064
        %v2581 = vunpack.c.l.b16 %v2065
        %v2582 = vunpack.c.l.b16 %v2066
        %v2583 = vunpack.c.l.b16 %v2067
        %v2584 = vunpack.c.l.b16 %v2068
        %v2585 = vunpack.c.l.b16 %v2069
        %v2586 = vunpack.c.l.b16 %v2070
        %v2587 = vunpack.c.l.b16 %v2071
        %v2588 = vunpack.c.l.b16 %v2072
        %v2589 = vunpack.c.l.b16 %v2073
        %v2590 = vunpack.c.l.b16 %v2074
        %v2591 = vunpack.c.l.b16 %v2075
        %v2592 = vunpack.c.l.b16 %v2076
        %v2593 = vunpack.c.l.b16 %v2077
        %v2594 = vunpack.c.l.b16 %v2078
        %v2595 = vunpack.c.l.b16 %v2079
        %v2596 = vunpack.c.l.b16 %v2080
        %v2597 = vunpack.c.l.b16 %v2081
        %v2598 = vunpack.c.l.b16 %v2082
        %v2599 = vunpack.c.l.b16 %v2083
        %v2600 = vunpack.c.l.b16 %v2084
        %v2601 = vunpack.c.l.b16 %v2085
        %v2602 = vunpack.c.l.b16 %v2086
        %v2603 = vunpack.c.l.b16 %v2087
        %v2604 = vunpack.c.l.b16 %v2088
        %v2605 = vunpack.c.l.b16 %v2089
        %v2606 = vunpack.c.l.b16 %v2090
        %v2607 = vunpack.c.l.b16 %v2091
        %v2608 = vunpack.c.l.b16 %v2092
        %v2609 = vunpack.c.l.b16 %v2093
        %v2610 = vunpack.c.l.b16 %v2094
        %v2611 = vunpack.c.l.b16 %v2095
        %v2612 = vpack.c.b16 %v2357, %v2356
        %v2613 = vpack.c.b16 %v2359, %v2358
        %v2614 = vpack.c.b16 %v2361, %v2360
        %v2615 = vpack.c.b16 %v2363, %v2362
        %v2616 = vpack.c.b16 %v2365, %v2364
        %v2617 = vpack.c.b16 %v2367, %v2366
        %v2618 = vpack.c.b16 %v2369, %v2368
        %v2619 = vpack.c.b16 %v2371, %v2370
        %v2620 = vpack.c.b16 %v2373, %v2372
        %v2621 = vpack.c.b16 %v2375, %v2374
        %v2622 = vpack.c.b16 %v2377, %v2376
        %v2623 = vpack.c.b16 %v2379, %v2378
        %v2624 = vpack.c.b16 %v2381, %v2380
        %v2625 = vpack.c.b16 %v2383, %v2382
        %v2626 = vpack.c.b16 %v2385, %v2384
        %v2627 = vpack.c.b16 %v2387, %v2386
        %v2628 = vpack.c.b16 %v2389, %v2388
        %v2629 = vpack.c.b16 %v2391, %v2390
        %v2630 = vpack.c.b16 %v2393, %v2392
        %v2631 = vpack.c.b16 %v2395, %v2394
        %v2632 = vpack.c.b16 %v2397, %v2396
        %v2633 = vpack.c.b16 %v2399, %v2398
        %v2634 = vpack.c.b16 %v2401, %v2400
        %v2635 = vpack.c.b16 %v2403, %v2402
        %v2636 = vpack.c.b16 %v2405, %v2404
        %v2637 = vpack.c.b16 %v2407, %v2406
        %v2638 = vpack.c.b16 %v2409, %v2408
        %v2639 = vpack.c.b16 %v2411, %v2410
        %v2640 = vpack.c.b16 %v2413, %v2412
        %v2641 = vpack.c.b16 %v2415, %v2414
        %v2642 = vpack.c.b16 %v2417, %v2416
        %v2643 = vpack.c.b16 %v2419, %v2418
        %v2644 = vpack.c.b16 %v2421, %v2420
        %v2645 = vpack.c.b16 %v2423, %v2422
        %v2646 = vpack.c.b16 %v2425, %v2424
        %v2647 = vpack.c.b16 %v2427, %v2426
        %v2648 = vpack.c.b16 %v2429, %v2428
        %v2649 = vpack.c.b16 %v2431, %v2430
        %v2650 = vpack.c.b16 %v2433, %v2432
        %v2651 = vpack.c.b16 %v2435, %v2434
        %v2652 = vpack.c.b16 %v2437, %v2436
        %v2653 = vpack.c.b16 %v2439, %v2438
        %v2654 = vpack.c.b16 %v2441, %v2440
        %v2655 = vpack.c.b16 %v2443, %v2442
        %v2656 = vpack.c.b16 %v2445, %v2444
        %v2657 = vpack.c.b16 %v2447, %v2446
        %v2658 = vpack.c.b16 %v2449, %v2448
        %v2659 = vpack.c.b16 %v2451, %v2450
        %v2660 = vpack.c.b16 %v2453, %v2452
        %v2661 = vpack.c.b16 %v2455, %v2454
        %v2662 = vpack.c.b16 %v2457, %v2456
        %v2663 = vpack.c.b16 %v2459, %v2458
        %v2664 = vpack.c.b16 %v2461, %v2460
        %v2665 = vpack.c.b16 %v2463, %v2462
        %v2666 = vpack.c.b16 %v2465, %v2464
        %v2667 = vpack.c.b16 %v2467, %v2466
        %v2668 = vpack.c.b16 %v2469, %v2468
        %v2669 = vpack.c.b16 %v2471, %v2470
        %v2670 = vpack.c.b16 %v2473, %v2472
        %v2671 = vpack.c.b16 %v2475, %v2474
        %v2672 = vpack.c.b16 %v2477, %v2476
        %v2673 = vpack.c.b16 %v2479, %v2478
        %v2674 = vpack.c.b16 %v2481, %v2480
        %v2675 = vpack.c.b16 %v2483, %v2482
        %v2676 = vpack.c.b16 %v2485, %v2484
        %v2677 = vpack.c.b16 %v2487, %v2486
        %v2678 = vpack.c.b16 %v2489, %v2488
        %v2679 = vpack.c.b16 %v2491, %v2490
        %v2680 = vpack.c.b16 %v2493, %v2492
        %v2681 = vpack.c.b16 %v2495, %v2494
        %v2682 = vpack.c.b16 %v2497, %v2496
        %v2683 = vpack.c.b16 %v2499, %v2498
        %v2684 = vpack.c.b16 %v2501, %v2500
        %v2685 = vpack.c.b16 %v2503, %v2502
        %v2686 = vpack.c.b16 %v2505, %v2504
        %v2687 = vpack.c.b16 %v2507, %v2506
        %v2688 = vpack.c.b16 %v2509, %v2508
        %v2689 = vpack.c.b16 %v2511, %v2510
        %v2690 = vpack.c.b16 %v2513, %v2512
        %v2691 = vpack.c.b16 %v2515, %v2514
        %v2692 = vpack.c.b16 %v2517, %v2516
        %v2693 = vpack.c.b16 %v2519, %v2518
        %v2694 = vpack.c.b16 %v2521, %v2520
        %v2695 = vpack.c.b16 %v2523, %v2522
        %v2696 = vpack.c.b16 %v2525, %v2524
        %v2697 = vpack.c.b16 %v2527, %v2526
        %v2698 = vpack.c.b16 %v2529, %v2528
        %v2699 = vpack.c.b16 %v2531, %v2530
        %v2700 = vpack.c.b16 %v2533, %v2532
        %v2701 = vpack.c.b16 %v2535, %v2534
        %v2702 = vpack.c.b16 %v2537, %v2536
        %v2703 = vpack.c.b16 %v2539, %v2538
        %v2704 = vpack.c.b16 %v2541, %v2540
        %v2705 = vpack.c.b16 %v2543, %v2542
        %v2706 = vpack.c.b16 %v2545, %v2544
        %v2707 = vpack.c.b16 %v2547, %v2546
        %v2708 = vpack.c.b16 %v2549, %v2548
        %v2709 = vpack.c.b16 %v2551, %v2550
        %v2710 = vpack.c.b16 %v2553, %v2552
        %v2711 = vpack.c.b16 %v2555, %v2554
        %v2712 = vpack.c.b16 %v2557, %v2556
        %v2713 = vpack.c.b16 %v2559, %v2558
        %v2714 = vpack.c.b16 %v2561, %v2560
        %v2715 = vpack.c.b16 %v2563, %v2562
        %v2716 = vpack.c.b16 %v2565, %v2564
        %v2717 = vpack.c.b16 %v2567, %v2566
        %v2718 = vpack.c.b16 %v2569, %v2568
        %v2719 = vpack.c.b16 %v2571, %v2570
        %v2720 = vpack.c.b16 %v2573, %v2572
        %v2721 = vpack.c.b16 %v2575, %v2574
        %v2722 = vpack.c.b16 %v2577, %v2576
        %v2723 = vpack.c.b16 %v2579, %v2578
        %v2724 = vpack.c.b16 %v2581, %v2580
        %v2725 = vpack.c.b16 %v2583, %v2582
        %v2726 = vpack.c.b16 %v2585, %v2584
        %v2727 = vpack.c.b16 %v2587, %v2586
        %v2728 = vpack.c.b16 %v2589, %v2588
        %v2729 = vpack.c.b16 %v2591, %v2590
        %v2730 = vpack.c.b16 %v2593, %v2592
        %v2731 = vpack.c.b16 %v2595, %v2594
        %v2732 = vpack.c.b16 %v2597, %v2596
        %v2733 = vpack.c.b16 %v2599, %v2598
        %v2734 = vpack.c.b16 %v2601, %v2600
        %v2735 = vpack.c.b16 %v2603, %v2602
        %v2736 = vpack.c.b16 %v2605, %v2604
        %v2737 = vpack.c.b16 %v2607, %v2606
        %v2738 = vpack.c.b16 %v2609, %v2608
        %v2739 = vpack.c.b16 %v2611, %v2610
        %2868 = vmatpush.bf16.msra.mxu0 %v2619
        %2869 = vmatpush.bf16.msra.mxu0 %v2618
        %2870 = vmatpush.bf16.msra.mxu0 %v2617
        %2871 = vmatpush.bf16.msra.mxu0 %v2616
        %2872 = vmatpush.bf16.msra.mxu0 %v2615
        %2873 = vmatpush.bf16.msra.mxu0 %v2614
        %2874 = vmatpush.bf16.msra.mxu0 %v2613
        %2875 = vmatpush.bf16.msra.mxu0 %v2612
        %2876 = vmatmul.bf16.gmra.mxu0 %v1824
        %v2877 = vpop.f32.mrf.mxu0
        %v2878 = vadd.f32 %v2098, %v2877
        %v2879 = vpop.f32.mrf.mxu0
        %v2880 = vadd.f32 %v2098, %v2879
        %2881 = vdwg.mxu0
        %2882 = vmatpush.bf16.msra.mxu0 %v2627
        %2883 = vmatpush.bf16.msra.mxu0 %v2626
        %2884 = vmatpush.bf16.msra.mxu0 %v2625
        %2885 = vmatpush.bf16.msra.mxu0 %v2624
        %2886 = vmatpush.bf16.msra.mxu0 %v2623
        %2887 = vmatpush.bf16.msra.mxu0 %v2622
        %2888 = vmatpush.bf16.msra.mxu0 %v2621
        %2889 = vmatpush.bf16.msra.mxu0 %v2620
        %2890 = vmatmul.bf16.gmra.mxu0 %v1825
        %v2891 = vpop.f32.mrf.mxu0
        %v2892 = vadd.f32 %v2878, %v2891
        %v2893 = vpop.f32.mrf.mxu0
        %v2894 = vadd.f32 %v2880, %v2893
        %2895 = vdwg.mxu0
        %2896 = vmatpush.bf16.msra.mxu0 %v2635
        %2897 = vmatpush.bf16.msra.mxu0 %v2634
        %2898 = vmatpush.bf16.msra.mxu0 %v2633
        %2899 = vmatpush.bf16.msra.mxu0 %v2632
        %2900 = vmatpush.bf16.msra.mxu0 %v2631
        %2901 = vmatpush.bf16.msra.mxu0 %v2630
        %2902 = vmatpush.bf16.msra.mxu0 %v2629
        %2903 = vmatpush.bf16.msra.mxu0 %v2628
        %2904 = vmatmul.bf16.gmra.mxu0 %v1826
        %v2905 = vpop.f32.mrf.mxu0
        %v2906 = vadd.f32 %v2892, %v2905
        %v2907 = vpop.f32.mrf.mxu0
        %v2908 = vadd.f32 %v2894, %v2907
        %2909 = vdwg.mxu0
        %2910 = vmatpush.bf16.msra.mxu0 %v2643
        %2911 = vmatpush.bf16.msra.mxu0 %v2642
        %2912 = vmatpush.bf16.msra.mxu0 %v2641
        %2913 = vmatpush.bf16.msra.mxu0 %v2640
        %2914 = vmatpush.bf16.msra.mxu0 %v2639
        %2915 = vmatpush.bf16.msra.mxu0 %v2638
        %2916 = vmatpush.bf16.msra.mxu0 %v2637
        %2917 = vmatpush.bf16.msra.mxu0 %v2636
        %2918 = vmatmul.bf16.gmra.mxu0 %v1827
        %v2919 = vpop.f32.mrf.mxu0
        %v2920 = vadd.f32 %v2906, %v2919
        %v2921 = vpop.f32.mrf.mxu0
        %v2922 = vadd.f32 %v2908, %v2921
        %2923 = vdwg.mxu0
        %2924 = vmatpush.bf16.msra.mxu0 %v2651
        %2925 = vmatpush.bf16.msra.mxu0 %v2650
        %2926 = vmatpush.bf16.msra.mxu0 %v2649
        %2927 = vmatpush.bf16.msra.mxu0 %v2648
        %2928 = vmatpush.bf16.msra.mxu0 %v2647
        %2929 = vmatpush.bf16.msra.mxu0 %v2646
        %2930 = vmatpush.bf16.msra.mxu0 %v2645
        %2931 = vmatpush.bf16.msra.mxu0 %v2644
        %2932 = vmatmul.bf16.gmra.mxu0 %v1828
        %v2933 = vpop.f32.mrf.mxu0
        %v2934 = vadd.f32 %v2920, %v2933
        %v2935 = vpop.f32.mrf.mxu0
        %v2936 = vadd.f32 %v2922, %v2935
        %2937 = vdwg.mxu0
        %2938 = vmatpush.bf16.msra.mxu0 %v2659
        %2939 = vmatpush.bf16.msra.mxu0 %v2658
        %2940 = vmatpush.bf16.msra.mxu0 %v2657
        %2941 = vmatpush.bf16.msra.mxu0 %v2656
        %2942 = vmatpush.bf16.msra.mxu0 %v2655
        %2943 = vmatpush.bf16.msra.mxu0 %v2654
        %2944 = vmatpush.bf16.msra.mxu0 %v2653
        %2945 = vmatpush.bf16.msra.mxu0 %v2652
        %2946 = vmatmul.bf16.gmra.mxu0 %v1829
        %v2947 = vpop.f32.mrf.mxu0
        %v2948 = vadd.f32 %v2934, %v2947
        %v2949 = vpop.f32.mrf.mxu0
        %v2950 = vadd.f32 %v2936, %v2949
        %2951 = vdwg.mxu0
        %2952 = vmatpush.bf16.msra.mxu0 %v2667
        %2953 = vmatpush.bf16.msra.mxu0 %v2666
        %2954 = vmatpush.bf16.msra.mxu0 %v2665
        %2955 = vmatpush.bf16.msra.mxu0 %v2664
        %2956 = vmatpush.bf16.msra.mxu0 %v2663
        %2957 = vmatpush.bf16.msra.mxu0 %v2662
        %2958 = vmatpush.bf16.msra.mxu0 %v2661
        %2959 = vmatpush.bf16.msra.mxu0 %v2660
        %2960 = vmatmul.bf16.gmra.mxu0 %v1830
        %v2961 = vpop.f32.mrf.mxu0
        %v2962 = vadd.f32 %v2948, %v2961
        %v2963 = vpop.f32.mrf.mxu0
        %v2964 = vadd.f32 %v2950, %v2963
        %2965 = vdwg.mxu0
        %2966 = vmatpush.bf16.msra.mxu0 %v2675
        %2967 = vmatpush.bf16.msra.mxu0 %v2674
        %2968 = vmatpush.bf16.msra.mxu0 %v2673
        %2969 = vmatpush.bf16.msra.mxu0 %v2672
        %2970 = vmatpush.bf16.msra.mxu0 %v2671
        %2971 = vmatpush.bf16.msra.mxu0 %v2670
        %2972 = vmatpush.bf16.msra.mxu0 %v2669
        %2973 = vmatpush.bf16.msra.mxu0 %v2668
        %2974 = vmatmul.bf16.gmra.mxu0 %v1831
        %v2975 = vpop.f32.mrf.mxu0
        %v2976 = vadd.f32 %v2962, %v2975
        %v2977 = vpop.f32.mrf.mxu0
        %v2978 = vadd.f32 %v2964, %v2977
        %2979 = vdwg.mxu0
        %2980 = vmatpush.bf16.msra.mxu0 %v2683
        %2981 = vmatpush.bf16.msra.mxu0 %v2682
        %2982 = vmatpush.bf16.msra.mxu0 %v2681
        %2983 = vmatpush.bf16.msra.mxu0 %v2680
        %2984 = vmatpush.bf16.msra.mxu0 %v2679
        %2985 = vmatpush.bf16.msra.mxu0 %v2678
        %2986 = vmatpush.bf16.msra.mxu0 %v2677
        %2987 = vmatpush.bf16.msra.mxu0 %v2676
        %2988 = vmatmul.bf16.gmra.mxu0 %v1832
        %v2989 = vpop.f32.mrf.mxu0
        %v2990 = vadd.f32 %v2976, %v2989
        %v2991 = vpop.f32.mrf.mxu0
        %v2992 = vadd.f32 %v2978, %v2991
        %2993 = vdwg.mxu0
        %2994 = vmatpush.bf16.msra.mxu0 %v2691
        %2995 = vmatpush.bf16.msra.mxu0 %v2690
        %2996 = vmatpush.bf16.msra.mxu0 %v2689
        %2997 = vmatpush.bf16.msra.mxu0 %v2688
        %2998 = vmatpush.bf16.msra.mxu0 %v2687
        %2999 = vmatpush.bf16.msra.mxu0 %v2686
        %3000 = vmatpush.bf16.msra.mxu0 %v2685
        %3001 = vmatpush.bf16.msra.mxu0 %v2684
        %3002 = vmatmul.bf16.gmra.mxu0 %v1833
        %v3003 = vpop.f32.mrf.mxu0
        %v3004 = vadd.f32 %v2990, %v3003
        %v3005 = vpop.f32.mrf.mxu0
        %v3006 = vadd.f32 %v2992, %v3005
        %3007 = vdwg.mxu0
        %3008 = vmatpush.bf16.msra.mxu0 %v2699
        %3009 = vmatpush.bf16.msra.mxu0 %v2698
        %3010 = vmatpush.bf16.msra.mxu0 %v2697
        %3011 = vmatpush.bf16.msra.mxu0 %v2696
        %3012 = vmatpush.bf16.msra.mxu0 %v2695
        %3013 = vmatpush.bf16.msra.mxu0 %v2694
        %3014 = vmatpush.bf16.msra.mxu0 %v2693
        %3015 = vmatpush.bf16.msra.mxu0 %v2692
        %3016 = vmatmul.bf16.gmra.mxu0 %v1834
        %v3017 = vpop.f32.mrf.mxu0
        %v3018 = vadd.f32 %v3004, %v3017
        %v3019 = vpop.f32.mrf.mxu0
        %v3020 = vadd.f32 %v3006, %v3019
        %3021 = vdwg.mxu0
        %3022 = vmatpush.bf16.msra.mxu0 %v2707
        %3023 = vmatpush.bf16.msra.mxu0 %v2706
        %3024 = vmatpush.bf16.msra.mxu0 %v2705
        %3025 = vmatpush.bf16.msra.mxu0 %v2704
        %3026 = vmatpush.bf16.msra.mxu0 %v2703
        %3027 = vmatpush.bf16.msra.mxu0 %v2702
        %3028 = vmatpush.bf16.msra.mxu0 %v2701
        %3029 = vmatpush.bf16.msra.mxu0 %v2700
        %3030 = vmatmul.bf16.gmra.mxu0 %v1835
        %v3031 = vpop.f32.mrf.mxu0
        %v3032 = vadd.f32 %v3018, %v3031
        %v3033 = vpop.f32.mrf.mxu0
        %v3034 = vadd.f32 %v3020, %v3033
        %3035 = vdwg.mxu0
        %3036 = vmatpush.bf16.msra.mxu0 %v2715
        %3037 = vmatpush.bf16.msra.mxu0 %v2714
        %3038 = vmatpush.bf16.msra.mxu0 %v2713
        %3039 = vmatpush.bf16.msra.mxu0 %v2712
        %3040 = vmatpush.bf16.msra.mxu0 %v2711
        %3041 = vmatpush.bf16.msra.mxu0 %v2710
        %3042 = vmatpush.bf16.msra.mxu0 %v2709
        %3043 = vmatpush.bf16.msra.mxu0 %v2708
        %3044 = vmatmul.bf16.gmra.mxu0 %v1836
        %v3045 = vpop.f32.mrf.mxu0
        %v3046 = vadd.f32 %v3032, %v3045
        %v3047 = vpop.f32.mrf.mxu0
        %v3048 = vadd.f32 %v3034, %v3047
        %3049 = vdwg.mxu0
        %3050 = vmatpush.bf16.msra.mxu0 %v2723
        %3051 = vmatpush.bf16.msra.mxu0 %v2722
        %3052 = vmatpush.bf16.msra.mxu0 %v2721
        %3053 = vmatpush.bf16.msra.mxu0 %v2720
        %3054 = vmatpush.bf16.msra.mxu0 %v2719
        %3055 = vmatpush.bf16.msra.mxu0 %v2718
        %3056 = vmatpush.bf16.msra.mxu0 %v2717
        %3057 = vmatpush.bf16.msra.mxu0 %v2716
        %3058 = vmatmul.bf16.gmra.mxu0 %v1837
        %v3059 = vpop.f32.mrf.mxu0
        %v3060 = vadd.f32 %v3046, %v3059
        %v3061 = vpop.f32.mrf.mxu0
        %v3062 = vadd.f32 %v3048, %v3061
        %3063 = vdwg.mxu0
        %3064 = vmatpush.bf16.msra.mxu0 %v2731
        %3065 = vmatpush.bf16.msra.mxu0 %v2730
        %3066 = vmatpush.bf16.msra.mxu0 %v2729
        %3067 = vmatpush.bf16.msra.mxu0 %v2728
        %3068 = vmatpush.bf16.msra.mxu0 %v2727
        %3069 = vmatpush.bf16.msra.mxu0 %v2726
        %3070 = vmatpush.bf16.msra.mxu0 %v2725
        %3071 = vmatpush.bf16.msra.mxu0 %v2724
        %3072 = vmatmul.bf16.gmra.mxu0 %v1838
        %v3073 = vpop.f32.mrf.mxu0
        %v3074 = vadd.f32 %v3060, %v3073
        %v3075 = vpop.f32.mrf.mxu0
        %v3076 = vadd.f32 %v3062, %v3075
        %3077 = vdwg.mxu0
        %3078 = vmatpush.bf16.msra.mxu0 %v2739
        %3079 = vmatpush.bf16.msra.mxu0 %v2738
        %3080 = vmatpush.bf16.msra.mxu0 %v2737
        %3081 = vmatpush.bf16.msra.mxu0 %v2736
        %3082 = vmatpush.bf16.msra.mxu0 %v2735
        %3083 = vmatpush.bf16.msra.mxu0 %v2734
        %3084 = vmatpush.bf16.msra.mxu0 %v2733
        %3085 = vmatpush.bf16.msra.mxu0 %v2732
        %3086 = vmatmul.bf16.gmra.mxu0 %v1839
        %v3087 = vpop.f32.mrf.mxu0
        %v3088 = vadd.f32 %v3074, %v3087
        %v3089 = vpop.f32.mrf.mxu0
        %v3090 = vadd.f32 %v3076, %v3089
        %3091 = vdwg.mxu0
        %v3092 = vadd.f32 %v1334, %v3088
        %v3093 = vadd.f32 %v1335, %v3090
        %v3094 = vld [vmem:[%s683] sm:$0x1]
        %v3095 = vld [vmem:[%s686] sm:$0x1]
        %v3096 = vsel %vm721, %v3092, 0.0
        %3097 = vadd.xlane.f32.xlu0 %v3096
        %v3098 = vpop.xlane.xlu0 %3097
        %v3099 = vsel %vm721, %v3093, 0.0
        %3100 = vadd.xlane.f32.xlu0 %v3099
        %v3101 = vpop.xlane.xlu0 %3100
        %v3102 = vmul.f32 %v3098, %v1287
        %v3103 = vmul.f32 %v3101, %v1287
        %v3104 = vsub.f32 %v3092, %v3102
        %v3105 = vsub.f32 %v3093, %v3103
        %v3106 = vmul.f32 %v3104, %v3104
        %v3107 = vmul.f32 %v3105, %v3105
        %v3108 = vsel %vm721, %v3106, 0.0
        %3109 = vadd.xlane.f32.xlu0 %v3108
        %v3110 = vpop.xlane.xlu0 %3109
        %v3111 = vsel %vm721, %v3107, 0.0
        %3112 = vadd.xlane.f32.xlu0 %v3111
        %v3113 = vpop.xlane.xlu0 %3112
        %v3114 = vmul.f32 %v3110, %v1287
        %v3115 = vmul.f32 %v3113, %v1287
        %v3116 = vadd.f32 %v3114, 1e-05
        %v3117 = vadd.f32 %v3115, 1e-05
        %v3118 = vrsqrt.pop %v3116
        %v3119 = vmul.f32 %v3118, %v3116
        %v3120 = vmul.f32 %v3119, %v3118
        %v3121 = vmul.f32 0.5, %v3120
        %v3122 = vsub.f32 1.5, %v3121
        %v3123 = vmul.f32 %v3118, %v3122
        %vm3124 = vweird.f32 %v3116
        %vm3125 = vweird.f32 %v3118
        %vm3126 = vmor %vm3124, %vm3125
        %v3127 = vsel %vm3126, %v3118, %v3123
        %v3128 = vrsqrt.pop %v3117
        %v3129 = vmul.f32 %v3128, %v3117
        %v3130 = vmul.f32 %v3129, %v3128
        %v3131 = vmul.f32 0.5, %v3130
        %v3132 = vsub.f32 1.5, %v3131
        %v3133 = vmul.f32 %v3128, %v3132
        %vm3134 = vweird.f32 %v3117
        %vm3135 = vweird.f32 %v3128
        %vm3136 = vmor %vm3134, %vm3135
        %v3137 = vsel %vm3136, %v3128, %v3133
        %v3138 = vmul.f32 %v3104, %v3127
        %v3139 = vmul.f32 %v3105, %v3137
        %v3141 = vperm.slane %v3094, 0
        %v3143 = vmul.f32 %v3138, %v3141
        %v3144 = vmul.f32 %v3139, %v3141
        %v3146 = vperm.slane %v3095, 0
        %v3148 = vadd.f32 %v3143, %v3146
        %v3149 = vadd.f32 %v3144, %v3146
        %3150 = vst.msk [vmem:[#allocation2] sm:$0xff] %vm721, %v3148
        %3151 = vst.msk [vmem:[#allocation2 + $0x8] sm:$0xff] %vm721, %v3149
        %p3152 = scmp.eq.s32.totalorder %s31, 1
        // Predicated region
        $region81: #{tpu_custom_call.1} parent=75 // pred_check
          %p3153 = pneg %p3152
        $region82: #{tpu_custom_call.1} parent=75 // pred_check_branch
          %3155 = sbr.rel (%p3153) target = $region84
        $region83: #{tpu_custom_call.1} parent=75 // pred_region
          %3156 = vst.msk [vmem:[#allocation3] sm:$0xff] %vm721, %v3148
          %3157 = vst.msk [vmem:[#allocation3 + $0x8] sm:$0xff] %vm721, %v3149
        $region84: #{tpu_custom_call.1} parent=75 // pred_fallthru
          _
        // Predicated region
        $region85: #{tpu_custom_call.1} parent=75 // pred_check
          %p3158 = pneg %p420
        $region86: #{tpu_custom_call.1} parent=75 // pred_check_branch
          %3160 = sbr.rel (%p3158) target = $region88
        $region87: #{tpu_custom_call.1} parent=75 // pred_region
          %s3161 = smul.u32 2, %s30
          %3163 = vsyncadd [#allocation4], 0
          %s3164 = smul.addr %s3161, 8
          %s3165 = scalar_lea.hbm %s14, %s3164
          %s3166 = sshll.u32 [#allocation3], 4
          %s3167 = int_to_ptr.vmem [resolvable:$true] %s3166
          %s3168 = sshll.u32 %s3165, 4
          %s3169 = int_to_ptr.hbm [resolvable:$true] %s3168
          %3174 = dma.vmem_to_hbm [thread:$0]  %s3167, 256, %s3169, [#allocation4], 128, 128, 8
        $region88: #{tpu_custom_call.1} parent=75 // pred_fallthru
          _
        // Predicated region
        $region89: #{tpu_custom_call.1} parent=75 // pred_check
          %p3175 = pneg %p420
        $region90: #{tpu_custom_call.1} parent=75 // pred_check_branch
          %3177 = sbr.rel (%p3175) target = $region92
        $region91: #{tpu_custom_call.1} parent=75 // pred_region
          %3179 = dma.done [#allocation4], 256
        $region92: #{tpu_custom_call.1} parent=75 // pred_fallthru
          _
      $region76: #{tpu_custom_call.1} parent=5 // pred_fallthru
        _
      %p3180 = scmp.le.s32.totalorder 2, %s21
      // Predicated region
      $region93: #{tpu_custom_call.1} parent=5 // pred_check
        %p3181 = pneg %p3180
      $region94: #{tpu_custom_call.1} parent=5 // pred_check_branch
        %3183 = sbr.rel (%p3181) target = $region96
      $region95: #{tpu_custom_call.1} parent=5 // pred_region
        %s3184 = ssub.s32 %s21, 2
      $region96: #{tpu_custom_call.1} parent=5 // pred_fallthru
        _
    $region6: #{tpu_custom_call.1} parent=1 // loop_footer
      %s25 = sadd.s32 1, %s21
    $region7: #{tpu_custom_call.1} parent=1 // loop_footer_branch
      %20 = sbr.rel target = $region3
    $region8: #{tpu_custom_call.1} parent=1 // loop_exit
      _
    %3185 = vsyncpa [#allocation4], 1
    %s3186 = scalar_lea.sflag [#allocation4], 1
    %3187 = vsyncpa %s3186, 1

</llo_original>
